<compile_context>
chip_gen: v7x
topology: tpu7x:2x2x1
jax: 0.10.0
libtpu: 0.0.40
codegen_flags: <defaults>
</compile_context>

<pallas_src>
import numpy as np

import jax
import jax.numpy as jnp
from jax.experimental import pallas as pl
from jax.experimental.pallas import tpu as pltpu

# Memory-space enum name moved across JAX versions; resolve once.
_MEM_SPACE = getattr(pltpu, "MemorySpace", None) or getattr(pltpu, "TPUMemorySpace")
_VMEM_SPEC = pl.BlockSpec(memory_space=_MEM_SPACE.VMEM)


def _round_up8(v):
    return -(-v // 8) * 8


# ----------------------------------------------------------------------------
# Host-side (one-time) construction of the per-conv selection/weight matrices.
# ----------------------------------------------------------------------------
def _conv_mats(w, hin, win, sh, sw, ph, pw, n,
               win_store=None, valid_h=None, valid_w=None, pad_out=True):
    """Per-width-tap (M_j, R_j) for one Conv2d acting on feature maps laid out
    as X[ci*hin + h, b*win_store + w] (batch folded into the lane axis):

        conv(X) = sum_j  M_j @ X @ R_j        (bias added separately)

    valid_h/valid_w < hin/win emulate cropping the input (used for conv5);
    win_store is the stored (8-padded) per-batch width of the input feature
    map; the returned output width is 8-padded unless pad_out=False.

    Returns (M_cat, R_cat, ho, wo, wo_store) with taps concatenated along
    M rows (sublane-aligned slices) and R columns.
    """
    cout, cin, kh, kw = w.shape
    win_store = win if win_store is None else win_store
    vh = hin if valid_h is None else valid_h
    vw = win if valid_w is None else valid_w
    ho = (vh + 2 * ph - kh) // sh + 1
    wo = (vw + 2 * pw - kw) // sw + 1
    wo_store = _round_up8(wo) if pad_out else wo
    eye_n = np.eye(n, dtype=np.float32)
    ms, rs = [], []
    for j in range(kw):
        m = np.zeros((cout * ho, cin * hin), np.float32)
        for oh in range(ho):
            for i in range(kh):
                h = oh * sh + i - ph
                if 0 <= h < vh:
                    m[np.ix_(np.arange(cout) * ho + oh,
                             np.arange(cin) * hin + h)] += w[:, :, i, j]
        r = np.zeros((win_store, wo_store), np.float32)
        for ow in range(wo):
            ww = ow * sw + j - pw
            if 0 <= ww < vw:
                r[ww, ow] = 1.0
        ms.append(m)
        rs.append(np.kron(eye_n, r))
    return (np.concatenate(ms, axis=0), np.concatenate(rs, axis=1),
            ho, wo, wo_store)


def _bias_col(b, ho):
    # Bias in the (cout*ho, 1) row layout; broadcasts over the N*Wo lane axis.
    return np.repeat(np.asarray(b, np.float32), ho).reshape(-1, 1)


# ----------------------------------------------------------------------------
# Model builder: hoisted weight prep + single fused pallas_call forward.
# ----------------------------------------------------------------------------
def build_model(params, x_shape):
    n, c, hin, win = x_shape
    as_np = lambda p: (np.asarray(p[0], np.float32), np.asarray(p[1], np.float32))
    w1, b1 = as_np(params["conv1"])
    w2, b2 = as_np(params["conv2"])
    w3, b3 = as_np(params["conv3"])
    w4, b4 = as_np(params["conv4"])
    w5, b5 = as_np(params["conv5"])

    # conv1(x): k(3,3) s(3,3) p(1,1)
    m1, r1, ho1, wo1, ws1 = _conv_mats(w1, hin, win, 3, 3, 1, 1, n)
    # conv2(x + x): k(2,2) s(1,1) p(1,1); the doubling is folded into weights.
    m2, r2, ho2, wo2, ws2 = _conv_mats(2.0 * w2, hin, win, 1, 1, 1, 1, n)
    # TODO(synk): repaired chain conv4(conv3(conv2(x+x))) -- see header note.
    m3, r3, ho3, wo3, ws3 = _conv_mats(w3, ho2, wo2, 2, 2, 1, 1, n, win_store=ws2)
    m4, r4, ho4, wo4, ws4 = _conv_mats(w4, ho3, wo3, 1, 1, 1, 1, n, win_store=ws3)
    # conv5 applied to (v2[:, :, :ho1, :wo1] - v1): one branch per operand of
    # the (linear) subtraction; the crop is folded into branch "a".
    m5a, r5a, ho5, wo5, _ = _conv_mats(w5, ho4, wo4, 2, 2, 1, 1, n,
                                       win_store=ws4, valid_h=ho1, valid_w=wo1,
                                       pad_out=False)
    m5b, r5b, _, _, _ = _conv_mats(w5, ho1, wo1, 2, 2, 1, 1, n,
                                   win_store=ws1, pad_out=False)

    consts = tuple(jnp.asarray(a) for a in (
        m1, r1, _bias_col(b1, ho1),
        m2, r2, _bias_col(b2, ho2),
        m3, r3, _bias_col(b3, ho3),
        m4, r4, _bias_col(b4, ho4),
        m5a, r5a, m5b, r5b, _bias_col(b5, ho5)))

    cout = 8
    kw1, kw2, kw3, kw4 = w1.shape[3], w2.shape[3], w3.shape[3], w4.shape[3]

    def kernel(x_ref,
               m1_ref, r1_ref, b1_ref, m2_ref, r2_ref, b2_ref,
               m3_ref, r3_ref, b3_ref, m4_ref, r4_ref, b4_ref,
               m5a_ref, r5a_ref, m5b_ref, r5b_ref, b5_ref,
               o_ref):
        def mm(a, b):
            return jnp.dot(a, b, preferred_element_type=jnp.float32)

        def conv(x, m_ref, r_ref, kw, rows, cols):
            # conv(x) = sum_j M_j @ x @ R_j ; taps are static slices of the refs.
            out = None
            for j in range(kw):
                y = mm(x, r_ref[:, j * cols:(j + 1) * cols])
                t = mm(m_ref[j * rows:(j + 1) * rows, :], y)
                out = t if out is None else out + t
            return out

        x = x_ref[...]
        v1 = conv(x, m1_ref, r1_ref, kw1, cout * ho1, n * ws1) + b1_ref[...]
        u2 = conv(x, m2_ref, r2_ref, kw2, cout * ho2, n * ws2) + b2_ref[...]
        t3 = conv(u2, m3_ref, r3_ref, kw3, cout * ho3, n * ws3) + b3_ref[...]
        v2 = conv(t3, m4_ref, r4_ref, kw4, cout * ho4, n * ws4) + b4_ref[...]
        # v4 = conv5(v2[:, :, :ho1, :wo1] - v1); crop + sub folded into M/R.
        v4 = (conv(v2, m5a_ref, r5a_ref, 1, cout * ho5, n * wo5)
              - conv(v1, m5b_ref, r5b_ref, 1, cout * ho5, n * wo5)
              + b5_ref[...])
        o_ref[...] = v4

    fused = pl.pallas_call(
        kernel,
        out_shape=jax.ShapeDtypeStruct((cout * ho5, n * wo5), jnp.float32),
        in_specs=[_VMEM_SPEC] * (1 + len(consts)),
        out_specs=_VMEM_SPEC,
    )

    @jax.jit
    def forward(x):
        # (N, C, H, W) -> (C*H, N*W): rows on sublanes, batch*W on lanes.
        x2 = jnp.transpose(x, (1, 2, 0, 3)).reshape(c * hin, n * win)
        o2 = fused(x2, *consts)
        return o2.reshape(cout, ho5, n, wo5).transpose(2, 0, 1, 3)

    return forward


# ----------------------------------------------------------------------------
# Deterministic parameter init (PyTorch Conv2d default: U(-k, k), k=1/sqrt(fan_in))
# ----------------------------------------------------------------------------
def _init_conv(key, cout, cin, kh, kw):
    kw_, kb_ = jax.random.split(key)
    fan_in = cin * kh * kw
    bound = 1.0 / (fan_in ** 0.5)
    w = jax.random.uniform(kw_, (cout, cin, kh, kw), jnp.float32, -bound, bound)
    b = jax.random.uniform(kb_, (cout,), jnp.float32, -bound, bound)
    return w, b


def init_params(key):
    k1, k2, k3, k4, k5 = jax.random.split(key, 5)
    return {
        "conv1": _init_conv(k1, 8, 3, 3, 3),
        "conv2": _init_conv(k2, 8, 3, 2, 2),
        "conv3": _init_conv(k3, 8, 8, 2, 2),
        "conv4": _init_conv(k4, 8, 8, 3, 2),
        "conv5": _init_conv(k5, 8, 8, 1, 1),
    }


# ----------------------------------------------------------------------------
# Pure-NumPy (float64) reference of the repaired dataflow, for validation.
# ----------------------------------------------------------------------------
def _np_conv2d(x, w, b, stride, pad):
    n, cin, h, wdt = x.shape
    cout, _, kh, kw = w.shape
    sh, sw = stride
    ph, pw = pad
    ho = (h + 2 * ph - kh) // sh + 1
    wo = (wdt + 2 * pw - kw) // sw + 1
    xp = np.pad(x, ((0, 0), (0, 0), (ph, ph), (pw, pw)))
    out = np.zeros((n, cout, ho, wo), x.dtype)
    for i in range(kh):
        for j in range(kw):
            patch = xp[:, :, i:i + sh * (ho - 1) + 1:sh, j:j + sw * (wo - 1) + 1:sw]
            out += np.einsum("nchw,oc->nohw", patch, w[:, :, i, j])
    return out + b.reshape(1, cout, 1, 1)


def reference_forward(x, params):
    f64 = lambda t: np.asarray(t, np.float64)
    w1, b1 = map(f64, params["conv1"])
    w2, b2 = map(f64, params["conv2"])
    w3, b3 = map(f64, params["conv3"])
    w4, b4 = map(f64, params["conv4"])
    w5, b5 = map(f64, params["conv5"])
    x = f64(x)
    v1 = _np_conv2d(x, w1, b1, (3, 3), (1, 1))
    u2 = _np_conv2d(x + x, w2, b2, (1, 1), (1, 1))
    t3 = _np_conv2d(u2, w3, b3, (2, 2), (1, 1))
    v2 = _np_conv2d(t3, w4, b4, (1, 1), (1, 1))
    v3 = v2[:, :, : v1.shape[2], : v1.shape[3]] - v1
    return _np_conv2d(v3, w5, b5, (2, 2), (1, 1))


if __name__ == "__main__":
    key = jax.random.PRNGKey(0)
    kx, kp = jax.random.split(key)
    x = jax.random.normal(kx, (1, 3, 32, 32), jnp.float32)  # matches the module's x
    params = init_params(kp)

    forward = build_model(params, x.shape)  # one-time host-side weight prep
    out = forward(x)
    jax.block_until_ready(out)

    assert out.shape == (1, 8, 7, 7), out.shape
    ref = reference_forward(np.asarray(x), params)
    np.testing.assert_allclose(np.asarray(out, np.float64), ref, rtol=5e-2, atol=5e-2)
    print("KERNEL_OK")
</pallas_src>

<mosaic_0001>
module attributes {stable_mosaic.version = 11 : i64} {
  func.func @kernel(%arg0: memref<96x32xf32, #tpu.memory_space<vmem>>, %arg1: memref<264x96xf32, #tpu.memory_space<vmem>>, %arg2: memref<32x48xf32, #tpu.memory_space<vmem>>, %arg3: memref<88x1xf32, #tpu.memory_space<vmem>>, %arg4: memref<528x96xf32, #tpu.memory_space<vmem>>, %arg5: memref<32x80xf32, #tpu.memory_space<vmem>>, %arg6: memref<264x1xf32, #tpu.memory_space<vmem>>, %arg7: memref<272x264xf32, #tpu.memory_space<vmem>>, %arg8: memref<40x48xf32, #tpu.memory_space<vmem>>, %arg9: memref<136x1xf32, #tpu.memory_space<vmem>>, %arg10: memref<272x136xf32, #tpu.memory_space<vmem>>, %arg11: memref<24x48xf32, #tpu.memory_space<vmem>>, %arg12: memref<136x1xf32, #tpu.memory_space<vmem>>, %arg13: memref<56x136xf32, #tpu.memory_space<vmem>>, %arg14: memref<24x7xf32, #tpu.memory_space<vmem>>, %arg15: memref<56x88xf32, #tpu.memory_space<vmem>>, %arg16: memref<16x7xf32, #tpu.memory_space<vmem>>, %arg17: memref<56x1xf32, #tpu.memory_space<vmem>>, %arg18: memref<56x7xf32, #tpu.memory_space<vmem>>) attributes {dimension_semantics = [], scalar_prefetch = 0 : i64, scratch_operands = 0 : i64, tpu.core_type = #tpu.core_type<tc>} {
    %c0 = arith.constant 0 : index
    %c0_0 = arith.constant 0 : index
    %0 = vector.load %arg0[%c0, %c0_0] : memref<96x32xf32, #tpu.memory_space<vmem>>, vector<96x32xf32>
    %c0_1 = arith.constant 0 : index
    %c0_2 = arith.constant 0 : index
    %1 = vector.load %arg2[%c0_1, %c0_2] : memref<32x48xf32, #tpu.memory_space<vmem>>, vector<32x16xf32>
    %cst = arith.constant dense<0.000000e+00> : vector<96x16xf32>
    %2 = tpu.matmul %0, %1, %cst {dimension_numbers = #tpu.dot_dimension_numbers<[1], [0], [0], [1], [0, 0, 1, 1], [], []>} : vector<96x32xf32>, vector<32x16xf32>, vector<96x16xf32> -> vector<96x16xf32>
    %c0_3 = arith.constant 0 : index
    %c0_4 = arith.constant 0 : index
    %3 = vector.load %arg1[%c0_3, %c0_4] : memref<264x96xf32, #tpu.memory_space<vmem>>, vector<88x96xf32>
    %cst_5 = arith.constant dense<0.000000e+00> : vector<88x16xf32>
    %4 = tpu.matmul %3, %2, %cst_5 {dimension_numbers = #tpu.dot_dimension_numbers<[1], [0], [0], [1], [0, 0, 1, 1], [], []>} : vector<88x96xf32>, vector<96x16xf32>, vector<88x16xf32> -> vector<88x16xf32>
    %c0_6 = arith.constant 0 : index
    %c16 = arith.constant 16 : index
    %5 = vector.load %arg2[%c0_6, %c16] : memref<32x48xf32, #tpu.memory_space<vmem>>, vector<32x16xf32>
    %cst_7 = arith.constant dense<0.000000e+00> : vector<96x16xf32>
    %6 = tpu.matmul %0, %5, %cst_7 {dimension_numbers = #tpu.dot_dimension_numbers<[1], [0], [0], [1], [0, 0, 1, 1], [], []>} : vector<96x32xf32>, vector<32x16xf32>, vector<96x16xf32> -> vector<96x16xf32>
    %c88 = arith.constant 88 : index
    %c0_8 = arith.constant 0 : index
    %7 = vector.load %arg1[%c88, %c0_8] : memref<264x96xf32, #tpu.memory_space<vmem>>, vector<88x96xf32>
    %cst_9 = arith.constant dense<0.000000e+00> : vector<88x16xf32>
    %8 = tpu.matmul %7, %6, %cst_9 {dimension_numbers = #tpu.dot_dimension_numbers<[1], [0], [0], [1], [0, 0, 1, 1], [], []>} : vector<88x96xf32>, vector<96x16xf32>, vector<88x16xf32> -> vector<88x16xf32>
    %9 = arith.addf %4, %8 : vector<88x16xf32>
    %c0_10 = arith.constant 0 : index
    %c32 = arith.constant 32 : index
    %10 = vector.load %arg2[%c0_10, %c32] : memref<32x48xf32, #tpu.memory_space<vmem>>, vector<32x16xf32>
    %cst_11 = arith.constant dense<0.000000e+00> : vector<96x16xf32>
    %11 = tpu.matmul %0, %10, %cst_11 {dimension_numbers = #tpu.dot_dimension_numbers<[1], [0], [0], [1], [0, 0, 1, 1], [], []>} : vector<96x32xf32>, vector<32x16xf32>, vector<96x16xf32> -> vector<96x16xf32>
    %c176 = arith.constant 176 : index
    %c0_12 = arith.constant 0 : index
    %12 = vector.load %arg1[%c176, %c0_12] : memref<264x96xf32, #tpu.memory_space<vmem>>, vector<88x96xf32>
    %cst_13 = arith.constant dense<0.000000e+00> : vector<88x16xf32>
    %13 = tpu.matmul %12, %11, %cst_13 {dimension_numbers = #tpu.dot_dimension_numbers<[1], [0], [0], [1], [0, 0, 1, 1], [], []>} : vector<88x96xf32>, vector<96x16xf32>, vector<88x16xf32> -> vector<88x16xf32>
    %14 = arith.addf %9, %13 : vector<88x16xf32>
    %c0_14 = arith.constant 0 : index
    %c0_15 = arith.constant 0 : index
    %15 = vector.load %arg3[%c0_14, %c0_15] : memref<88x1xf32, #tpu.memory_space<vmem>>, vector<88x1xf32>
    %16 = vector.broadcast %15 : vector<88x1xf32> to vector<88x16xf32>
    %17 = arith.addf %14, %16 : vector<88x16xf32>
    %c0_16 = arith.constant 0 : index
    %c0_17 = arith.constant 0 : index
    %18 = vector.load %arg5[%c0_16, %c0_17] : memref<32x80xf32, #tpu.memory_space<vmem>>, vector<32x40xf32>
    %cst_18 = arith.constant dense<0.000000e+00> : vector<96x40xf32>
    %19 = tpu.matmul %0, %18, %cst_18 {dimension_numbers = #tpu.dot_dimension_numbers<[1], [0], [0], [1], [0, 0, 1, 1], [], []>} : vector<96x32xf32>, vector<32x40xf32>, vector<96x40xf32> -> vector<96x40xf32>
    %c0_19 = arith.constant 0 : index
    %c0_20 = arith.constant 0 : index
    %20 = vector.load %arg4[%c0_19, %c0_20] : memref<528x96xf32, #tpu.memory_space<vmem>>, vector<264x96xf32>
    %cst_21 = arith.constant dense<0.000000e+00> : vector<264x40xf32>
    %21 = tpu.matmul %20, %19, %cst_21 {dimension_numbers = #tpu.dot_dimension_numbers<[1], [0], [0], [1], [0, 0, 1, 1], [], []>} : vector<264x96xf32>, vector<96x40xf32>, vector<264x40xf32> -> vector<264x40xf32>
    %c0_22 = arith.constant 0 : index
    %c40 = arith.constant 40 : index
    %22 = vector.load %arg5[%c0_22, %c40] : memref<32x80xf32, #tpu.memory_space<vmem>>, vector<32x40xf32>
    %cst_23 = arith.constant dense<0.000000e+00> : vector<96x40xf32>
    %23 = tpu.matmul %0, %22, %cst_23 {dimension_numbers = #tpu.dot_dimension_numbers<[1], [0], [0], [1], [0, 0, 1, 1], [], []>} : vector<96x32xf32>, vector<32x40xf32>, vector<96x40xf32> -> vector<96x40xf32>
    %c264 = arith.constant 264 : index
    %c0_24 = arith.constant 0 : index
    %24 = vector.load %arg4[%c264, %c0_24] : memref<528x96xf32, #tpu.memory_space<vmem>>, vector<264x96xf32>
    %cst_25 = arith.constant dense<0.000000e+00> : vector<264x40xf32>
    %25 = tpu.matmul %24, %23, %cst_25 {dimension_numbers = #tpu.dot_dimension_numbers<[1], [0], [0], [1], [0, 0, 1, 1], [], []>} : vector<264x96xf32>, vector<96x40xf32>, vector<264x40xf32> -> vector<264x40xf32>
    %26 = arith.addf %21, %25 : vector<264x40xf32>
    %c0_26 = arith.constant 0 : index
    %c0_27 = arith.constant 0 : index
    %27 = vector.load %arg6[%c0_26, %c0_27] : memref<264x1xf32, #tpu.memory_space<vmem>>, vector<264x1xf32>
    %28 = vector.broadcast %27 : vector<264x1xf32> to vector<264x40xf32>
    %29 = arith.addf %26, %28 : vector<264x40xf32>
    %c0_28 = arith.constant 0 : index
    %c0_29 = arith.constant 0 : index
    %30 = vector.load %arg8[%c0_28, %c0_29] : memref<40x48xf32, #tpu.memory_space<vmem>>, vector<40x24xf32>
    %cst_30 = arith.constant dense<0.000000e+00> : vector<264x24xf32>
    %31 = tpu.matmul %29, %30, %cst_30 {dimension_numbers = #tpu.dot_dimension_numbers<[1], [0], [0], [1], [0, 0, 1, 1], [], []>} : vector<264x40xf32>, vector<40x24xf32>, vector<264x24xf32> -> vector<264x24xf32>
    %c0_31 = arith.constant 0 : index
    %c0_32 = arith.constant 0 : index
    %32 = vector.load %arg7[%c0_31, %c0_32] : memref<272x264xf32, #tpu.memory_space<vmem>>, vector<136x264xf32>
    %cst_33 = arith.constant dense<0.000000e+00> : vector<136x24xf32>
    %33 = tpu.matmul %32, %31, %cst_33 {dimension_numbers = #tpu.dot_dimension_numbers<[1], [0], [0], [1], [0, 0, 1, 1], [], []>} : vector<136x264xf32>, vector<264x24xf32>, vector<136x24xf32> -> vector<136x24xf32>
    %c0_34 = arith.constant 0 : index
    %c24 = arith.constant 24 : index
    %34 = vector.load %arg8[%c0_34, %c24] : memref<40x48xf32, #tpu.memory_space<vmem>>, vector<40x24xf32>
    %cst_35 = arith.constant dense<0.000000e+00> : vector<264x24xf32>
    %35 = tpu.matmul %29, %34, %cst_35 {dimension_numbers = #tpu.dot_dimension_numbers<[1], [0], [0], [1], [0, 0, 1, 1], [], []>} : vector<264x40xf32>, vector<40x24xf32>, vector<264x24xf32> -> vector<264x24xf32>
    %c136 = arith.constant 136 : index
    %c0_36 = arith.constant 0 : index
    %36 = vector.load %arg7[%c136, %c0_36] : memref<272x264xf32, #tpu.memory_space<vmem>>, vector<136x264xf32>
    %cst_37 = arith.constant dense<0.000000e+00> : vector<136x24xf32>
    %37 = tpu.matmul %36, %35, %cst_37 {dimension_numbers = #tpu.dot_dimension_numbers<[1], [0], [0], [1], [0, 0, 1, 1], [], []>} : vector<136x264xf32>, vector<264x24xf32>, vector<136x24xf32> -> vector<136x24xf32>
    %38 = arith.addf %33, %37 : vector<136x24xf32>
    %c0_38 = arith.constant 0 : index
    %c0_39 = arith.constant 0 : index
    %39 = vector.load %arg9[%c0_38, %c0_39] : memref<136x1xf32, #tpu.memory_space<vmem>>, vector<136x1xf32>
    %40 = vector.broadcast %39 : vector<136x1xf32> to vector<136x24xf32>
    %41 = arith.addf %38, %40 : vector<136x24xf32>
    %c0_40 = arith.constant 0 : index
    %c0_41 = arith.constant 0 : index
    %42 = vector.load %arg11[%c0_40, %c0_41] : memref<24x48xf32, #tpu.memory_space<vmem>>, vector<24x24xf32>
    %cst_42 = arith.constant dense<0.000000e+00> : vector<136x24xf32>
    %43 = tpu.matmul %41, %42, %cst_42 {dimension_numbers = #tpu.dot_dimension_numbers<[1], [0], [0], [1], [0, 0, 1, 1], [], []>} : vector<136x24xf32>, vector<24x24xf32>, vector<136x24xf32> -> vector<136x24xf32>
    %c0_43 = arith.constant 0 : index
    %c0_44 = arith.constant 0 : index
    %44 = vector.load %arg10[%c0_43, %c0_44] : memref<272x136xf32, #tpu.memory_space<vmem>>, vector<136x136xf32>
    %cst_45 = arith.constant dense<0.000000e+00> : vector<136x24xf32>
    %45 = tpu.matmul %44, %43, %cst_45 {dimension_numbers = #tpu.dot_dimension_numbers<[1], [0], [0], [1], [0, 0, 1, 1], [], []>} : vector<136x136xf32>, vector<136x24xf32>, vector<136x24xf32> -> vector<136x24xf32>
    %c0_46 = arith.constant 0 : index
    %c24_47 = arith.constant 24 : index
    %46 = vector.load %arg11[%c0_46, %c24_47] : memref<24x48xf32, #tpu.memory_space<vmem>>, vector<24x24xf32>
    %cst_48 = arith.constant dense<0.000000e+00> : vector<136x24xf32>
    %47 = tpu.matmul %41, %46, %cst_48 {dimension_numbers = #tpu.dot_dimension_numbers<[1], [0], [0], [1], [0, 0, 1, 1], [], []>} : vector<136x24xf32>, vector<24x24xf32>, vector<136x24xf32> -> vector<136x24xf32>
    %c136_49 = arith.constant 136 : index
    %c0_50 = arith.constant 0 : index
    %48 = vector.load %arg10[%c136_49, %c0_50] : memref<272x136xf32, #tpu.memory_space<vmem>>, vector<136x136xf32>
    %cst_51 = arith.constant dense<0.000000e+00> : vector<136x24xf32>
    %49 = tpu.matmul %48, %47, %cst_51 {dimension_numbers = #tpu.dot_dimension_numbers<[1], [0], [0], [1], [0, 0, 1, 1], [], []>} : vector<136x136xf32>, vector<136x24xf32>, vector<136x24xf32> -> vector<136x24xf32>
    %50 = arith.addf %45, %49 : vector<136x24xf32>
    %c0_52 = arith.constant 0 : index
    %c0_53 = arith.constant 0 : index
    %51 = vector.load %arg12[%c0_52, %c0_53] : memref<136x1xf32, #tpu.memory_space<vmem>>, vector<136x1xf32>
    %52 = vector.broadcast %51 : vector<136x1xf32> to vector<136x24xf32>
    %53 = arith.addf %50, %52 : vector<136x24xf32>
    %c0_54 = arith.constant 0 : index
    %c0_55 = arith.constant 0 : index
    %54 = vector.load %arg14[%c0_54, %c0_55] : memref<24x7xf32, #tpu.memory_space<vmem>>, vector<24x7xf32>
    %cst_56 = arith.constant dense<0.000000e+00> : vector<136x7xf32>
    %55 = tpu.matmul %53, %54, %cst_56 {dimension_numbers = #tpu.dot_dimension_numbers<[1], [0], [0], [1], [0, 0, 1, 1], [], []>} : vector<136x24xf32>, vector<24x7xf32>, vector<136x7xf32> -> vector<136x7xf32>
    %c0_57 = arith.constant 0 : index
    %c0_58 = arith.constant 0 : index
    %56 = vector.load %arg13[%c0_57, %c0_58] : memref<56x136xf32, #tpu.memory_space<vmem>>, vector<56x136xf32>
    %cst_59 = arith.constant dense<0.000000e+00> : vector<56x7xf32>
    %57 = tpu.matmul %56, %55, %cst_59 {dimension_numbers = #tpu.dot_dimension_numbers<[1], [0], [0], [1], [0, 0, 1, 1], [], []>} : vector<56x136xf32>, vector<136x7xf32>, vector<56x7xf32> -> vector<56x7xf32>
    %c0_60 = arith.constant 0 : index
    %c0_61 = arith.constant 0 : index
    %58 = vector.load %arg16[%c0_60, %c0_61] : memref<16x7xf32, #tpu.memory_space<vmem>>, vector<16x7xf32>
    %cst_62 = arith.constant dense<0.000000e+00> : vector<88x7xf32>
    %59 = tpu.matmul %17, %58, %cst_62 {dimension_numbers = #tpu.dot_dimension_numbers<[1], [0], [0], [1], [0, 0, 1, 1], [], []>} : vector<88x16xf32>, vector<16x7xf32>, vector<88x7xf32> -> vector<88x7xf32>
    %c0_63 = arith.constant 0 : index
    %c0_64 = arith.constant 0 : index
    %60 = vector.load %arg15[%c0_63, %c0_64] : memref<56x88xf32, #tpu.memory_space<vmem>>, vector<56x88xf32>
    %cst_65 = arith.constant dense<0.000000e+00> : vector<56x7xf32>
    %61 = tpu.matmul %60, %59, %cst_65 {dimension_numbers = #tpu.dot_dimension_numbers<[1], [0], [0], [1], [0, 0, 1, 1], [], []>} : vector<56x88xf32>, vector<88x7xf32>, vector<56x7xf32> -> vector<56x7xf32>
    %62 = arith.subf %57, %61 : vector<56x7xf32>
    %c0_66 = arith.constant 0 : index
    %c0_67 = arith.constant 0 : index
    %63 = vector.load %arg17[%c0_66, %c0_67] : memref<56x1xf32, #tpu.memory_space<vmem>>, vector<56x1xf32>
    %64 = vector.broadcast %63 : vector<56x1xf32> to vector<56x7xf32>
    %65 = arith.addf %62, %64 : vector<56x7xf32>
    %c0_68 = arith.constant 0 : index
    %c0_69 = arith.constant 0 : index
    %66 = vector.load %arg18[%c0_68, %c0_69] : memref<56x7xf32, #tpu.memory_space<vmem>>, vector<56x7xf32>
    tpu.vector_store %arg18[%c0_68, %c0_69], %65 {strides = array<i32>} : memref<56x7xf32, #tpu.memory_space<vmem>>, vector<56x7xf32>,
    return
  }
}

</mosaic_0001>

<llo_original>
// kernel: forward.1
$region0: #{forward.1}
  #allocation0 [shape = 'u32[]', space=smem, size = 0x4, offset = 0x4, fixed_abs, tag = 'smem constant byte address 0x4 - core index']
  #allocation1 [shape = 'u32[144,128]{1,0:T(1,128)}', space=vmem, size = 0x12000, scoped, tag = 'internal scratch']
  %s0 = inlined_call_operand.hbm [shape: f32[96,32], index: 0, kind: input, shape index: {}]
  %s1 = inlined_call_operand.hbm [shape: f32[264,96], index: 1, kind: input, shape index: {}]
  %s2 = inlined_call_operand.hbm [shape: f32[32,48], index: 2, kind: input, shape index: {}]
  %s3 = inlined_call_operand.hbm [shape: f32[88,1], index: 3, kind: input, shape index: {}]
  %s4 = inlined_call_operand.hbm [shape: f32[528,96], index: 4, kind: input, shape index: {}]
  %s5 = inlined_call_operand.hbm [shape: f32[32,80], index: 5, kind: input, shape index: {}]
  %s6 = inlined_call_operand.hbm [shape: f32[264,1], index: 6, kind: input, shape index: {}]
  %s7 = inlined_call_operand.hbm [shape: f32[272,264], index: 7, kind: input, shape index: {}]
  %s8 = inlined_call_operand.hbm [shape: f32[40,48], index: 8, kind: input, shape index: {}]
  %s9 = inlined_call_operand.hbm [shape: f32[136,1], index: 9, kind: input, shape index: {}]
  %s10 = inlined_call_operand.hbm [shape: f32[272,136], index: 10, kind: input, shape index: {}]
  %s11 = inlined_call_operand.hbm [shape: f32[24,48], index: 11, kind: input, shape index: {}]
  %s12 = inlined_call_operand.hbm [shape: f32[136,1], index: 12, kind: input, shape index: {}]
  %s13 = inlined_call_operand.hbm [shape: f32[56,136], index: 13, kind: input, shape index: {}]
  %s14 = inlined_call_operand.hbm [shape: f32[24,7], index: 14, kind: input, shape index: {}]
  %s15 = inlined_call_operand.hbm [shape: f32[56,88], index: 15, kind: input, shape index: {}]
  %s16 = inlined_call_operand.hbm [shape: f32[16,7], index: 16, kind: input, shape index: {}]
  %s17 = inlined_call_operand.vmem [shape: f32[56,1], index: 17, kind: input, shape index: {}]
  %s18 = inlined_call_operand.vmem [shape: f32[56,7], index: 18, kind: output, shape index: {}]
  %s19 = sld [smem:[#allocation0]]
  $region150: #{forward.1} parent=0
    _
  %s21 = ssub.s32 1, %s19
  %s22 = scalar_select 0, %s21, %s19
  $region1: #{forward.1} parent=0
    #allocation2 [shape = 'u8[49152]{0}', space=vmem, size = 0xc000, scoped, tag = 'input window, operand 0, single buffered']
    #allocation3 [shape = 's32[1]{0}', space=sflag, size = 0x4, scoped, tag = 'scoped memory for forward.1']
    #allocation4 [shape = 'u8[135168]{0}', space=vmem, size = 0x21000, scoped, tag = 'input window, operand 1, single buffered']
    #allocation5 [shape = 's32[1]{0}', space=sflag, size = 0x4, scoped, tag = 'scoped memory for forward.1']
    #allocation6 [shape = 'u8[16384]{0}', space=vmem, size = 0x4000, scoped, tag = 'input window, operand 2, single buffered']
    #allocation7 [shape = 'u8[45056]{0}', space=vmem, size = 0xb000, scoped, tag = 'input window, operand 3, single buffered']
    #allocation8 [shape = 's32[1]{0}', space=sflag, size = 0x4, scoped, tag = 'scoped memory for forward.1']
    #allocation9 [shape = 'u8[270336]{0}', space=vmem, size = 0x42000, scoped, tag = 'input window, operand 4, single buffered']
    #allocation10 [shape = 'u8[16384]{0}', space=vmem, size = 0x4000, scoped, tag = 'input window, operand 5, single buffered']
    #allocation11 [shape = 's32[1]{0}', space=sflag, size = 0x4, scoped, tag = 'scoped memory for forward.1']
    #allocation12 [shape = 'u8[135168]{0}', space=vmem, size = 0x21000, scoped, tag = 'input window, operand 6, single buffered']
    #allocation13 [shape = 'u8[417792]{0}', space=vmem, size = 0x66000, scoped, tag = 'input window, operand 7, single buffered']
    #allocation14 [shape = 's32[1]{0}', space=sflag, size = 0x4, scoped, tag = 'scoped memory for forward.1']
    #allocation15 [shape = 'u8[20480]{0}', space=vmem, size = 0x5000, scoped, tag = 'input window, operand 8, single buffered']
    #allocation16 [shape = 'u8[69632]{0}', space=vmem, size = 0x11000, scoped, tag = 'input window, operand 9, single buffered']
    #allocation17 [shape = 's32[1]{0}', space=sflag, size = 0x4, scoped, tag = 'scoped memory for forward.1']
    #allocation18 [shape = 'u8[278528]{0}', space=vmem, size = 0x44000, scoped, tag = 'input window, operand 10, single buffered']
    #allocation19 [shape = 'u8[12288]{0}', space=vmem, size = 0x3000, scoped, tag = 'input window, operand 11, single buffered']
    #allocation20 [shape = 's32[1]{0}', space=sflag, size = 0x4, scoped, tag = 'scoped memory for forward.1']
    #allocation21 [shape = 'u8[69632]{0}', space=vmem, size = 0x11000, scoped, tag = 'input window, operand 12, single buffered']
    #allocation22 [shape = 'u8[57344]{0}', space=vmem, size = 0xe000, scoped, tag = 'input window, operand 13, single buffered']
    #allocation23 [shape = 's32[1]{0}', space=sflag, size = 0x4, scoped, tag = 'scoped memory for forward.1']
    #allocation24 [shape = 'u8[12288]{0}', space=vmem, size = 0x3000, scoped, tag = 'input window, operand 14, single buffered']
    #allocation25 [shape = 'u8[28672]{0}', space=vmem, size = 0x7000, scoped, tag = 'input window, operand 15, single buffered']
    #allocation26 [shape = 's32[1]{0}', space=sflag, size = 0x4, scoped, tag = 'scoped memory for forward.1']
    #allocation27 [shape = 'u8[8192]{0}', space=vmem, size = 0x2000, scoped, tag = 'input window, operand 16, single buffered']
    %23 = vsyncpa [#allocation3], 0
    %24 = vsyncpa [#allocation5], 0
    %25 = vsyncpa [#allocation8], 0
    %26 = vsyncpa [#allocation11], 0
    %27 = vsyncpa [#allocation14], 0
    %28 = vsyncpa [#allocation17], 0
    %29 = vsyncpa [#allocation20], 0
    %30 = vsyncpa [#allocation23], 0
    %31 = vsyncpa [#allocation26], 0
    // Predicated region
    $region2: #{forward.1} parent=1 // pred_check
      _
    $region3: #{forward.1} parent=1 // pred_check_branch
      %33 = sbr.rel (0) target = $region5
    $region4: #{forward.1} parent=1 // pred_region
      %s35 = ssub.s32 1536, 1536
      %36 = vsyncadd [#allocation3], %s35
      %s37 = sshll.u32 [#allocation2], 4
      %s38 = int_to_ptr.vmem [resolvable:$true] %s37
      %43 = dma.hbm_to_vmem [thread:$0]  %s0, 1536, %s38, [#allocation3], 128, 128, 8
    $region5: #{forward.1} parent=1 // pred_fallthru
      _
    // Predicated region
    $region6: #{forward.1} parent=1 // pred_check
      _
    $region7: #{forward.1} parent=1 // pred_check_branch
      %45 = sbr.rel (0) target = $region9
    $region8: #{forward.1} parent=1 // pred_region
      %s47 = ssub.s32 4224, 4224
      %48 = vsyncadd [#allocation5], %s47
      %s49 = sshll.u32 [#allocation4], 4
      %s50 = int_to_ptr.vmem [resolvable:$true] %s49
      %55 = dma.hbm_to_vmem [thread:$0]  %s1, 4224, %s50, [#allocation5], 128, 128, 8
    $region9: #{forward.1} parent=1 // pred_fallthru
      _
    // Predicated region
    $region10: #{forward.1} parent=1 // pred_check
      _
    $region11: #{forward.1} parent=1 // pred_check_branch
      %57 = sbr.rel (0) target = $region13
    $region12: #{forward.1} parent=1 // pred_region
      %s59 = ssub.s32 512, 512
      %60 = vsyncadd [#allocation5], %s59
      %s61 = sshll.u32 [#allocation6], 4
      %s62 = int_to_ptr.vmem [resolvable:$true] %s61
      %67 = dma.hbm_to_vmem [thread:$0]  %s2, 512, %s62, [#allocation5], 128, 128, 8
    $region13: #{forward.1} parent=1 // pred_fallthru
      _
    // Predicated region
    $region14: #{forward.1} parent=1 // pred_check
      _
    $region15: #{forward.1} parent=1 // pred_check_branch
      %69 = sbr.rel (0) target = $region17
    $region16: #{forward.1} parent=1 // pred_region
      %s71 = ssub.s32 1408, 1408
      %72 = vsyncadd [#allocation8], %s71
      %s73 = sshll.u32 [#allocation7], 4
      %s74 = int_to_ptr.vmem [resolvable:$true] %s73
      %79 = dma.hbm_to_vmem [thread:$0]  %s3, 1408, %s74, [#allocation8], 128, 128, 8
    $region17: #{forward.1} parent=1 // pred_fallthru
      _
    // Predicated region
    $region18: #{forward.1} parent=1 // pred_check
      _
    $region19: #{forward.1} parent=1 // pred_check_branch
      %81 = sbr.rel (0) target = $region21
    $region20: #{forward.1} parent=1 // pred_region
      %s83 = ssub.s32 8448, 8448
      %84 = vsyncadd [#allocation8], %s83
      %s85 = sshll.u32 [#allocation9], 4
      %s86 = int_to_ptr.vmem [resolvable:$true] %s85
      %91 = dma.hbm_to_vmem [thread:$0]  %s4, 8448, %s86, [#allocation8], 128, 128, 8
    $region21: #{forward.1} parent=1 // pred_fallthru
      _
    // Predicated region
    $region22: #{forward.1} parent=1 // pred_check
      _
    $region23: #{forward.1} parent=1 // pred_check_branch
      %93 = sbr.rel (0) target = $region25
    $region24: #{forward.1} parent=1 // pred_region
      %s95 = ssub.s32 512, 512
      %96 = vsyncadd [#allocation11], %s95
      %s97 = sshll.u32 [#allocation10], 4
      %s98 = int_to_ptr.vmem [resolvable:$true] %s97
      %103 = dma.hbm_to_vmem [thread:$0]  %s5, 512, %s98, [#allocation11], 128, 128, 8
    $region25: #{forward.1} parent=1 // pred_fallthru
      _
    // Predicated region
    $region26: #{forward.1} parent=1 // pred_check
      _
    $region27: #{forward.1} parent=1 // pred_check_branch
      %105 = sbr.rel (0) target = $region29
    $region28: #{forward.1} parent=1 // pred_region
      %s107 = ssub.s32 4224, 4224
      %108 = vsyncadd [#allocation11], %s107
      %s109 = sshll.u32 [#allocation12], 4
      %s110 = int_to_ptr.vmem [resolvable:$true] %s109
      %115 = dma.hbm_to_vmem [thread:$0]  %s6, 4224, %s110, [#allocation11], 128, 128, 8
    $region29: #{forward.1} parent=1 // pred_fallthru
      _
    // Predicated region
    $region30: #{forward.1} parent=1 // pred_check
      _
    $region31: #{forward.1} parent=1 // pred_check_branch
      %117 = sbr.rel (0) target = $region33
    $region32: #{forward.1} parent=1 // pred_region
      %s119 = ssub.s32 13056, 13056
      %120 = vsyncadd [#allocation14], %s119
      %s121 = sshll.u32 [#allocation13], 4
      %s122 = int_to_ptr.vmem [resolvable:$true] %s121
      %127 = dma.hbm_to_vmem [thread:$0]  %s7, 13056, %s122, [#allocation14], 384, 384, 24
    $region33: #{forward.1} parent=1 // pred_fallthru
      _
    // Predicated region
    $region34: #{forward.1} parent=1 // pred_check
      _
    $region35: #{forward.1} parent=1 // pred_check_branch
      %129 = sbr.rel (0) target = $region37
    $region36: #{forward.1} parent=1 // pred_region
      %s131 = ssub.s32 640, 640
      %132 = vsyncadd [#allocation14], %s131
      %s133 = sshll.u32 [#allocation15], 4
      %s134 = int_to_ptr.vmem [resolvable:$true] %s133
      %139 = dma.hbm_to_vmem [thread:$0]  %s8, 640, %s134, [#allocation14], 128, 128, 8
    $region37: #{forward.1} parent=1 // pred_fallthru
      _
    // Predicated region
    $region38: #{forward.1} parent=1 // pred_check
      _
    $region39: #{forward.1} parent=1 // pred_check_branch
      %141 = sbr.rel (0) target = $region41
    $region40: #{forward.1} parent=1 // pred_region
      %s143 = ssub.s32 2176, 2176
      %144 = vsyncadd [#allocation17], %s143
      %s145 = sshll.u32 [#allocation16], 4
      %s146 = int_to_ptr.vmem [resolvable:$true] %s145
      %151 = dma.hbm_to_vmem [thread:$0]  %s9, 2176, %s146, [#allocation17], 128, 128, 8
    $region41: #{forward.1} parent=1 // pred_fallthru
      _
    // Predicated region
    $region42: #{forward.1} parent=1 // pred_check
      _
    $region43: #{forward.1} parent=1 // pred_check_branch
      %153 = sbr.rel (0) target = $region45
    $region44: #{forward.1} parent=1 // pred_region
      %s155 = ssub.s32 8704, 8704
      %156 = vsyncadd [#allocation17], %s155
      %s157 = sshll.u32 [#allocation18], 4
      %s158 = int_to_ptr.vmem [resolvable:$true] %s157
      %163 = dma.hbm_to_vmem [thread:$0]  %s10, 8704, %s158, [#allocation17], 256, 256, 16
    $region45: #{forward.1} parent=1 // pred_fallthru
      _
    // Predicated region
    $region46: #{forward.1} parent=1 // pred_check
      _
    $region47: #{forward.1} parent=1 // pred_check_branch
      %165 = sbr.rel (0) target = $region49
    $region48: #{forward.1} parent=1 // pred_region
      %s167 = ssub.s32 384, 384
      %168 = vsyncadd [#allocation20], %s167
      %s169 = sshll.u32 [#allocation19], 4
      %s170 = int_to_ptr.vmem [resolvable:$true] %s169
      %175 = dma.hbm_to_vmem [thread:$0]  %s11, 384, %s170, [#allocation20], 128, 128, 8
    $region49: #{forward.1} parent=1 // pred_fallthru
      _
    // Predicated region
    $region50: #{forward.1} parent=1 // pred_check
      _
    $region51: #{forward.1} parent=1 // pred_check_branch
      %177 = sbr.rel (0) target = $region53
    $region52: #{forward.1} parent=1 // pred_region
      %s179 = ssub.s32 2176, 2176
      %180 = vsyncadd [#allocation20], %s179
      %s181 = sshll.u32 [#allocation21], 4
      %s182 = int_to_ptr.vmem [resolvable:$true] %s181
      %187 = dma.hbm_to_vmem [thread:$0]  %s12, 2176, %s182, [#allocation20], 128, 128, 8
    $region53: #{forward.1} parent=1 // pred_fallthru
      _
    // Predicated region
    $region54: #{forward.1} parent=1 // pred_check
      _
    $region55: #{forward.1} parent=1 // pred_check_branch
      %189 = sbr.rel (0) target = $region57
    $region56: #{forward.1} parent=1 // pred_region
      %s191 = ssub.s32 1792, 1792
      %192 = vsyncadd [#allocation23], %s191
      %s193 = sshll.u32 [#allocation22], 4
      %s194 = int_to_ptr.vmem [resolvable:$true] %s193
      %199 = dma.hbm_to_vmem [thread:$0]  %s13, 1792, %s194, [#allocation23], 256, 256, 16
    $region57: #{forward.1} parent=1 // pred_fallthru
      _
    // Predicated region
    $region58: #{forward.1} parent=1 // pred_check
      _
    $region59: #{forward.1} parent=1 // pred_check_branch
      %201 = sbr.rel (0) target = $region61
    $region60: #{forward.1} parent=1 // pred_region
      %s203 = ssub.s32 384, 384
      %204 = vsyncadd [#allocation23], %s203
      %s205 = sshll.u32 [#allocation24], 4
      %s206 = int_to_ptr.vmem [resolvable:$true] %s205
      %211 = dma.hbm_to_vmem [thread:$0]  %s14, 384, %s206, [#allocation23], 128, 128, 8
    $region61: #{forward.1} parent=1 // pred_fallthru
      _
    // Predicated region
    $region62: #{forward.1} parent=1 // pred_check
      _
    $region63: #{forward.1} parent=1 // pred_check_branch
      %213 = sbr.rel (0) target = $region65
    $region64: #{forward.1} parent=1 // pred_region
      %s215 = ssub.s32 896, 896
      %216 = vsyncadd [#allocation26], %s215
      %s217 = sshll.u32 [#allocation25], 4
      %s218 = int_to_ptr.vmem [resolvable:$true] %s217
      %223 = dma.hbm_to_vmem [thread:$0]  %s15, 896, %s218, [#allocation26], 128, 128, 8
    $region65: #{forward.1} parent=1 // pred_fallthru
      _
    // Predicated region
    $region66: #{forward.1} parent=1 // pred_check
      _
    $region67: #{forward.1} parent=1 // pred_check_branch
      %225 = sbr.rel (0) target = $region69
    $region68: #{forward.1} parent=1 // pred_region
      %s227 = ssub.s32 256, 256
      %228 = vsyncadd [#allocation26], %s227
      %s229 = sshll.u32 [#allocation27], 4
      %s230 = int_to_ptr.vmem [resolvable:$true] %s229
      %235 = dma.hbm_to_vmem [thread:$0]  %s16, 256, %s230, [#allocation26], 128, 128, 8
    $region69: #{forward.1} parent=1 // pred_fallthru
      _
    // Predicated region
    $region70: #{forward.1} parent=1 // pred_check
      _
    $region71: #{forward.1} parent=1 // pred_check_branch
      %237 = sbr.rel (0) target = $region73
    $region72: #{forward.1} parent=1 // pred_region
      _
    $region73: #{forward.1} parent=1 // pred_fallthru
      _
    // Predicated region
    $region74: #{forward.1} parent=1 // pred_check
      _
    $region75: #{forward.1} parent=1 // pred_check_branch
      %239 = sbr.rel (0) target = $region77
    $region76: #{forward.1} parent=1 // pred_region
      %240 = dma.done [#allocation3], 1536
    $region77: #{forward.1} parent=1 // pred_fallthru
      _
    // Predicated region
    $region78: #{forward.1} parent=1 // pred_check
      _
    $region79: #{forward.1} parent=1 // pred_check_branch
      %242 = sbr.rel (0) target = $region81
    $region80: #{forward.1} parent=1 // pred_region
      %243 = dma.done [#allocation5], 4224
    $region81: #{forward.1} parent=1 // pred_fallthru
      _
    // Predicated region
    $region82: #{forward.1} parent=1 // pred_check
      _
    $region83: #{forward.1} parent=1 // pred_check_branch
      %245 = sbr.rel (0) target = $region85
    $region84: #{forward.1} parent=1 // pred_region
      %246 = dma.done [#allocation5], 512
    $region85: #{forward.1} parent=1 // pred_fallthru
      _
    // Predicated region
    $region86: #{forward.1} parent=1 // pred_check
      _
    $region87: #{forward.1} parent=1 // pred_check_branch
      %248 = sbr.rel (0) target = $region89
    $region88: #{forward.1} parent=1 // pred_region
      %249 = dma.done [#allocation8], 1408
    $region89: #{forward.1} parent=1 // pred_fallthru
      _
    // Predicated region
    $region90: #{forward.1} parent=1 // pred_check
      _
    $region91: #{forward.1} parent=1 // pred_check_branch
      %251 = sbr.rel (0) target = $region93
    $region92: #{forward.1} parent=1 // pred_region
      %252 = dma.done [#allocation8], 8448
    $region93: #{forward.1} parent=1 // pred_fallthru
      _
    // Predicated region
    $region94: #{forward.1} parent=1 // pred_check
      _
    $region95: #{forward.1} parent=1 // pred_check_branch
      %254 = sbr.rel (0) target = $region97
    $region96: #{forward.1} parent=1 // pred_region
      %255 = dma.done [#allocation11], 512
    $region97: #{forward.1} parent=1 // pred_fallthru
      _
    // Predicated region
    $region98: #{forward.1} parent=1 // pred_check
      _
    $region99: #{forward.1} parent=1 // pred_check_branch
      %257 = sbr.rel (0) target = $region101
    $region100: #{forward.1} parent=1 // pred_region
      %258 = dma.done [#allocation11], 4224
    $region101: #{forward.1} parent=1 // pred_fallthru
      _
    // Predicated region
    $region102: #{forward.1} parent=1 // pred_check
      _
    $region103: #{forward.1} parent=1 // pred_check_branch
      %260 = sbr.rel (0) target = $region105
    $region104: #{forward.1} parent=1 // pred_region
      %261 = dma.done [#allocation14], 13056
    $region105: #{forward.1} parent=1 // pred_fallthru
      _
    // Predicated region
    $region106: #{forward.1} parent=1 // pred_check
      _
    $region107: #{forward.1} parent=1 // pred_check_branch
      %263 = sbr.rel (0) target = $region109
    $region108: #{forward.1} parent=1 // pred_region
      %264 = dma.done [#allocation14], 640
    $region109: #{forward.1} parent=1 // pred_fallthru
      _
    // Predicated region
    $region110: #{forward.1} parent=1 // pred_check
      _
    $region111: #{forward.1} parent=1 // pred_check_branch
      %266 = sbr.rel (0) target = $region113
    $region112: #{forward.1} parent=1 // pred_region
      %267 = dma.done [#allocation17], 2176
    $region113: #{forward.1} parent=1 // pred_fallthru
      _
    // Predicated region
    $region114: #{forward.1} parent=1 // pred_check
      _
    $region115: #{forward.1} parent=1 // pred_check_branch
      %269 = sbr.rel (0) target = $region117
    $region116: #{forward.1} parent=1 // pred_region
      %270 = dma.done [#allocation17], 8704
    $region117: #{forward.1} parent=1 // pred_fallthru
      _
    // Predicated region
    $region118: #{forward.1} parent=1 // pred_check
      _
    $region119: #{forward.1} parent=1 // pred_check_branch
      %272 = sbr.rel (0) target = $region121
    $region120: #{forward.1} parent=1 // pred_region
      %273 = dma.done [#allocation20], 384
    $region121: #{forward.1} parent=1 // pred_fallthru
      _
    // Predicated region
    $region122: #{forward.1} parent=1 // pred_check
      _
    $region123: #{forward.1} parent=1 // pred_check_branch
      %275 = sbr.rel (0) target = $region125
    $region124: #{forward.1} parent=1 // pred_region
      %276 = dma.done [#allocation20], 2176
    $region125: #{forward.1} parent=1 // pred_fallthru
      _
    // Predicated region
    $region126: #{forward.1} parent=1 // pred_check
      _
    $region127: #{forward.1} parent=1 // pred_check_branch
      %278 = sbr.rel (0) target = $region129
    $region128: #{forward.1} parent=1 // pred_region
      %279 = dma.done [#allocation23], 1792
    $region129: #{forward.1} parent=1 // pred_fallthru
      _
    // Predicated region
    $region130: #{forward.1} parent=1 // pred_check
      _
    $region131: #{forward.1} parent=1 // pred_check_branch
      %281 = sbr.rel (0) target = $region133
    $region132: #{forward.1} parent=1 // pred_region
      %282 = dma.done [#allocation23], 384
    $region133: #{forward.1} parent=1 // pred_fallthru
      _
    // Predicated region
    $region134: #{forward.1} parent=1 // pred_check
      _
    $region135: #{forward.1} parent=1 // pred_check_branch
      %284 = sbr.rel (0) target = $region137
    $region136: #{forward.1} parent=1 // pred_region
      %285 = dma.done [#allocation26], 896
    $region137: #{forward.1} parent=1 // pred_fallthru
      _
    // Predicated region
    $region138: #{forward.1} parent=1 // pred_check
      _
    $region139: #{forward.1} parent=1 // pred_check_branch
      %287 = sbr.rel (0) target = $region141
    $region140: #{forward.1} parent=1 // pred_region
      %288 = dma.done [#allocation26], 256
    $region141: #{forward.1} parent=1 // pred_fallthru
      _
    %v289 = vld [vmem:[#allocation2] sm:$0xff]
    %v290 = vld [vmem:[#allocation2 + $0x8] sm:$0xff]
    %v291 = vld [vmem:[#allocation2 + $0x10] sm:$0xff]
    %v292 = vld [vmem:[#allocation2 + $0x18] sm:$0xff]
    %v293 = vld [vmem:[#allocation2 + $0x20] sm:$0xff]
    %v294 = vld [vmem:[#allocation2 + $0x28] sm:$0xff]
    %v295 = vld [vmem:[#allocation2 + $0x30] sm:$0xff]
    %v296 = vld [vmem:[#allocation2 + $0x38] sm:$0xff]
    %v297 = vld [vmem:[#allocation2 + $0x40] sm:$0xff]
    %v298 = vld [vmem:[#allocation2 + $0x48] sm:$0xff]
    %v299 = vld [vmem:[#allocation2 + $0x50] sm:$0xff]
    %v300 = vld [vmem:[#allocation2 + $0x58] sm:$0xff]
    %v301 = vld [vmem:[#allocation6] sm:$0xff]
    %v302 = vld [vmem:[#allocation6 + $0x8] sm:$0xff]
    %v303 = vld [vmem:[#allocation6 + $0x10] sm:$0xff]
    %v304 = vld [vmem:[#allocation6 + $0x18] sm:$0xff]
    %vm305 = vcmask 261120
    %v307 = vsel %vm305, %v289, 0
    %v310 = vsel %vm305, %v290, 0
    %v313 = vsel %vm305, %v291, 0
    %v316 = vsel %vm305, %v292, 0
    %v319 = vsel %vm305, %v293, 0
    %v322 = vsel %vm305, %v294, 0
    %v325 = vsel %vm305, %v295, 0
    %v328 = vsel %vm305, %v296, 0
    %v331 = vsel %vm305, %v297, 0
    %v334 = vsel %vm305, %v298, 0
    %v337 = vsel %vm305, %v299, 0
    %v340 = vsel %vm305, %v300, 0
    %342 = vmatprep.subr.mxu0 0.0
    %343 = vmatpush1.msra.mxu0 %v301
    %344 = vmatprep.subr.mxu0 0.0
    %345 = vmatpush1.msra.mxu0 %v302
    %346 = vmatprep.subr.mxu0 0.0
    %347 = vmatpush1.msra.mxu0 %v303
    %348 = vmatprep.subr.mxu0 0.0
    %349 = vmatpush1.msra.mxu0 %v304
    %350 = vmatprep.subr.mxu0 0.0
    %351 = vmatpush1.msra.mxu0 0.0
    %352 = vmatprep.subr.mxu0 0.0
    %353 = vmatpush1.msra.mxu0 0.0
    %354 = vmatprep.subr.mxu0 0.0
    %355 = vmatpush1.msra.mxu0 0.0
    %356 = vmatprep.subr.mxu0 0.0
    %357 = vmatpush1.msra.mxu0 0.0
    %358 = vmatprep.subr.mxu0 0.0
    %359 = vmatpush1.msra.mxu0 0.0
    %360 = vmatprep.subr.mxu0 0.0
    %361 = vmatpush1.msra.mxu0 0.0
    %362 = vmatprep.subr.mxu0 0.0
    %363 = vmatpush1.msra.mxu0 0.0
    %364 = vmatprep.subr.mxu0 0.0
    %365 = vmatpush1.msra.mxu0 0.0
    %366 = vmatprep.subr.mxu0 0.0
    %367 = vmatpush1.msra.mxu0 0.0
    %368 = vmatprep.subr.mxu0 0.0
    %369 = vmatpush1.msra.mxu0 0.0
    %370 = vmatprep.subr.mxu0 0.0
    %371 = vmatpush1.msra.mxu0 0.0
    %372 = vmatprep.subr.mxu0 0.0
    %373 = vmatpush1.msra.mxu0 0.0
    %374 = vmatprep.subr.mxu0 0.0
    %375 = vmatpush1.msra.mxu0 0.0
    %376 = vmatprep.subr.mxu0 0.0
    %377 = vmatpush1.msra.mxu0 0.0
    %378 = vmatprep.subr.mxu0 0.0
    %379 = vmatpush1.msra.mxu0 0.0
    %380 = vmatprep.subr.mxu0 0.0
    %381 = vmatpush1.msra.mxu0 0.0
    %382 = vmatprep.subr.mxu0 0.0
    %383 = vmatpush1.msra.mxu0 0.0
    %384 = vmatprep.subr.mxu0 0.0
    %385 = vmatpush1.msra.mxu0 0.0
    %386 = vmatprep.subr.mxu0 0.0
    %387 = vmatpush1.msra.mxu0 0.0
    %388 = vmatprep.subr.mxu0 0.0
    %389 = vmatpush1.msra.mxu0 0.0
    %390 = vmatprep.subr.mxu0 0.0
    %391 = vmatpush1.msra.mxu0 0.0
    %392 = vmatprep.subr.mxu0 0.0
    %393 = vmatpush1.msra.mxu0 0.0
    %394 = vmatprep.subr.mxu0 0.0
    %395 = vmatpush1.msra.mxu0 0.0
    %396 = vmatprep.subr.mxu0 0.0
    %397 = vmatpush1.msra.mxu0 0.0
    %398 = vmatprep.subr.mxu0 0.0
    %399 = vmatpush1.msra.mxu0 0.0
    %400 = vmatprep.subr.mxu0 0.0
    %401 = vmatpush1.msra.mxu0 0.0
    %402 = vmatprep.subr.mxu0 0.0
    %403 = vmatpush1.msra.mxu0 0.0
    %404 = vmatprep.subr.mxu0 0.0
    %405 = vmatpush1.msra.mxu0 0.0
    %406 = vmatprep.mubr.f32.mxu0 0.0
    %407 = vmatmul.mubr.f32.gmra.mrb[0].mxu0 %v307
    %v408 = vpop.f32.mrb[0].mxu0
    %v409 = vadd.f32 0.0, %v408
    %v410 = vpop.f32.mrb[0].mxu0
    %411 = vmatprep.mubr.f32.mxu0 0.0
    %412 = vmatmul.mubr.f32.gmra.mrb[0].mxu0 %v310
    %v413 = vpop.f32.mrb[0].mxu0
    %v414 = vadd.f32 0.0, %v413
    %v415 = vpop.f32.mrb[0].mxu0
    %416 = vmatprep.mubr.f32.mxu0 0.0
    %417 = vmatmul.mubr.f32.gmra.mrb[0].mxu0 %v313
    %v418 = vpop.f32.mrb[0].mxu0
    %v419 = vadd.f32 0.0, %v418
    %v420 = vpop.f32.mrb[0].mxu0
    %421 = vmatprep.mubr.f32.mxu0 0.0
    %422 = vmatmul.mubr.f32.gmra.mrb[0].mxu0 %v316
    %v423 = vpop.f32.mrb[0].mxu0
    %v424 = vadd.f32 0.0, %v423
    %v425 = vpop.f32.mrb[0].mxu0
    %426 = vmatprep.mubr.f32.mxu0 0.0
    %427 = vmatmul.mubr.f32.gmra.mrb[0].mxu0 %v319
    %v428 = vpop.f32.mrb[0].mxu0
    %v429 = vadd.f32 0.0, %v428
    %v430 = vpop.f32.mrb[0].mxu0
    %431 = vmatprep.mubr.f32.mxu0 0.0
    %432 = vmatmul.mubr.f32.gmra.mrb[0].mxu0 %v322
    %v433 = vpop.f32.mrb[0].mxu0
    %v434 = vadd.f32 0.0, %v433
    %v435 = vpop.f32.mrb[0].mxu0
    %436 = vmatprep.mubr.f32.mxu0 0.0
    %437 = vmatmul.mubr.f32.gmra.mrb[0].mxu0 %v325
    %v438 = vpop.f32.mrb[0].mxu0
    %v439 = vadd.f32 0.0, %v438
    %v440 = vpop.f32.mrb[0].mxu0
    %441 = vmatprep.mubr.f32.mxu0 0.0
    %442 = vmatmul.mubr.f32.gmra.mrb[0].mxu0 %v328
    %v443 = vpop.f32.mrb[0].mxu0
    %v444 = vadd.f32 0.0, %v443
    %v445 = vpop.f32.mrb[0].mxu0
    %446 = vmatprep.mubr.f32.mxu0 0.0
    %447 = vmatmul.mubr.f32.gmra.mrb[0].mxu0 %v331
    %v448 = vpop.f32.mrb[0].mxu0
    %v449 = vadd.f32 0.0, %v448
    %v450 = vpop.f32.mrb[0].mxu0
    %451 = vmatprep.mubr.f32.mxu0 0.0
    %452 = vmatmul.mubr.f32.gmra.mrb[0].mxu0 %v334
    %v453 = vpop.f32.mrb[0].mxu0
    %v454 = vadd.f32 0.0, %v453
    %v455 = vpop.f32.mrb[0].mxu0
    %456 = vmatprep.mubr.f32.mxu0 0.0
    %457 = vmatmul.mubr.f32.gmra.mrb[0].mxu0 %v337
    %v458 = vpop.f32.mrb[0].mxu0
    %v459 = vadd.f32 0.0, %v458
    %v460 = vpop.f32.mrb[0].mxu0
    %461 = vmatprep.mubr.f32.mxu0 0.0
    %462 = vmatmul.mubr.f32.gmra.mrb[0].mxu0 %v340
    %v463 = vpop.f32.mrb[0].mxu0
    %v464 = vadd.f32 0.0, %v463
    %v465 = vpop.f32.mrb[0].mxu0
    %466 = vdwg.mxu0
    %v467 = vld [vmem:[#allocation4] sm:$0xff]
    %v468 = vld [vmem:[#allocation4 + $0x8] sm:$0xff]
    %v469 = vld [vmem:[#allocation4 + $0x10] sm:$0xff]
    %v470 = vld [vmem:[#allocation4 + $0x18] sm:$0xff]
    %v471 = vld [vmem:[#allocation4 + $0x20] sm:$0xff]
    %v472 = vld [vmem:[#allocation4 + $0x28] sm:$0xff]
    %v473 = vld [vmem:[#allocation4 + $0x30] sm:$0xff]
    %v474 = vld [vmem:[#allocation4 + $0x38] sm:$0xff]
    %v475 = vld [vmem:[#allocation4 + $0x40] sm:$0xff]
    %v476 = vld [vmem:[#allocation4 + $0x48] sm:$0xff]
    %v477 = vld [vmem:[#allocation4 + $0x50] sm:$0xff]
    %482 = vrot.lane.b32.xlu0 %v301, 112
    %v483 = vpop.permute.xlu0 %482
    %484 = vrot.lane.b32.xlu0 %v302, 112
    %v485 = vpop.permute.xlu0 %484
    %486 = vrot.lane.b32.xlu0 %v303, 112
    %v487 = vpop.permute.xlu0 %486
    %488 = vrot.lane.b32.xlu0 %v304, 112
    %v489 = vpop.permute.xlu0 %488
    %494 = vmatprep.subr.mxu0 0.0
    %495 = vmatpush1.msra.mxu0 %v483
    %496 = vmatprep.subr.mxu0 0.0
    %497 = vmatpush1.msra.mxu0 %v485
    %498 = vmatprep.subr.mxu0 0.0
    %499 = vmatpush1.msra.mxu0 %v487
    %500 = vmatprep.subr.mxu0 0.0
    %501 = vmatpush1.msra.mxu0 %v489
    %502 = vmatprep.subr.mxu0 0.0
    %503 = vmatpush1.msra.mxu0 0.0
    %504 = vmatprep.subr.mxu0 0.0
    %505 = vmatpush1.msra.mxu0 0.0
    %506 = vmatprep.subr.mxu0 0.0
    %507 = vmatpush1.msra.mxu0 0.0
    %508 = vmatprep.subr.mxu0 0.0
    %509 = vmatpush1.msra.mxu0 0.0
    %510 = vmatprep.subr.mxu0 0.0
    %511 = vmatpush1.msra.mxu0 0.0
    %512 = vmatprep.subr.mxu0 0.0
    %513 = vmatpush1.msra.mxu0 0.0
    %514 = vmatprep.subr.mxu0 0.0
    %515 = vmatpush1.msra.mxu0 0.0
    %516 = vmatprep.subr.mxu0 0.0
    %517 = vmatpush1.msra.mxu0 0.0
    %518 = vmatprep.subr.mxu0 0.0
    %519 = vmatpush1.msra.mxu0 0.0
    %520 = vmatprep.subr.mxu0 0.0
    %521 = vmatpush1.msra.mxu0 0.0
    %522 = vmatprep.subr.mxu0 0.0
    %523 = vmatpush1.msra.mxu0 0.0
    %524 = vmatprep.subr.mxu0 0.0
    %525 = vmatpush1.msra.mxu0 0.0
    %526 = vmatprep.subr.mxu0 0.0
    %527 = vmatpush1.msra.mxu0 0.0
    %528 = vmatprep.subr.mxu0 0.0
    %529 = vmatpush1.msra.mxu0 0.0
    %530 = vmatprep.subr.mxu0 0.0
    %531 = vmatpush1.msra.mxu0 0.0
    %532 = vmatprep.subr.mxu0 0.0
    %533 = vmatpush1.msra.mxu0 0.0
    %534 = vmatprep.subr.mxu0 0.0
    %535 = vmatpush1.msra.mxu0 0.0
    %536 = vmatprep.subr.mxu0 0.0
    %537 = vmatpush1.msra.mxu0 0.0
    %538 = vmatprep.subr.mxu0 0.0
    %539 = vmatpush1.msra.mxu0 0.0
    %540 = vmatprep.subr.mxu0 0.0
    %541 = vmatpush1.msra.mxu0 0.0
    %542 = vmatprep.subr.mxu0 0.0
    %543 = vmatpush1.msra.mxu0 0.0
    %544 = vmatprep.subr.mxu0 0.0
    %545 = vmatpush1.msra.mxu0 0.0
    %546 = vmatprep.subr.mxu0 0.0
    %547 = vmatpush1.msra.mxu0 0.0
    %548 = vmatprep.subr.mxu0 0.0
    %549 = vmatpush1.msra.mxu0 0.0
    %550 = vmatprep.subr.mxu0 0.0
    %551 = vmatpush1.msra.mxu0 0.0
    %552 = vmatprep.subr.mxu0 0.0
    %553 = vmatpush1.msra.mxu0 0.0
    %554 = vmatprep.subr.mxu0 0.0
    %555 = vmatpush1.msra.mxu0 0.0
    %556 = vmatprep.subr.mxu0 0.0
    %557 = vmatpush1.msra.mxu0 0.0
    %558 = vmatprep.mubr.f32.mxu0 0.0
    %559 = vmatmul.mubr.f32.gmra.mrb[0].mxu0 %v307
    %v560 = vpop.f32.mrb[0].mxu0
    %v561 = vadd.f32 0.0, %v560
    %v562 = vpop.f32.mrb[0].mxu0
    %563 = vmatprep.mubr.f32.mxu0 0.0
    %564 = vmatmul.mubr.f32.gmra.mrb[0].mxu0 %v310
    %v565 = vpop.f32.mrb[0].mxu0
    %v566 = vadd.f32 0.0, %v565
    %v567 = vpop.f32.mrb[0].mxu0
    %568 = vmatprep.mubr.f32.mxu0 0.0
    %569 = vmatmul.mubr.f32.gmra.mrb[0].mxu0 %v313
    %v570 = vpop.f32.mrb[0].mxu0
    %v571 = vadd.f32 0.0, %v570
    %v572 = vpop.f32.mrb[0].mxu0
    %573 = vmatprep.mubr.f32.mxu0 0.0
    %574 = vmatmul.mubr.f32.gmra.mrb[0].mxu0 %v316
    %v575 = vpop.f32.mrb[0].mxu0
    %v576 = vadd.f32 0.0, %v575
    %v577 = vpop.f32.mrb[0].mxu0
    %578 = vmatprep.mubr.f32.mxu0 0.0
    %579 = vmatmul.mubr.f32.gmra.mrb[0].mxu0 %v319
    %v580 = vpop.f32.mrb[0].mxu0
    %v581 = vadd.f32 0.0, %v580
    %v582 = vpop.f32.mrb[0].mxu0
    %583 = vmatprep.mubr.f32.mxu0 0.0
    %584 = vmatmul.mubr.f32.gmra.mrb[0].mxu0 %v322
    %v585 = vpop.f32.mrb[0].mxu0
    %v586 = vadd.f32 0.0, %v585
    %v587 = vpop.f32.mrb[0].mxu0
    %588 = vmatprep.mubr.f32.mxu0 0.0
    %589 = vmatmul.mubr.f32.gmra.mrb[0].mxu0 %v325
    %v590 = vpop.f32.mrb[0].mxu0
    %v591 = vadd.f32 0.0, %v590
    %v592 = vpop.f32.mrb[0].mxu0
    %593 = vmatprep.mubr.f32.mxu0 0.0
    %594 = vmatmul.mubr.f32.gmra.mrb[0].mxu0 %v328
    %v595 = vpop.f32.mrb[0].mxu0
    %v596 = vadd.f32 0.0, %v595
    %v597 = vpop.f32.mrb[0].mxu0
    %598 = vmatprep.mubr.f32.mxu0 0.0
    %599 = vmatmul.mubr.f32.gmra.mrb[0].mxu0 %v331
    %v600 = vpop.f32.mrb[0].mxu0
    %v601 = vadd.f32 0.0, %v600
    %v602 = vpop.f32.mrb[0].mxu0
    %603 = vmatprep.mubr.f32.mxu0 0.0
    %604 = vmatmul.mubr.f32.gmra.mrb[0].mxu0 %v334
    %v605 = vpop.f32.mrb[0].mxu0
    %v606 = vadd.f32 0.0, %v605
    %v607 = vpop.f32.mrb[0].mxu0
    %608 = vmatprep.mubr.f32.mxu0 0.0
    %609 = vmatmul.mubr.f32.gmra.mrb[0].mxu0 %v337
    %v610 = vpop.f32.mrb[0].mxu0
    %v611 = vadd.f32 0.0, %v610
    %v612 = vpop.f32.mrb[0].mxu0
    %613 = vmatprep.mubr.f32.mxu0 0.0
    %614 = vmatmul.mubr.f32.gmra.mrb[0].mxu0 %v340
    %v615 = vpop.f32.mrb[0].mxu0
    %v616 = vadd.f32 0.0, %v615
    %v617 = vpop.f32.mrb[0].mxu0
    %618 = vdwg.mxu0
    %v619 = vld [vmem:[#allocation4 + $0x58] sm:$0xff]
    %v620 = vld [vmem:[#allocation4 + $0x60] sm:$0xff]
    %v621 = vld [vmem:[#allocation4 + $0x68] sm:$0xff]
    %v622 = vld [vmem:[#allocation4 + $0x70] sm:$0xff]
    %v623 = vld [vmem:[#allocation4 + $0x78] sm:$0xff]
    %v624 = vld [vmem:[#allocation4 + $0x80] sm:$0xff]
    %v625 = vld [vmem:[#allocation4 + $0x88] sm:$0xff]
    %v626 = vld [vmem:[#allocation4 + $0x90] sm:$0xff]
    %v627 = vld [vmem:[#allocation4 + $0x98] sm:$0xff]
    %v628 = vld [vmem:[#allocation4 + $0xa0] sm:$0xff]
    %v629 = vld [vmem:[#allocation4 + $0xa8] sm:$0xff]
    %vm630 = vcmask 785408
    %v632 = vsel %vm630, %v619, 0
    %v635 = vsel %vm630, %v620, 0
    %v638 = vsel %vm630, %v621, 0
    %v641 = vsel %vm630, %v622, 0
    %v644 = vsel %vm630, %v623, 0
    %v647 = vsel %vm630, %v624, 0
    %v650 = vsel %vm630, %v625, 0
    %v653 = vsel %vm630, %v626, 0
    %v656 = vsel %vm630, %v627, 0
    %v659 = vsel %vm630, %v628, 0
    %v662 = vsel %vm630, %v629, 0
    %664 = vmatprep.subr.mxu0 0.0
    %665 = vmatpush1.msra.mxu0 %v561
    %666 = vmatprep.subr.mxu0 0.0
    %667 = vmatpush1.msra.mxu0 %v566
    %668 = vmatprep.subr.mxu0 0.0
    %669 = vmatpush1.msra.mxu0 %v571
    %670 = vmatprep.subr.mxu0 0.0
    %671 = vmatpush1.msra.mxu0 %v576
    %672 = vmatprep.subr.mxu0 0.0
    %673 = vmatpush1.msra.mxu0 %v581
    %674 = vmatprep.subr.mxu0 0.0
    %675 = vmatpush1.msra.mxu0 %v586
    %676 = vmatprep.subr.mxu0 0.0
    %677 = vmatpush1.msra.mxu0 %v591
    %678 = vmatprep.subr.mxu0 0.0
    %679 = vmatpush1.msra.mxu0 %v596
    %680 = vmatprep.subr.mxu0 0.0
    %681 = vmatpush1.msra.mxu0 %v601
    %682 = vmatprep.subr.mxu0 0.0
    %683 = vmatpush1.msra.mxu0 %v606
    %684 = vmatprep.subr.mxu0 0.0
    %685 = vmatpush1.msra.mxu0 %v611
    %686 = vmatprep.subr.mxu0 0.0
    %687 = vmatpush1.msra.mxu0 %v616
    %688 = vmatprep.subr.mxu0 0.0
    %689 = vmatpush1.msra.mxu0 0.0
    %690 = vmatprep.subr.mxu0 0.0
    %691 = vmatpush1.msra.mxu0 0.0
    %692 = vmatprep.subr.mxu0 0.0
    %693 = vmatpush1.msra.mxu0 0.0
    %694 = vmatprep.subr.mxu0 0.0
    %695 = vmatpush1.msra.mxu0 0.0
    %696 = vmatprep.subr.mxu0 0.0
    %697 = vmatpush1.msra.mxu0 0.0
    %698 = vmatprep.subr.mxu0 0.0
    %699 = vmatpush1.msra.mxu0 0.0
    %700 = vmatprep.subr.mxu0 0.0
    %701 = vmatpush1.msra.mxu0 0.0
    %702 = vmatprep.subr.mxu0 0.0
    %703 = vmatpush1.msra.mxu0 0.0
    %704 = vmatprep.subr.mxu0 0.0
    %705 = vmatpush1.msra.mxu0 0.0
    %706 = vmatprep.subr.mxu0 0.0
    %707 = vmatpush1.msra.mxu0 0.0
    %708 = vmatprep.subr.mxu0 0.0
    %709 = vmatpush1.msra.mxu0 0.0
    %710 = vmatprep.subr.mxu0 0.0
    %711 = vmatpush1.msra.mxu0 0.0
    %712 = vmatprep.subr.mxu0 0.0
    %713 = vmatpush1.msra.mxu0 0.0
    %714 = vmatprep.subr.mxu0 0.0
    %715 = vmatpush1.msra.mxu0 0.0
    %716 = vmatprep.subr.mxu0 0.0
    %717 = vmatpush1.msra.mxu0 0.0
    %718 = vmatprep.subr.mxu0 0.0
    %719 = vmatpush1.msra.mxu0 0.0
    %720 = vmatprep.subr.mxu0 0.0
    %721 = vmatpush1.msra.mxu0 0.0
    %722 = vmatprep.subr.mxu0 0.0
    %723 = vmatpush1.msra.mxu0 0.0
    %724 = vmatprep.subr.mxu0 0.0
    %725 = vmatpush1.msra.mxu0 0.0
    %726 = vmatprep.subr.mxu0 0.0
    %727 = vmatpush1.msra.mxu0 0.0
    %728 = vmatprep.mubr.f32.mxu0 0.0
    %729 = vmatmul.mubr.f32.gmra.mrb[0].mxu0 %v632
    %v730 = vpop.f32.mrb[0].mxu0
    %v731 = vadd.f32 0.0, %v730
    %v732 = vpop.f32.mrb[0].mxu0
    %733 = vmatprep.mubr.f32.mxu0 0.0
    %734 = vmatmul.mubr.f32.gmra.mrb[0].mxu0 %v635
    %v735 = vpop.f32.mrb[0].mxu0
    %v736 = vadd.f32 0.0, %v735
    %v737 = vpop.f32.mrb[0].mxu0
    %738 = vmatprep.mubr.f32.mxu0 0.0
    %739 = vmatmul.mubr.f32.gmra.mrb[0].mxu0 %v638
    %v740 = vpop.f32.mrb[0].mxu0
    %v741 = vadd.f32 0.0, %v740
    %v742 = vpop.f32.mrb[0].mxu0
    %743 = vmatprep.mubr.f32.mxu0 0.0
    %744 = vmatmul.mubr.f32.gmra.mrb[0].mxu0 %v641
    %v745 = vpop.f32.mrb[0].mxu0
    %v746 = vadd.f32 0.0, %v745
    %v747 = vpop.f32.mrb[0].mxu0
    %748 = vmatprep.mubr.f32.mxu0 0.0
    %749 = vmatmul.mubr.f32.gmra.mrb[0].mxu0 %v644
    %v750 = vpop.f32.mrb[0].mxu0
    %v751 = vadd.f32 0.0, %v750
    %v752 = vpop.f32.mrb[0].mxu0
    %753 = vmatprep.mubr.f32.mxu0 0.0
    %754 = vmatmul.mubr.f32.gmra.mrb[0].mxu0 %v647
    %v755 = vpop.f32.mrb[0].mxu0
    %v756 = vadd.f32 0.0, %v755
    %v757 = vpop.f32.mrb[0].mxu0
    %758 = vmatprep.mubr.f32.mxu0 0.0
    %759 = vmatmul.mubr.f32.gmra.mrb[0].mxu0 %v650
    %v760 = vpop.f32.mrb[0].mxu0
    %v761 = vadd.f32 0.0, %v760
    %v762 = vpop.f32.mrb[0].mxu0
    %763 = vmatprep.mubr.f32.mxu0 0.0
    %764 = vmatmul.mubr.f32.gmra.mrb[0].mxu0 %v653
    %v765 = vpop.f32.mrb[0].mxu0
    %v766 = vadd.f32 0.0, %v765
    %v767 = vpop.f32.mrb[0].mxu0
    %768 = vmatprep.mubr.f32.mxu0 0.0
    %769 = vmatmul.mubr.f32.gmra.mrb[0].mxu0 %v656
    %v770 = vpop.f32.mrb[0].mxu0
    %v771 = vadd.f32 0.0, %v770
    %v772 = vpop.f32.mrb[0].mxu0
    %773 = vmatprep.mubr.f32.mxu0 0.0
    %774 = vmatmul.mubr.f32.gmra.mrb[0].mxu0 %v659
    %v775 = vpop.f32.mrb[0].mxu0
    %v776 = vadd.f32 0.0, %v775
    %v777 = vpop.f32.mrb[0].mxu0
    %778 = vmatprep.mubr.f32.mxu0 0.0
    %779 = vmatmul.mubr.f32.gmra.mrb[0].mxu0 %v662
    %v780 = vpop.f32.mrb[0].mxu0
    %v781 = vadd.f32 0.0, %v780
    %v782 = vpop.f32.mrb[0].mxu0
    %783 = vdwg.mxu0
    %v785 = vsel %vm630, %v467, 0
    %v788 = vsel %vm630, %v468, 0
    %v791 = vsel %vm630, %v469, 0
    %v794 = vsel %vm630, %v470, 0
    %v797 = vsel %vm630, %v471, 0
    %v800 = vsel %vm630, %v472, 0
    %v803 = vsel %vm630, %v473, 0
    %v806 = vsel %vm630, %v474, 0
    %v809 = vsel %vm630, %v475, 0
    %v812 = vsel %vm630, %v476, 0
    %v815 = vsel %vm630, %v477, 0
    %817 = vmatprep.subr.mxu0 0.0
    %818 = vmatpush1.msra.mxu0 %v409
    %819 = vmatprep.subr.mxu0 0.0
    %820 = vmatpush1.msra.mxu0 %v414
    %821 = vmatprep.subr.mxu0 0.0
    %822 = vmatpush1.msra.mxu0 %v419
    %823 = vmatprep.subr.mxu0 0.0
    %824 = vmatpush1.msra.mxu0 %v424
    %825 = vmatprep.subr.mxu0 0.0
    %826 = vmatpush1.msra.mxu0 %v429
    %827 = vmatprep.subr.mxu0 0.0
    %828 = vmatpush1.msra.mxu0 %v434
    %829 = vmatprep.subr.mxu0 0.0
    %830 = vmatpush1.msra.mxu0 %v439
    %831 = vmatprep.subr.mxu0 0.0
    %832 = vmatpush1.msra.mxu0 %v444
    %833 = vmatprep.subr.mxu0 0.0
    %834 = vmatpush1.msra.mxu0 %v449
    %835 = vmatprep.subr.mxu0 0.0
    %836 = vmatpush1.msra.mxu0 %v454
    %837 = vmatprep.subr.mxu0 0.0
    %838 = vmatpush1.msra.mxu0 %v459
    %839 = vmatprep.subr.mxu0 0.0
    %840 = vmatpush1.msra.mxu0 %v464
    %841 = vmatprep.subr.mxu0 0.0
    %842 = vmatpush1.msra.mxu0 0.0
    %843 = vmatprep.subr.mxu0 0.0
    %844 = vmatpush1.msra.mxu0 0.0
    %845 = vmatprep.subr.mxu0 0.0
    %846 = vmatpush1.msra.mxu0 0.0
    %847 = vmatprep.subr.mxu0 0.0
    %848 = vmatpush1.msra.mxu0 0.0
    %849 = vmatprep.subr.mxu0 0.0
    %850 = vmatpush1.msra.mxu0 0.0
    %851 = vmatprep.subr.mxu0 0.0
    %852 = vmatpush1.msra.mxu0 0.0
    %853 = vmatprep.subr.mxu0 0.0
    %854 = vmatpush1.msra.mxu0 0.0
    %855 = vmatprep.subr.mxu0 0.0
    %856 = vmatpush1.msra.mxu0 0.0
    %857 = vmatprep.subr.mxu0 0.0
    %858 = vmatpush1.msra.mxu0 0.0
    %859 = vmatprep.subr.mxu0 0.0
    %860 = vmatpush1.msra.mxu0 0.0
    %861 = vmatprep.subr.mxu0 0.0
    %862 = vmatpush1.msra.mxu0 0.0
    %863 = vmatprep.subr.mxu0 0.0
    %864 = vmatpush1.msra.mxu0 0.0
    %865 = vmatprep.subr.mxu0 0.0
    %866 = vmatpush1.msra.mxu0 0.0
    %867 = vmatprep.subr.mxu0 0.0
    %868 = vmatpush1.msra.mxu0 0.0
    %869 = vmatprep.subr.mxu0 0.0
    %870 = vmatpush1.msra.mxu0 0.0
    %871 = vmatprep.subr.mxu0 0.0
    %872 = vmatpush1.msra.mxu0 0.0
    %873 = vmatprep.subr.mxu0 0.0
    %874 = vmatpush1.msra.mxu0 0.0
    %875 = vmatprep.subr.mxu0 0.0
    %876 = vmatpush1.msra.mxu0 0.0
    %877 = vmatprep.subr.mxu0 0.0
    %878 = vmatpush1.msra.mxu0 0.0
    %879 = vmatprep.subr.mxu0 0.0
    %880 = vmatpush1.msra.mxu0 0.0
    %881 = vmatprep.mubr.f32.mxu0 0.0
    %882 = vmatmul.mubr.f32.gmra.mrb[0].mxu0 %v785
    %v883 = vpop.f32.mrb[0].mxu0
    %v884 = vadd.f32 %v731, %v883
    %v885 = vpop.f32.mrb[0].mxu0
    %886 = vmatprep.mubr.f32.mxu0 0.0
    %887 = vmatmul.mubr.f32.gmra.mrb[0].mxu0 %v788
    %v888 = vpop.f32.mrb[0].mxu0
    %v889 = vadd.f32 %v736, %v888
    %v890 = vpop.f32.mrb[0].mxu0
    %891 = vmatprep.mubr.f32.mxu0 0.0
    %892 = vmatmul.mubr.f32.gmra.mrb[0].mxu0 %v791
    %v893 = vpop.f32.mrb[0].mxu0
    %v894 = vadd.f32 %v741, %v893
    %v895 = vpop.f32.mrb[0].mxu0
    %896 = vmatprep.mubr.f32.mxu0 0.0
    %897 = vmatmul.mubr.f32.gmra.mrb[0].mxu0 %v794
    %v898 = vpop.f32.mrb[0].mxu0
    %v899 = vadd.f32 %v746, %v898
    %v900 = vpop.f32.mrb[0].mxu0
    %901 = vmatprep.mubr.f32.mxu0 0.0
    %902 = vmatmul.mubr.f32.gmra.mrb[0].mxu0 %v797
    %v903 = vpop.f32.mrb[0].mxu0
    %v904 = vadd.f32 %v751, %v903
    %v905 = vpop.f32.mrb[0].mxu0
    %906 = vmatprep.mubr.f32.mxu0 0.0
    %907 = vmatmul.mubr.f32.gmra.mrb[0].mxu0 %v800
    %v908 = vpop.f32.mrb[0].mxu0
    %v909 = vadd.f32 %v756, %v908
    %v910 = vpop.f32.mrb[0].mxu0
    %911 = vmatprep.mubr.f32.mxu0 0.0
    %912 = vmatmul.mubr.f32.gmra.mrb[0].mxu0 %v803
    %v913 = vpop.f32.mrb[0].mxu0
    %v914 = vadd.f32 %v761, %v913
    %v915 = vpop.f32.mrb[0].mxu0
    %916 = vmatprep.mubr.f32.mxu0 0.0
    %917 = vmatmul.mubr.f32.gmra.mrb[0].mxu0 %v806
    %v918 = vpop.f32.mrb[0].mxu0
    %v919 = vadd.f32 %v766, %v918
    %v920 = vpop.f32.mrb[0].mxu0
    %921 = vmatprep.mubr.f32.mxu0 0.0
    %922 = vmatmul.mubr.f32.gmra.mrb[0].mxu0 %v809
    %v923 = vpop.f32.mrb[0].mxu0
    %v924 = vadd.f32 %v771, %v923
    %v925 = vpop.f32.mrb[0].mxu0
    %926 = vmatprep.mubr.f32.mxu0 0.0
    %927 = vmatmul.mubr.f32.gmra.mrb[0].mxu0 %v812
    %v928 = vpop.f32.mrb[0].mxu0
    %v929 = vadd.f32 %v776, %v928
    %v930 = vpop.f32.mrb[0].mxu0
    %931 = vmatprep.mubr.f32.mxu0 0.0
    %932 = vmatmul.mubr.f32.gmra.mrb[0].mxu0 %v815
    %v933 = vpop.f32.mrb[0].mxu0
    %v934 = vadd.f32 %v781, %v933
    %v935 = vpop.f32.mrb[0].mxu0
    %936 = vdwg.mxu0
    %937 = vrot.lane.b32.xlu0 %v301, 96
    %v938 = vpop.permute.xlu0 %937
    %939 = vrot.lane.b32.xlu0 %v302, 96
    %v940 = vpop.permute.xlu0 %939
    %941 = vrot.lane.b32.xlu0 %v303, 96
    %v942 = vpop.permute.xlu0 %941
    %943 = vrot.lane.b32.xlu0 %v304, 96
    %v944 = vpop.permute.xlu0 %943
    %949 = vmatprep.subr.mxu0 0.0
    %950 = vmatpush1.msra.mxu0 %v938
    %951 = vmatprep.subr.mxu0 0.0
    %952 = vmatpush1.msra.mxu0 %v940
    %953 = vmatprep.subr.mxu0 0.0
    %954 = vmatpush1.msra.mxu0 %v942
    %955 = vmatprep.subr.mxu0 0.0
    %956 = vmatpush1.msra.mxu0 %v944
    %957 = vmatprep.subr.mxu0 0.0
    %958 = vmatpush1.msra.mxu0 0.0
    %959 = vmatprep.subr.mxu0 0.0
    %960 = vmatpush1.msra.mxu0 0.0
    %961 = vmatprep.subr.mxu0 0.0
    %962 = vmatpush1.msra.mxu0 0.0
    %963 = vmatprep.subr.mxu0 0.0
    %964 = vmatpush1.msra.mxu0 0.0
    %965 = vmatprep.subr.mxu0 0.0
    %966 = vmatpush1.msra.mxu0 0.0
    %967 = vmatprep.subr.mxu0 0.0
    %968 = vmatpush1.msra.mxu0 0.0
    %969 = vmatprep.subr.mxu0 0.0
    %970 = vmatpush1.msra.mxu0 0.0
    %971 = vmatprep.subr.mxu0 0.0
    %972 = vmatpush1.msra.mxu0 0.0
    %973 = vmatprep.subr.mxu0 0.0
    %974 = vmatpush1.msra.mxu0 0.0
    %975 = vmatprep.subr.mxu0 0.0
    %976 = vmatpush1.msra.mxu0 0.0
    %977 = vmatprep.subr.mxu0 0.0
    %978 = vmatpush1.msra.mxu0 0.0
    %979 = vmatprep.subr.mxu0 0.0
    %980 = vmatpush1.msra.mxu0 0.0
    %981 = vmatprep.subr.mxu0 0.0
    %982 = vmatpush1.msra.mxu0 0.0
    %983 = vmatprep.subr.mxu0 0.0
    %984 = vmatpush1.msra.mxu0 0.0
    %985 = vmatprep.subr.mxu0 0.0
    %986 = vmatpush1.msra.mxu0 0.0
    %987 = vmatprep.subr.mxu0 0.0
    %988 = vmatpush1.msra.mxu0 0.0
    %989 = vmatprep.subr.mxu0 0.0
    %990 = vmatpush1.msra.mxu0 0.0
    %991 = vmatprep.subr.mxu0 0.0
    %992 = vmatpush1.msra.mxu0 0.0
    %993 = vmatprep.subr.mxu0 0.0
    %994 = vmatpush1.msra.mxu0 0.0
    %995 = vmatprep.subr.mxu0 0.0
    %996 = vmatpush1.msra.mxu0 0.0
    %997 = vmatprep.subr.mxu0 0.0
    %998 = vmatpush1.msra.mxu0 0.0
    %999 = vmatprep.subr.mxu0 0.0
    %1000 = vmatpush1.msra.mxu0 0.0
    %1001 = vmatprep.subr.mxu0 0.0
    %1002 = vmatpush1.msra.mxu0 0.0
    %1003 = vmatprep.subr.mxu0 0.0
    %1004 = vmatpush1.msra.mxu0 0.0
    %1005 = vmatprep.subr.mxu0 0.0
    %1006 = vmatpush1.msra.mxu0 0.0
    %1007 = vmatprep.subr.mxu0 0.0
    %1008 = vmatpush1.msra.mxu0 0.0
    %1009 = vmatprep.subr.mxu0 0.0
    %1010 = vmatpush1.msra.mxu0 0.0
    %1011 = vmatprep.subr.mxu0 0.0
    %1012 = vmatpush1.msra.mxu0 0.0
    %1013 = vmatprep.mubr.f32.mxu0 0.0
    %1014 = vmatmul.mubr.f32.gmra.mrb[0].mxu0 %v307
    %v1015 = vpop.f32.mrb[0].mxu0
    %v1016 = vadd.f32 0.0, %v1015
    %v1017 = vpop.f32.mrb[0].mxu0
    %1018 = vmatprep.mubr.f32.mxu0 0.0
    %1019 = vmatmul.mubr.f32.gmra.mrb[0].mxu0 %v310
    %v1020 = vpop.f32.mrb[0].mxu0
    %v1021 = vadd.f32 0.0, %v1020
    %v1022 = vpop.f32.mrb[0].mxu0
    %1023 = vmatprep.mubr.f32.mxu0 0.0
    %1024 = vmatmul.mubr.f32.gmra.mrb[0].mxu0 %v313
    %v1025 = vpop.f32.mrb[0].mxu0
    %v1026 = vadd.f32 0.0, %v1025
    %v1027 = vpop.f32.mrb[0].mxu0
    %1028 = vmatprep.mubr.f32.mxu0 0.0
    %1029 = vmatmul.mubr.f32.gmra.mrb[0].mxu0 %v316
    %v1030 = vpop.f32.mrb[0].mxu0
    %v1031 = vadd.f32 0.0, %v1030
    %v1032 = vpop.f32.mrb[0].mxu0
    %1033 = vmatprep.mubr.f32.mxu0 0.0
    %1034 = vmatmul.mubr.f32.gmra.mrb[0].mxu0 %v319
    %v1035 = vpop.f32.mrb[0].mxu0
    %v1036 = vadd.f32 0.0, %v1035
    %v1037 = vpop.f32.mrb[0].mxu0
    %1038 = vmatprep.mubr.f32.mxu0 0.0
    %1039 = vmatmul.mubr.f32.gmra.mrb[0].mxu0 %v322
    %v1040 = vpop.f32.mrb[0].mxu0
    %v1041 = vadd.f32 0.0, %v1040
    %v1042 = vpop.f32.mrb[0].mxu0
    %1043 = vmatprep.mubr.f32.mxu0 0.0
    %1044 = vmatmul.mubr.f32.gmra.mrb[0].mxu0 %v325
    %v1045 = vpop.f32.mrb[0].mxu0
    %v1046 = vadd.f32 0.0, %v1045
    %v1047 = vpop.f32.mrb[0].mxu0
    %1048 = vmatprep.mubr.f32.mxu0 0.0
    %1049 = vmatmul.mubr.f32.gmra.mrb[0].mxu0 %v328
    %v1050 = vpop.f32.mrb[0].mxu0
    %v1051 = vadd.f32 0.0, %v1050
    %v1052 = vpop.f32.mrb[0].mxu0
    %1053 = vmatprep.mubr.f32.mxu0 0.0
    %1054 = vmatmul.mubr.f32.gmra.mrb[0].mxu0 %v331
    %v1055 = vpop.f32.mrb[0].mxu0
    %v1056 = vadd.f32 0.0, %v1055
    %v1057 = vpop.f32.mrb[0].mxu0
    %1058 = vmatprep.mubr.f32.mxu0 0.0
    %1059 = vmatmul.mubr.f32.gmra.mrb[0].mxu0 %v334
    %v1060 = vpop.f32.mrb[0].mxu0
    %v1061 = vadd.f32 0.0, %v1060
    %v1062 = vpop.f32.mrb[0].mxu0
    %1063 = vmatprep.mubr.f32.mxu0 0.0
    %1064 = vmatmul.mubr.f32.gmra.mrb[0].mxu0 %v337
    %v1065 = vpop.f32.mrb[0].mxu0
    %v1066 = vadd.f32 0.0, %v1065
    %v1067 = vpop.f32.mrb[0].mxu0
    %1068 = vmatprep.mubr.f32.mxu0 0.0
    %1069 = vmatmul.mubr.f32.gmra.mrb[0].mxu0 %v340
    %v1070 = vpop.f32.mrb[0].mxu0
    %v1071 = vadd.f32 0.0, %v1070
    %v1072 = vpop.f32.mrb[0].mxu0
    %1073 = vdwg.mxu0
    %v1074 = vld [vmem:[#allocation4 + $0xb0] sm:$0xff]
    %v1075 = vld [vmem:[#allocation4 + $0xb8] sm:$0xff]
    %v1076 = vld [vmem:[#allocation4 + $0xc0] sm:$0xff]
    %v1077 = vld [vmem:[#allocation4 + $0xc8] sm:$0xff]
    %v1078 = vld [vmem:[#allocation4 + $0xd0] sm:$0xff]
    %v1079 = vld [vmem:[#allocation4 + $0xd8] sm:$0xff]
    %v1080 = vld [vmem:[#allocation4 + $0xe0] sm:$0xff]
    %v1081 = vld [vmem:[#allocation4 + $0xe8] sm:$0xff]
    %v1082 = vld [vmem:[#allocation4 + $0xf0] sm:$0xff]
    %v1083 = vld [vmem:[#allocation4 + $0xf8] sm:$0xff]
    %v1084 = vld [vmem:[#allocation4 + $0x100] sm:$0xff]
    %v1086 = vsel %vm630, %v1074, 0
    %v1089 = vsel %vm630, %v1075, 0
    %v1092 = vsel %vm630, %v1076, 0
    %v1095 = vsel %vm630, %v1077, 0
    %v1098 = vsel %vm630, %v1078, 0
    %v1101 = vsel %vm630, %v1079, 0
    %v1104 = vsel %vm630, %v1080, 0
    %v1107 = vsel %vm630, %v1081, 0
    %v1110 = vsel %vm630, %v1082, 0
    %v1113 = vsel %vm630, %v1083, 0
    %v1116 = vsel %vm630, %v1084, 0
    %1118 = vmatprep.subr.mxu0 0.0
    %1119 = vmatpush1.msra.mxu0 %v1016
    %1120 = vmatprep.subr.mxu0 0.0
    %1121 = vmatpush1.msra.mxu0 %v1021
    %1122 = vmatprep.subr.mxu0 0.0
    %1123 = vmatpush1.msra.mxu0 %v1026
    %1124 = vmatprep.subr.mxu0 0.0
    %1125 = vmatpush1.msra.mxu0 %v1031
    %1126 = vmatprep.subr.mxu0 0.0
    %1127 = vmatpush1.msra.mxu0 %v1036
    %1128 = vmatprep.subr.mxu0 0.0
    %1129 = vmatpush1.msra.mxu0 %v1041
    %1130 = vmatprep.subr.mxu0 0.0
    %1131 = vmatpush1.msra.mxu0 %v1046
    %1132 = vmatprep.subr.mxu0 0.0
    %1133 = vmatpush1.msra.mxu0 %v1051
    %1134 = vmatprep.subr.mxu0 0.0
    %1135 = vmatpush1.msra.mxu0 %v1056
    %1136 = vmatprep.subr.mxu0 0.0
    %1137 = vmatpush1.msra.mxu0 %v1061
    %1138 = vmatprep.subr.mxu0 0.0
    %1139 = vmatpush1.msra.mxu0 %v1066
    %1140 = vmatprep.subr.mxu0 0.0
    %1141 = vmatpush1.msra.mxu0 %v1071
    %1142 = vmatprep.subr.mxu0 0.0
    %1143 = vmatpush1.msra.mxu0 0.0
    %1144 = vmatprep.subr.mxu0 0.0
    %1145 = vmatpush1.msra.mxu0 0.0
    %1146 = vmatprep.subr.mxu0 0.0
    %1147 = vmatpush1.msra.mxu0 0.0
    %1148 = vmatprep.subr.mxu0 0.0
    %1149 = vmatpush1.msra.mxu0 0.0
    %1150 = vmatprep.subr.mxu0 0.0
    %1151 = vmatpush1.msra.mxu0 0.0
    %1152 = vmatprep.subr.mxu0 0.0
    %1153 = vmatpush1.msra.mxu0 0.0
    %1154 = vmatprep.subr.mxu0 0.0
    %1155 = vmatpush1.msra.mxu0 0.0
    %1156 = vmatprep.subr.mxu0 0.0
    %1157 = vmatpush1.msra.mxu0 0.0
    %1158 = vmatprep.subr.mxu0 0.0
    %1159 = vmatpush1.msra.mxu0 0.0
    %1160 = vmatprep.subr.mxu0 0.0
    %1161 = vmatpush1.msra.mxu0 0.0
    %1162 = vmatprep.subr.mxu0 0.0
    %1163 = vmatpush1.msra.mxu0 0.0
    %1164 = vmatprep.subr.mxu0 0.0
    %1165 = vmatpush1.msra.mxu0 0.0
    %1166 = vmatprep.subr.mxu0 0.0
    %1167 = vmatpush1.msra.mxu0 0.0
    %1168 = vmatprep.subr.mxu0 0.0
    %1169 = vmatpush1.msra.mxu0 0.0
    %1170 = vmatprep.subr.mxu0 0.0
    %1171 = vmatpush1.msra.mxu0 0.0
    %1172 = vmatprep.subr.mxu0 0.0
    %1173 = vmatpush1.msra.mxu0 0.0
    %1174 = vmatprep.subr.mxu0 0.0
    %1175 = vmatpush1.msra.mxu0 0.0
    %1176 = vmatprep.subr.mxu0 0.0
    %1177 = vmatpush1.msra.mxu0 0.0
    %1178 = vmatprep.subr.mxu0 0.0
    %1179 = vmatpush1.msra.mxu0 0.0
    %1180 = vmatprep.subr.mxu0 0.0
    %1181 = vmatpush1.msra.mxu0 0.0
    %1182 = vmatprep.mubr.f32.mxu0 0.0
    %1183 = vmatmul.mubr.f32.gmra.mrb[0].mxu0 %v1086
    %v1184 = vpop.f32.mrb[0].mxu0
    %v1185 = vadd.f32 0.0, %v1184
    %v1186 = vpop.f32.mrb[0].mxu0
    %1187 = vmatprep.mubr.f32.mxu0 0.0
    %1188 = vmatmul.mubr.f32.gmra.mrb[0].mxu0 %v1089
    %v1189 = vpop.f32.mrb[0].mxu0
    %v1190 = vadd.f32 0.0, %v1189
    %v1191 = vpop.f32.mrb[0].mxu0
    %1192 = vmatprep.mubr.f32.mxu0 0.0
    %1193 = vmatmul.mubr.f32.gmra.mrb[0].mxu0 %v1092
    %v1194 = vpop.f32.mrb[0].mxu0
    %v1195 = vadd.f32 0.0, %v1194
    %v1196 = vpop.f32.mrb[0].mxu0
    %1197 = vmatprep.mubr.f32.mxu0 0.0
    %1198 = vmatmul.mubr.f32.gmra.mrb[0].mxu0 %v1095
    %v1199 = vpop.f32.mrb[0].mxu0
    %v1200 = vadd.f32 0.0, %v1199
    %v1201 = vpop.f32.mrb[0].mxu0
    %1202 = vmatprep.mubr.f32.mxu0 0.0
    %1203 = vmatmul.mubr.f32.gmra.mrb[0].mxu0 %v1098
    %v1204 = vpop.f32.mrb[0].mxu0
    %v1205 = vadd.f32 0.0, %v1204
    %v1206 = vpop.f32.mrb[0].mxu0
    %1207 = vmatprep.mubr.f32.mxu0 0.0
    %1208 = vmatmul.mubr.f32.gmra.mrb[0].mxu0 %v1101
    %v1209 = vpop.f32.mrb[0].mxu0
    %v1210 = vadd.f32 0.0, %v1209
    %v1211 = vpop.f32.mrb[0].mxu0
    %1212 = vmatprep.mubr.f32.mxu0 0.0
    %1213 = vmatmul.mubr.f32.gmra.mrb[0].mxu0 %v1104
    %v1214 = vpop.f32.mrb[0].mxu0
    %v1215 = vadd.f32 0.0, %v1214
    %v1216 = vpop.f32.mrb[0].mxu0
    %1217 = vmatprep.mubr.f32.mxu0 0.0
    %1218 = vmatmul.mubr.f32.gmra.mrb[0].mxu0 %v1107
    %v1219 = vpop.f32.mrb[0].mxu0
    %v1220 = vadd.f32 0.0, %v1219
    %v1221 = vpop.f32.mrb[0].mxu0
    %1222 = vmatprep.mubr.f32.mxu0 0.0
    %1223 = vmatmul.mubr.f32.gmra.mrb[0].mxu0 %v1110
    %v1224 = vpop.f32.mrb[0].mxu0
    %v1225 = vadd.f32 0.0, %v1224
    %v1226 = vpop.f32.mrb[0].mxu0
    %1227 = vmatprep.mubr.f32.mxu0 0.0
    %1228 = vmatmul.mubr.f32.gmra.mrb[0].mxu0 %v1113
    %v1229 = vpop.f32.mrb[0].mxu0
    %v1230 = vadd.f32 0.0, %v1229
    %v1231 = vpop.f32.mrb[0].mxu0
    %1232 = vmatprep.mubr.f32.mxu0 0.0
    %1233 = vmatmul.mubr.f32.gmra.mrb[0].mxu0 %v1116
    %v1234 = vpop.f32.mrb[0].mxu0
    %v1235 = vadd.f32 0.0, %v1234
    %v1236 = vpop.f32.mrb[0].mxu0
    %1237 = vdwg.mxu0
    %v1238 = vadd.f32 %v884, %v1185
    %v1239 = vadd.f32 %v889, %v1190
    %v1240 = vadd.f32 %v894, %v1195
    %v1241 = vadd.f32 %v899, %v1200
    %v1242 = vadd.f32 %v904, %v1205
    %v1243 = vadd.f32 %v909, %v1210
    %v1244 = vadd.f32 %v914, %v1215
    %v1245 = vadd.f32 %v919, %v1220
    %v1246 = vadd.f32 %v924, %v1225
    %v1247 = vadd.f32 %v929, %v1230
    %v1248 = vadd.f32 %v934, %v1235
    %v1249 = vld [vmem:[#allocation7] sm:$0xff]
    %v1250 = vld [vmem:[#allocation7 + $0x8] sm:$0xff]
    %v1251 = vld [vmem:[#allocation7 + $0x10] sm:$0xff]
    %v1252 = vld [vmem:[#allocation7 + $0x18] sm:$0xff]
    %v1253 = vld [vmem:[#allocation7 + $0x20] sm:$0xff]
    %v1254 = vld [vmem:[#allocation7 + $0x28] sm:$0xff]
    %v1255 = vld [vmem:[#allocation7 + $0x30] sm:$0xff]
    %v1256 = vld [vmem:[#allocation7 + $0x38] sm:$0xff]
    %v1257 = vld [vmem:[#allocation7 + $0x40] sm:$0xff]
    %v1258 = vld [vmem:[#allocation7 + $0x48] sm:$0xff]
    %v1259 = vld [vmem:[#allocation7 + $0x50] sm:$0xff]
    %1261 = vset.pattern.permute.xlu0 0
    %1262 = vperm.xlu0 %1261, %v1249
    %v1263 = vpop.permute.xlu0 %1262
    %1266 = vset.pattern.permute.xlu0 0
    %1267 = vperm.xlu0 %1266, %v1250
    %v1268 = vpop.permute.xlu0 %1267
    %1271 = vset.pattern.permute.xlu0 0
    %1272 = vperm.xlu0 %1271, %v1251
    %v1273 = vpop.permute.xlu0 %1272
    %1276 = vset.pattern.permute.xlu0 0
    %1277 = vperm.xlu0 %1276, %v1252
    %v1278 = vpop.permute.xlu0 %1277
    %1281 = vset.pattern.permute.xlu0 0
    %1282 = vperm.xlu0 %1281, %v1253
    %v1283 = vpop.permute.xlu0 %1282
    %1286 = vset.pattern.permute.xlu0 0
    %1287 = vperm.xlu0 %1286, %v1254
    %v1288 = vpop.permute.xlu0 %1287
    %1291 = vset.pattern.permute.xlu0 0
    %1292 = vperm.xlu0 %1291, %v1255
    %v1293 = vpop.permute.xlu0 %1292
    %1296 = vset.pattern.permute.xlu0 0
    %1297 = vperm.xlu0 %1296, %v1256
    %v1298 = vpop.permute.xlu0 %1297
    %1301 = vset.pattern.permute.xlu0 0
    %1302 = vperm.xlu0 %1301, %v1257
    %v1303 = vpop.permute.xlu0 %1302
    %1306 = vset.pattern.permute.xlu0 0
    %1307 = vperm.xlu0 %1306, %v1258
    %v1308 = vpop.permute.xlu0 %1307
    %1311 = vset.pattern.permute.xlu0 0
    %1312 = vperm.xlu0 %1311, %v1259
    %v1313 = vpop.permute.xlu0 %1312
    %v1315 = vadd.f32 %v1238, %v1263
    %v1316 = vadd.f32 %v1239, %v1268
    %v1317 = vadd.f32 %v1240, %v1273
    %v1318 = vadd.f32 %v1241, %v1278
    %v1319 = vadd.f32 %v1242, %v1283
    %v1320 = vadd.f32 %v1243, %v1288
    %v1321 = vadd.f32 %v1244, %v1293
    %v1322 = vadd.f32 %v1245, %v1298
    %v1323 = vadd.f32 %v1246, %v1303
    %v1324 = vadd.f32 %v1247, %v1308
    %v1325 = vadd.f32 %v1248, %v1313
    %v1326 = vld [vmem:[#allocation10] sm:$0xff]
    %v1327 = vld [vmem:[#allocation10 + $0x8] sm:$0xff]
    %v1328 = vld [vmem:[#allocation10 + $0x10] sm:$0xff]
    %v1329 = vld [vmem:[#allocation10 + $0x18] sm:$0xff]
    %1330 = vmatprep.subr.mxu0 0.0
    %1331 = vmatpush1.msra.mxu0 %v1326
    %1332 = vmatprep.subr.mxu0 0.0
    %1333 = vmatpush1.msra.mxu0 %v1327
    %1334 = vmatprep.subr.mxu0 0.0
    %1335 = vmatpush1.msra.mxu0 %v1328
    %1336 = vmatprep.subr.mxu0 0.0
    %1337 = vmatpush1.msra.mxu0 %v1329
    %1338 = vmatprep.subr.mxu0 0.0
    %1339 = vmatpush1.msra.mxu0 0.0
    %1340 = vmatprep.subr.mxu0 0.0
    %1341 = vmatpush1.msra.mxu0 0.0
    %1342 = vmatprep.subr.mxu0 0.0
    %1343 = vmatpush1.msra.mxu0 0.0
    %1344 = vmatprep.subr.mxu0 0.0
    %1345 = vmatpush1.msra.mxu0 0.0
    %1346 = vmatprep.subr.mxu0 0.0
    %1347 = vmatpush1.msra.mxu0 0.0
    %1348 = vmatprep.subr.mxu0 0.0
    %1349 = vmatpush1.msra.mxu0 0.0
    %1350 = vmatprep.subr.mxu0 0.0
    %1351 = vmatpush1.msra.mxu0 0.0
    %1352 = vmatprep.subr.mxu0 0.0
    %1353 = vmatpush1.msra.mxu0 0.0
    %1354 = vmatprep.subr.mxu0 0.0
    %1355 = vmatpush1.msra.mxu0 0.0
    %1356 = vmatprep.subr.mxu0 0.0
    %1357 = vmatpush1.msra.mxu0 0.0
    %1358 = vmatprep.subr.mxu0 0.0
    %1359 = vmatpush1.msra.mxu0 0.0
    %1360 = vmatprep.subr.mxu0 0.0
    %1361 = vmatpush1.msra.mxu0 0.0
    %1362 = vmatprep.subr.mxu0 0.0
    %1363 = vmatpush1.msra.mxu0 0.0
    %1364 = vmatprep.subr.mxu0 0.0
    %1365 = vmatpush1.msra.mxu0 0.0
    %1366 = vmatprep.subr.mxu0 0.0
    %1367 = vmatpush1.msra.mxu0 0.0
    %1368 = vmatprep.subr.mxu0 0.0
    %1369 = vmatpush1.msra.mxu0 0.0
    %1370 = vmatprep.subr.mxu0 0.0
    %1371 = vmatpush1.msra.mxu0 0.0
    %1372 = vmatprep.subr.mxu0 0.0
    %1373 = vmatpush1.msra.mxu0 0.0
    %1374 = vmatprep.subr.mxu0 0.0
    %1375 = vmatpush1.msra.mxu0 0.0
    %1376 = vmatprep.subr.mxu0 0.0
    %1377 = vmatpush1.msra.mxu0 0.0
    %1378 = vmatprep.subr.mxu0 0.0
    %1379 = vmatpush1.msra.mxu0 0.0
    %1380 = vmatprep.subr.mxu0 0.0
    %1381 = vmatpush1.msra.mxu0 0.0
    %1382 = vmatprep.subr.mxu0 0.0
    %1383 = vmatpush1.msra.mxu0 0.0
    %1384 = vmatprep.subr.mxu0 0.0
    %1385 = vmatpush1.msra.mxu0 0.0
    %1386 = vmatprep.subr.mxu0 0.0
    %1387 = vmatpush1.msra.mxu0 0.0
    %1388 = vmatprep.subr.mxu0 0.0
    %1389 = vmatpush1.msra.mxu0 0.0
    %1390 = vmatprep.subr.mxu0 0.0
    %1391 = vmatpush1.msra.mxu0 0.0
    %1392 = vmatprep.subr.mxu0 0.0
    %1393 = vmatpush1.msra.mxu0 0.0
    %1394 = vmatprep.mubr.f32.mxu0 0.0
    %1395 = vmatmul.mubr.f32.gmra.mrb[0].mxu0 %v307
    %v1396 = vpop.f32.mrb[0].mxu0
    %v1397 = vadd.f32 0.0, %v1396
    %v1398 = vpop.f32.mrb[0].mxu0
    %1399 = vmatprep.mubr.f32.mxu0 0.0
    %1400 = vmatmul.mubr.f32.gmra.mrb[0].mxu0 %v310
    %v1401 = vpop.f32.mrb[0].mxu0
    %v1402 = vadd.f32 0.0, %v1401
    %v1403 = vpop.f32.mrb[0].mxu0
    %1404 = vmatprep.mubr.f32.mxu0 0.0
    %1405 = vmatmul.mubr.f32.gmra.mrb[0].mxu0 %v313
    %v1406 = vpop.f32.mrb[0].mxu0
    %v1407 = vadd.f32 0.0, %v1406
    %v1408 = vpop.f32.mrb[0].mxu0
    %1409 = vmatprep.mubr.f32.mxu0 0.0
    %1410 = vmatmul.mubr.f32.gmra.mrb[0].mxu0 %v316
    %v1411 = vpop.f32.mrb[0].mxu0
    %v1412 = vadd.f32 0.0, %v1411
    %v1413 = vpop.f32.mrb[0].mxu0
    %1414 = vmatprep.mubr.f32.mxu0 0.0
    %1415 = vmatmul.mubr.f32.gmra.mrb[0].mxu0 %v319
    %v1416 = vpop.f32.mrb[0].mxu0
    %v1417 = vadd.f32 0.0, %v1416
    %v1418 = vpop.f32.mrb[0].mxu0
    %1419 = vmatprep.mubr.f32.mxu0 0.0
    %1420 = vmatmul.mubr.f32.gmra.mrb[0].mxu0 %v322
    %v1421 = vpop.f32.mrb[0].mxu0
    %v1422 = vadd.f32 0.0, %v1421
    %v1423 = vpop.f32.mrb[0].mxu0
    %1424 = vmatprep.mubr.f32.mxu0 0.0
    %1425 = vmatmul.mubr.f32.gmra.mrb[0].mxu0 %v325
    %v1426 = vpop.f32.mrb[0].mxu0
    %v1427 = vadd.f32 0.0, %v1426
    %v1428 = vpop.f32.mrb[0].mxu0
    %1429 = vmatprep.mubr.f32.mxu0 0.0
    %1430 = vmatmul.mubr.f32.gmra.mrb[0].mxu0 %v328
    %v1431 = vpop.f32.mrb[0].mxu0
    %v1432 = vadd.f32 0.0, %v1431
    %v1433 = vpop.f32.mrb[0].mxu0
    %1434 = vmatprep.mubr.f32.mxu0 0.0
    %1435 = vmatmul.mubr.f32.gmra.mrb[0].mxu0 %v331
    %v1436 = vpop.f32.mrb[0].mxu0
    %v1437 = vadd.f32 0.0, %v1436
    %v1438 = vpop.f32.mrb[0].mxu0
    %1439 = vmatprep.mubr.f32.mxu0 0.0
    %1440 = vmatmul.mubr.f32.gmra.mrb[0].mxu0 %v334
    %v1441 = vpop.f32.mrb[0].mxu0
    %v1442 = vadd.f32 0.0, %v1441
    %v1443 = vpop.f32.mrb[0].mxu0
    %1444 = vmatprep.mubr.f32.mxu0 0.0
    %1445 = vmatmul.mubr.f32.gmra.mrb[0].mxu0 %v337
    %v1446 = vpop.f32.mrb[0].mxu0
    %v1447 = vadd.f32 0.0, %v1446
    %v1448 = vpop.f32.mrb[0].mxu0
    %1449 = vmatprep.mubr.f32.mxu0 0.0
    %1450 = vmatmul.mubr.f32.gmra.mrb[0].mxu0 %v340
    %v1451 = vpop.f32.mrb[0].mxu0
    %v1452 = vadd.f32 0.0, %v1451
    %v1453 = vpop.f32.mrb[0].mxu0
    %1454 = vdwg.mxu0
    %v1455 = vld [vmem:[#allocation9] sm:$0xff]
    %v1456 = vld [vmem:[#allocation9 + $0x8] sm:$0xff]
    %v1457 = vld [vmem:[#allocation9 + $0x10] sm:$0xff]
    %v1458 = vld [vmem:[#allocation9 + $0x18] sm:$0xff]
    %v1459 = vld [vmem:[#allocation9 + $0x20] sm:$0xff]
    %v1460 = vld [vmem:[#allocation9 + $0x28] sm:$0xff]
    %v1461 = vld [vmem:[#allocation9 + $0x30] sm:$0xff]
    %v1462 = vld [vmem:[#allocation9 + $0x38] sm:$0xff]
    %v1463 = vld [vmem:[#allocation9 + $0x40] sm:$0xff]
    %v1464 = vld [vmem:[#allocation9 + $0x48] sm:$0xff]
    %v1465 = vld [vmem:[#allocation9 + $0x50] sm:$0xff]
    %v1466 = vld [vmem:[#allocation9 + $0x58] sm:$0xff]
    %v1467 = vld [vmem:[#allocation9 + $0x60] sm:$0xff]
    %v1468 = vld [vmem:[#allocation9 + $0x68] sm:$0xff]
    %v1469 = vld [vmem:[#allocation9 + $0x70] sm:$0xff]
    %v1470 = vld [vmem:[#allocation9 + $0x78] sm:$0xff]
    %v1471 = vld [vmem:[#allocation9 + $0x80] sm:$0xff]
    %v1472 = vld [vmem:[#allocation9 + $0x88] sm:$0xff]
    %v1473 = vld [vmem:[#allocation9 + $0x90] sm:$0xff]
    %v1474 = vld [vmem:[#allocation9 + $0x98] sm:$0xff]
    %v1475 = vld [vmem:[#allocation9 + $0xa0] sm:$0xff]
    %v1476 = vld [vmem:[#allocation9 + $0xa8] sm:$0xff]
    %v1477 = vld [vmem:[#allocation9 + $0xb0] sm:$0xff]
    %v1478 = vld [vmem:[#allocation9 + $0xb8] sm:$0xff]
    %v1479 = vld [vmem:[#allocation9 + $0xc0] sm:$0xff]
    %v1480 = vld [vmem:[#allocation9 + $0xc8] sm:$0xff]
    %v1481 = vld [vmem:[#allocation9 + $0xd0] sm:$0xff]
    %v1482 = vld [vmem:[#allocation9 + $0xd8] sm:$0xff]
    %v1483 = vld [vmem:[#allocation9 + $0xe0] sm:$0xff]
    %v1484 = vld [vmem:[#allocation9 + $0xe8] sm:$0xff]
    %v1485 = vld [vmem:[#allocation9 + $0xf0] sm:$0xff]
    %v1486 = vld [vmem:[#allocation9 + $0xf8] sm:$0xff]
    %v1487 = vld [vmem:[#allocation9 + $0x100] sm:$0xff]
    %1492 = vrot.lane.b32.xlu0 %v1326, 88
    %v1493 = vpop.permute.xlu0 %1492
    %1494 = vrot.lane.b32.xlu0 %v1327, 88
    %v1495 = vpop.permute.xlu0 %1494
    %1496 = vrot.lane.b32.xlu0 %v1328, 88
    %v1497 = vpop.permute.xlu0 %1496
    %1498 = vrot.lane.b32.xlu0 %v1329, 88
    %v1499 = vpop.permute.xlu0 %1498
    %1504 = vmatprep.subr.mxu0 0.0
    %1505 = vmatpush1.msra.mxu0 %v1493
    %1506 = vmatprep.subr.mxu0 0.0
    %1507 = vmatpush1.msra.mxu0 %v1495
    %1508 = vmatprep.subr.mxu0 0.0
    %1509 = vmatpush1.msra.mxu0 %v1497
    %1510 = vmatprep.subr.mxu0 0.0
    %1511 = vmatpush1.msra.mxu0 %v1499
    %1512 = vmatprep.subr.mxu0 0.0
    %1513 = vmatpush1.msra.mxu0 0.0
    %1514 = vmatprep.subr.mxu0 0.0
    %1515 = vmatpush1.msra.mxu0 0.0
    %1516 = vmatprep.subr.mxu0 0.0
    %1517 = vmatpush1.msra.mxu0 0.0
    %1518 = vmatprep.subr.mxu0 0.0
    %1519 = vmatpush1.msra.mxu0 0.0
    %1520 = vmatprep.subr.mxu0 0.0
    %1521 = vmatpush1.msra.mxu0 0.0
    %1522 = vmatprep.subr.mxu0 0.0
    %1523 = vmatpush1.msra.mxu0 0.0
    %1524 = vmatprep.subr.mxu0 0.0
    %1525 = vmatpush1.msra.mxu0 0.0
    %1526 = vmatprep.subr.mxu0 0.0
    %1527 = vmatpush1.msra.mxu0 0.0
    %1528 = vmatprep.subr.mxu0 0.0
    %1529 = vmatpush1.msra.mxu0 0.0
    %1530 = vmatprep.subr.mxu0 0.0
    %1531 = vmatpush1.msra.mxu0 0.0
    %1532 = vmatprep.subr.mxu0 0.0
    %1533 = vmatpush1.msra.mxu0 0.0
    %1534 = vmatprep.subr.mxu0 0.0
    %1535 = vmatpush1.msra.mxu0 0.0
    %1536 = vmatprep.subr.mxu0 0.0
    %1537 = vmatpush1.msra.mxu0 0.0
    %1538 = vmatprep.subr.mxu0 0.0
    %1539 = vmatpush1.msra.mxu0 0.0
    %1540 = vmatprep.subr.mxu0 0.0
    %1541 = vmatpush1.msra.mxu0 0.0
    %1542 = vmatprep.subr.mxu0 0.0
    %1543 = vmatpush1.msra.mxu0 0.0
    %1544 = vmatprep.subr.mxu0 0.0
    %1545 = vmatpush1.msra.mxu0 0.0
    %1546 = vmatprep.subr.mxu0 0.0
    %1547 = vmatpush1.msra.mxu0 0.0
    %1548 = vmatprep.subr.mxu0 0.0
    %1549 = vmatpush1.msra.mxu0 0.0
    %1550 = vmatprep.subr.mxu0 0.0
    %1551 = vmatpush1.msra.mxu0 0.0
    %1552 = vmatprep.subr.mxu0 0.0
    %1553 = vmatpush1.msra.mxu0 0.0
    %1554 = vmatprep.subr.mxu0 0.0
    %1555 = vmatpush1.msra.mxu0 0.0
    %1556 = vmatprep.subr.mxu0 0.0
    %1557 = vmatpush1.msra.mxu0 0.0
    %1558 = vmatprep.subr.mxu0 0.0
    %1559 = vmatpush1.msra.mxu0 0.0
    %1560 = vmatprep.subr.mxu0 0.0
    %1561 = vmatpush1.msra.mxu0 0.0
    %1562 = vmatprep.subr.mxu0 0.0
    %1563 = vmatpush1.msra.mxu0 0.0
    %1564 = vmatprep.subr.mxu0 0.0
    %1565 = vmatpush1.msra.mxu0 0.0
    %1566 = vmatprep.subr.mxu0 0.0
    %1567 = vmatpush1.msra.mxu0 0.0
    %1568 = vmatprep.mubr.f32.mxu0 0.0
    %1569 = vmatmul.mubr.f32.gmra.mrb[0].mxu0 %v307
    %v1570 = vpop.f32.mrb[0].mxu0
    %v1571 = vadd.f32 0.0, %v1570
    %v1572 = vpop.f32.mrb[0].mxu0
    %1573 = vmatprep.mubr.f32.mxu0 0.0
    %1574 = vmatmul.mubr.f32.gmra.mrb[0].mxu0 %v310
    %v1575 = vpop.f32.mrb[0].mxu0
    %v1576 = vadd.f32 0.0, %v1575
    %v1577 = vpop.f32.mrb[0].mxu0
    %1578 = vmatprep.mubr.f32.mxu0 0.0
    %1579 = vmatmul.mubr.f32.gmra.mrb[0].mxu0 %v313
    %v1580 = vpop.f32.mrb[0].mxu0
    %v1581 = vadd.f32 0.0, %v1580
    %v1582 = vpop.f32.mrb[0].mxu0
    %1583 = vmatprep.mubr.f32.mxu0 0.0
    %1584 = vmatmul.mubr.f32.gmra.mrb[0].mxu0 %v316
    %v1585 = vpop.f32.mrb[0].mxu0
    %v1586 = vadd.f32 0.0, %v1585
    %v1587 = vpop.f32.mrb[0].mxu0
    %1588 = vmatprep.mubr.f32.mxu0 0.0
    %1589 = vmatmul.mubr.f32.gmra.mrb[0].mxu0 %v319
    %v1590 = vpop.f32.mrb[0].mxu0
    %v1591 = vadd.f32 0.0, %v1590
    %v1592 = vpop.f32.mrb[0].mxu0
    %1593 = vmatprep.mubr.f32.mxu0 0.0
    %1594 = vmatmul.mubr.f32.gmra.mrb[0].mxu0 %v322
    %v1595 = vpop.f32.mrb[0].mxu0
    %v1596 = vadd.f32 0.0, %v1595
    %v1597 = vpop.f32.mrb[0].mxu0
    %1598 = vmatprep.mubr.f32.mxu0 0.0
    %1599 = vmatmul.mubr.f32.gmra.mrb[0].mxu0 %v325
    %v1600 = vpop.f32.mrb[0].mxu0
    %v1601 = vadd.f32 0.0, %v1600
    %v1602 = vpop.f32.mrb[0].mxu0
    %1603 = vmatprep.mubr.f32.mxu0 0.0
    %1604 = vmatmul.mubr.f32.gmra.mrb[0].mxu0 %v328
    %v1605 = vpop.f32.mrb[0].mxu0
    %v1606 = vadd.f32 0.0, %v1605
    %v1607 = vpop.f32.mrb[0].mxu0
    %1608 = vmatprep.mubr.f32.mxu0 0.0
    %1609 = vmatmul.mubr.f32.gmra.mrb[0].mxu0 %v331
    %v1610 = vpop.f32.mrb[0].mxu0
    %v1611 = vadd.f32 0.0, %v1610
    %v1612 = vpop.f32.mrb[0].mxu0
    %1613 = vmatprep.mubr.f32.mxu0 0.0
    %1614 = vmatmul.mubr.f32.gmra.mrb[0].mxu0 %v334
    %v1615 = vpop.f32.mrb[0].mxu0
    %v1616 = vadd.f32 0.0, %v1615
    %v1617 = vpop.f32.mrb[0].mxu0
    %1618 = vmatprep.mubr.f32.mxu0 0.0
    %1619 = vmatmul.mubr.f32.gmra.mrb[0].mxu0 %v337
    %v1620 = vpop.f32.mrb[0].mxu0
    %v1621 = vadd.f32 0.0, %v1620
    %v1622 = vpop.f32.mrb[0].mxu0
    %1623 = vmatprep.mubr.f32.mxu0 0.0
    %1624 = vmatmul.mubr.f32.gmra.mrb[0].mxu0 %v340
    %v1625 = vpop.f32.mrb[0].mxu0
    %v1626 = vadd.f32 0.0, %v1625
    %v1627 = vpop.f32.mrb[0].mxu0
    %1628 = vdwg.mxu0
    %v1629 = vld [vmem:[#allocation9 + $0x108] sm:$0xff]
    %v1630 = vld [vmem:[#allocation9 + $0x110] sm:$0xff]
    %v1631 = vld [vmem:[#allocation9 + $0x118] sm:$0xff]
    %v1632 = vld [vmem:[#allocation9 + $0x120] sm:$0xff]
    %v1633 = vld [vmem:[#allocation9 + $0x128] sm:$0xff]
    %v1634 = vld [vmem:[#allocation9 + $0x130] sm:$0xff]
    %v1635 = vld [vmem:[#allocation9 + $0x138] sm:$0xff]
    %v1636 = vld [vmem:[#allocation9 + $0x140] sm:$0xff]
    %v1637 = vld [vmem:[#allocation9 + $0x148] sm:$0xff]
    %v1638 = vld [vmem:[#allocation9 + $0x150] sm:$0xff]
    %v1639 = vld [vmem:[#allocation9 + $0x158] sm:$0xff]
    %v1640 = vld [vmem:[#allocation9 + $0x160] sm:$0xff]
    %v1641 = vld [vmem:[#allocation9 + $0x168] sm:$0xff]
    %v1642 = vld [vmem:[#allocation9 + $0x170] sm:$0xff]
    %v1643 = vld [vmem:[#allocation9 + $0x178] sm:$0xff]
    %v1644 = vld [vmem:[#allocation9 + $0x180] sm:$0xff]
    %v1645 = vld [vmem:[#allocation9 + $0x188] sm:$0xff]
    %v1646 = vld [vmem:[#allocation9 + $0x190] sm:$0xff]
    %v1647 = vld [vmem:[#allocation9 + $0x198] sm:$0xff]
    %v1648 = vld [vmem:[#allocation9 + $0x1a0] sm:$0xff]
    %v1649 = vld [vmem:[#allocation9 + $0x1a8] sm:$0xff]
    %v1650 = vld [vmem:[#allocation9 + $0x1b0] sm:$0xff]
    %v1651 = vld [vmem:[#allocation9 + $0x1b8] sm:$0xff]
    %v1652 = vld [vmem:[#allocation9 + $0x1c0] sm:$0xff]
    %v1653 = vld [vmem:[#allocation9 + $0x1c8] sm:$0xff]
    %v1654 = vld [vmem:[#allocation9 + $0x1d0] sm:$0xff]
    %v1655 = vld [vmem:[#allocation9 + $0x1d8] sm:$0xff]
    %v1656 = vld [vmem:[#allocation9 + $0x1e0] sm:$0xff]
    %v1657 = vld [vmem:[#allocation9 + $0x1e8] sm:$0xff]
    %v1658 = vld [vmem:[#allocation9 + $0x1f0] sm:$0xff]
    %v1659 = vld [vmem:[#allocation9 + $0x1f8] sm:$0xff]
    %v1660 = vld [vmem:[#allocation9 + $0x200] sm:$0xff]
    %v1661 = vld [vmem:[#allocation9 + $0x208] sm:$0xff]
    %v1663 = vsel %vm630, %v1629, 0
    %v1666 = vsel %vm630, %v1630, 0
    %v1669 = vsel %vm630, %v1631, 0
    %v1672 = vsel %vm630, %v1632, 0
    %v1675 = vsel %vm630, %v1633, 0
    %v1678 = vsel %vm630, %v1634, 0
    %v1681 = vsel %vm630, %v1635, 0
    %v1684 = vsel %vm630, %v1636, 0
    %v1687 = vsel %vm630, %v1637, 0
    %v1690 = vsel %vm630, %v1638, 0
    %v1693 = vsel %vm630, %v1639, 0
    %v1696 = vsel %vm630, %v1640, 0
    %v1699 = vsel %vm630, %v1641, 0
    %v1702 = vsel %vm630, %v1642, 0
    %v1705 = vsel %vm630, %v1643, 0
    %v1708 = vsel %vm630, %v1644, 0
    %v1711 = vsel %vm630, %v1645, 0
    %v1714 = vsel %vm630, %v1646, 0
    %v1717 = vsel %vm630, %v1647, 0
    %v1720 = vsel %vm630, %v1648, 0
    %v1723 = vsel %vm630, %v1649, 0
    %v1726 = vsel %vm630, %v1650, 0
    %v1729 = vsel %vm630, %v1651, 0
    %v1732 = vsel %vm630, %v1652, 0
    %v1735 = vsel %vm630, %v1653, 0
    %v1738 = vsel %vm630, %v1654, 0
    %v1741 = vsel %vm630, %v1655, 0
    %v1744 = vsel %vm630, %v1656, 0
    %v1747 = vsel %vm630, %v1657, 0
    %v1750 = vsel %vm630, %v1658, 0
    %v1753 = vsel %vm630, %v1659, 0
    %v1756 = vsel %vm630, %v1660, 0
    %v1759 = vsel %vm630, %v1661, 0
    %1761 = vmatprep.subr.mxu0 0.0
    %1762 = vmatpush1.msra.mxu0 %v1571
    %1763 = vmatprep.subr.mxu0 0.0
    %1764 = vmatpush1.msra.mxu0 %v1576
    %1765 = vmatprep.subr.mxu0 0.0
    %1766 = vmatpush1.msra.mxu0 %v1581
    %1767 = vmatprep.subr.mxu0 0.0
    %1768 = vmatpush1.msra.mxu0 %v1586
    %1769 = vmatprep.subr.mxu0 0.0
    %1770 = vmatpush1.msra.mxu0 %v1591
    %1771 = vmatprep.subr.mxu0 0.0
    %1772 = vmatpush1.msra.mxu0 %v1596
    %1773 = vmatprep.subr.mxu0 0.0
    %1774 = vmatpush1.msra.mxu0 %v1601
    %1775 = vmatprep.subr.mxu0 0.0
    %1776 = vmatpush1.msra.mxu0 %v1606
    %1777 = vmatprep.subr.mxu0 0.0
    %1778 = vmatpush1.msra.mxu0 %v1611
    %1779 = vmatprep.subr.mxu0 0.0
    %1780 = vmatpush1.msra.mxu0 %v1616
    %1781 = vmatprep.subr.mxu0 0.0
    %1782 = vmatpush1.msra.mxu0 %v1621
    %1783 = vmatprep.subr.mxu0 0.0
    %1784 = vmatpush1.msra.mxu0 %v1626
    %1785 = vmatprep.subr.mxu0 0.0
    %1786 = vmatpush1.msra.mxu0 0.0
    %1787 = vmatprep.subr.mxu0 0.0
    %1788 = vmatpush1.msra.mxu0 0.0
    %1789 = vmatprep.subr.mxu0 0.0
    %1790 = vmatpush1.msra.mxu0 0.0
    %1791 = vmatprep.subr.mxu0 0.0
    %1792 = vmatpush1.msra.mxu0 0.0
    %1793 = vmatprep.subr.mxu0 0.0
    %1794 = vmatpush1.msra.mxu0 0.0
    %1795 = vmatprep.subr.mxu0 0.0
    %1796 = vmatpush1.msra.mxu0 0.0
    %1797 = vmatprep.subr.mxu0 0.0
    %1798 = vmatpush1.msra.mxu0 0.0
    %1799 = vmatprep.subr.mxu0 0.0
    %1800 = vmatpush1.msra.mxu0 0.0
    %1801 = vmatprep.subr.mxu0 0.0
    %1802 = vmatpush1.msra.mxu0 0.0
    %1803 = vmatprep.subr.mxu0 0.0
    %1804 = vmatpush1.msra.mxu0 0.0
    %1805 = vmatprep.subr.mxu0 0.0
    %1806 = vmatpush1.msra.mxu0 0.0
    %1807 = vmatprep.subr.mxu0 0.0
    %1808 = vmatpush1.msra.mxu0 0.0
    %1809 = vmatprep.subr.mxu0 0.0
    %1810 = vmatpush1.msra.mxu0 0.0
    %1811 = vmatprep.subr.mxu0 0.0
    %1812 = vmatpush1.msra.mxu0 0.0
    %1813 = vmatprep.subr.mxu0 0.0
    %1814 = vmatpush1.msra.mxu0 0.0
    %1815 = vmatprep.subr.mxu0 0.0
    %1816 = vmatpush1.msra.mxu0 0.0
    %1817 = vmatprep.subr.mxu0 0.0
    %1818 = vmatpush1.msra.mxu0 0.0
    %1819 = vmatprep.subr.mxu0 0.0
    %1820 = vmatpush1.msra.mxu0 0.0
    %1821 = vmatprep.subr.mxu0 0.0
    %1822 = vmatpush1.msra.mxu0 0.0
    %1823 = vmatprep.subr.mxu0 0.0
    %1824 = vmatpush1.msra.mxu0 0.0
    %1825 = vmatprep.mubr.f32.mxu0 0.0
    %1826 = vmatmul.mubr.f32.gmra.mrb[0].mxu0 %v1663
    %v1827 = vpop.f32.mrb[0].mxu0
    %v1828 = vadd.f32 0.0, %v1827
    %v1829 = vpop.f32.mrb[0].mxu0
    %1830 = vmatprep.mubr.f32.mxu0 0.0
    %1831 = vmatmul.mubr.f32.gmra.mrb[0].mxu0 %v1666
    %v1832 = vpop.f32.mrb[0].mxu0
    %v1833 = vadd.f32 0.0, %v1832
    %v1834 = vpop.f32.mrb[0].mxu0
    %1835 = vmatprep.mubr.f32.mxu0 0.0
    %1836 = vmatmul.mubr.f32.gmra.mrb[0].mxu0 %v1669
    %v1837 = vpop.f32.mrb[0].mxu0
    %v1838 = vadd.f32 0.0, %v1837
    %v1839 = vpop.f32.mrb[0].mxu0
    %1840 = vmatprep.mubr.f32.mxu0 0.0
    %1841 = vmatmul.mubr.f32.gmra.mrb[0].mxu0 %v1672
    %v1842 = vpop.f32.mrb[0].mxu0
    %v1843 = vadd.f32 0.0, %v1842
    %v1844 = vpop.f32.mrb[0].mxu0
    %1845 = vmatprep.mubr.f32.mxu0 0.0
    %1846 = vmatmul.mubr.f32.gmra.mrb[0].mxu0 %v1675
    %v1847 = vpop.f32.mrb[0].mxu0
    %v1848 = vadd.f32 0.0, %v1847
    %v1849 = vpop.f32.mrb[0].mxu0
    %1850 = vmatprep.mubr.f32.mxu0 0.0
    %1851 = vmatmul.mubr.f32.gmra.mrb[0].mxu0 %v1678
    %v1852 = vpop.f32.mrb[0].mxu0
    %v1853 = vadd.f32 0.0, %v1852
    %v1854 = vpop.f32.mrb[0].mxu0
    %1855 = vmatprep.mubr.f32.mxu0 0.0
    %1856 = vmatmul.mubr.f32.gmra.mrb[0].mxu0 %v1681
    %v1857 = vpop.f32.mrb[0].mxu0
    %v1858 = vadd.f32 0.0, %v1857
    %v1859 = vpop.f32.mrb[0].mxu0
    %1860 = vmatprep.mubr.f32.mxu0 0.0
    %1861 = vmatmul.mubr.f32.gmra.mrb[0].mxu0 %v1684
    %v1862 = vpop.f32.mrb[0].mxu0
    %v1863 = vadd.f32 0.0, %v1862
    %v1864 = vpop.f32.mrb[0].mxu0
    %1865 = vmatprep.mubr.f32.mxu0 0.0
    %1866 = vmatmul.mubr.f32.gmra.mrb[0].mxu0 %v1687
    %v1867 = vpop.f32.mrb[0].mxu0
    %v1868 = vadd.f32 0.0, %v1867
    %v1869 = vpop.f32.mrb[0].mxu0
    %1870 = vmatprep.mubr.f32.mxu0 0.0
    %1871 = vmatmul.mubr.f32.gmra.mrb[0].mxu0 %v1690
    %v1872 = vpop.f32.mrb[0].mxu0
    %v1873 = vadd.f32 0.0, %v1872
    %v1874 = vpop.f32.mrb[0].mxu0
    %1875 = vmatprep.mubr.f32.mxu0 0.0
    %1876 = vmatmul.mubr.f32.gmra.mrb[0].mxu0 %v1693
    %v1877 = vpop.f32.mrb[0].mxu0
    %v1878 = vadd.f32 0.0, %v1877
    %v1879 = vpop.f32.mrb[0].mxu0
    %1880 = vmatprep.mubr.f32.mxu0 0.0
    %1881 = vmatmul.mubr.f32.gmra.mrb[0].mxu0 %v1696
    %v1882 = vpop.f32.mrb[0].mxu0
    %v1883 = vadd.f32 0.0, %v1882
    %v1884 = vpop.f32.mrb[0].mxu0
    %1885 = vmatprep.mubr.f32.mxu0 0.0
    %1886 = vmatmul.mubr.f32.gmra.mrb[0].mxu0 %v1699
    %v1887 = vpop.f32.mrb[0].mxu0
    %v1888 = vadd.f32 0.0, %v1887
    %v1889 = vpop.f32.mrb[0].mxu0
    %1890 = vmatprep.mubr.f32.mxu0 0.0
    %1891 = vmatmul.mubr.f32.gmra.mrb[0].mxu0 %v1702
    %v1892 = vpop.f32.mrb[0].mxu0
    %v1893 = vadd.f32 0.0, %v1892
    %v1894 = vpop.f32.mrb[0].mxu0
    %1895 = vmatprep.mubr.f32.mxu0 0.0
    %1896 = vmatmul.mubr.f32.gmra.mrb[0].mxu0 %v1705
    %v1897 = vpop.f32.mrb[0].mxu0
    %v1898 = vadd.f32 0.0, %v1897
    %v1899 = vpop.f32.mrb[0].mxu0
    %1900 = vmatprep.mubr.f32.mxu0 0.0
    %1901 = vmatmul.mubr.f32.gmra.mrb[0].mxu0 %v1708
    %v1902 = vpop.f32.mrb[0].mxu0
    %v1903 = vadd.f32 0.0, %v1902
    %v1904 = vpop.f32.mrb[0].mxu0
    %1905 = vmatprep.mubr.f32.mxu0 0.0
    %1906 = vmatmul.mubr.f32.gmra.mrb[0].mxu0 %v1711
    %v1907 = vpop.f32.mrb[0].mxu0
    %v1908 = vadd.f32 0.0, %v1907
    %v1909 = vpop.f32.mrb[0].mxu0
    %1910 = vmatprep.mubr.f32.mxu0 0.0
    %1911 = vmatmul.mubr.f32.gmra.mrb[0].mxu0 %v1714
    %v1912 = vpop.f32.mrb[0].mxu0
    %v1913 = vadd.f32 0.0, %v1912
    %v1914 = vpop.f32.mrb[0].mxu0
    %1915 = vmatprep.mubr.f32.mxu0 0.0
    %1916 = vmatmul.mubr.f32.gmra.mrb[0].mxu0 %v1717
    %v1917 = vpop.f32.mrb[0].mxu0
    %v1918 = vadd.f32 0.0, %v1917
    %v1919 = vpop.f32.mrb[0].mxu0
    %1920 = vmatprep.mubr.f32.mxu0 0.0
    %1921 = vmatmul.mubr.f32.gmra.mrb[0].mxu0 %v1720
    %v1922 = vpop.f32.mrb[0].mxu0
    %v1923 = vadd.f32 0.0, %v1922
    %v1924 = vpop.f32.mrb[0].mxu0
    %1925 = vmatprep.mubr.f32.mxu0 0.0
    %1926 = vmatmul.mubr.f32.gmra.mrb[0].mxu0 %v1723
    %v1927 = vpop.f32.mrb[0].mxu0
    %v1928 = vadd.f32 0.0, %v1927
    %v1929 = vpop.f32.mrb[0].mxu0
    %1930 = vmatprep.mubr.f32.mxu0 0.0
    %1931 = vmatmul.mubr.f32.gmra.mrb[0].mxu0 %v1726
    %v1932 = vpop.f32.mrb[0].mxu0
    %v1933 = vadd.f32 0.0, %v1932
    %v1934 = vpop.f32.mrb[0].mxu0
    %1935 = vmatprep.mubr.f32.mxu0 0.0
    %1936 = vmatmul.mubr.f32.gmra.mrb[0].mxu0 %v1729
    %v1937 = vpop.f32.mrb[0].mxu0
    %v1938 = vadd.f32 0.0, %v1937
    %v1939 = vpop.f32.mrb[0].mxu0
    %1940 = vmatprep.mubr.f32.mxu0 0.0
    %1941 = vmatmul.mubr.f32.gmra.mrb[0].mxu0 %v1732
    %v1942 = vpop.f32.mrb[0].mxu0
    %v1943 = vadd.f32 0.0, %v1942
    %v1944 = vpop.f32.mrb[0].mxu0
    %1945 = vmatprep.mubr.f32.mxu0 0.0
    %1946 = vmatmul.mubr.f32.gmra.mrb[0].mxu0 %v1735
    %v1947 = vpop.f32.mrb[0].mxu0
    %v1948 = vadd.f32 0.0, %v1947
    %v1949 = vpop.f32.mrb[0].mxu0
    %1950 = vmatprep.mubr.f32.mxu0 0.0
    %1951 = vmatmul.mubr.f32.gmra.mrb[0].mxu0 %v1738
    %v1952 = vpop.f32.mrb[0].mxu0
    %v1953 = vadd.f32 0.0, %v1952
    %v1954 = vpop.f32.mrb[0].mxu0
    %1955 = vmatprep.mubr.f32.mxu0 0.0
    %1956 = vmatmul.mubr.f32.gmra.mrb[0].mxu0 %v1741
    %v1957 = vpop.f32.mrb[0].mxu0
    %v1958 = vadd.f32 0.0, %v1957
    %v1959 = vpop.f32.mrb[0].mxu0
    %1960 = vmatprep.mubr.f32.mxu0 0.0
    %1961 = vmatmul.mubr.f32.gmra.mrb[0].mxu0 %v1744
    %v1962 = vpop.f32.mrb[0].mxu0
    %v1963 = vadd.f32 0.0, %v1962
    %v1964 = vpop.f32.mrb[0].mxu0
    %1965 = vmatprep.mubr.f32.mxu0 0.0
    %1966 = vmatmul.mubr.f32.gmra.mrb[0].mxu0 %v1747
    %v1967 = vpop.f32.mrb[0].mxu0
    %v1968 = vadd.f32 0.0, %v1967
    %v1969 = vpop.f32.mrb[0].mxu0
    %1970 = vmatprep.mubr.f32.mxu0 0.0
    %1971 = vmatmul.mubr.f32.gmra.mrb[0].mxu0 %v1750
    %v1972 = vpop.f32.mrb[0].mxu0
    %v1973 = vadd.f32 0.0, %v1972
    %v1974 = vpop.f32.mrb[0].mxu0
    %1975 = vmatprep.mubr.f32.mxu0 0.0
    %1976 = vmatmul.mubr.f32.gmra.mrb[0].mxu0 %v1753
    %v1977 = vpop.f32.mrb[0].mxu0
    %v1978 = vadd.f32 0.0, %v1977
    %v1979 = vpop.f32.mrb[0].mxu0
    %1980 = vmatprep.mubr.f32.mxu0 0.0
    %1981 = vmatmul.mubr.f32.gmra.mrb[0].mxu0 %v1756
    %v1982 = vpop.f32.mrb[0].mxu0
    %v1983 = vadd.f32 0.0, %v1982
    %v1984 = vpop.f32.mrb[0].mxu0
    %1985 = vmatprep.mubr.f32.mxu0 0.0
    %1986 = vmatmul.mubr.f32.gmra.mrb[0].mxu0 %v1759
    %v1987 = vpop.f32.mrb[0].mxu0
    %v1988 = vadd.f32 0.0, %v1987
    %v1989 = vpop.f32.mrb[0].mxu0
    %1990 = vdwg.mxu0
    %v1992 = vsel %vm630, %v1455, 0
    %v1995 = vsel %vm630, %v1456, 0
    %v1998 = vsel %vm630, %v1457, 0
    %v2001 = vsel %vm630, %v1458, 0
    %v2004 = vsel %vm630, %v1459, 0
    %v2007 = vsel %vm630, %v1460, 0
    %v2010 = vsel %vm630, %v1461, 0
    %v2013 = vsel %vm630, %v1462, 0
    %v2016 = vsel %vm630, %v1463, 0
    %v2019 = vsel %vm630, %v1464, 0
    %v2022 = vsel %vm630, %v1465, 0
    %v2025 = vsel %vm630, %v1466, 0
    %v2028 = vsel %vm630, %v1467, 0
    %v2031 = vsel %vm630, %v1468, 0
    %v2034 = vsel %vm630, %v1469, 0
    %v2037 = vsel %vm630, %v1470, 0
    %v2040 = vsel %vm630, %v1471, 0
    %v2043 = vsel %vm630, %v1472, 0
    %v2046 = vsel %vm630, %v1473, 0
    %v2049 = vsel %vm630, %v1474, 0
    %v2052 = vsel %vm630, %v1475, 0
    %v2055 = vsel %vm630, %v1476, 0
    %v2058 = vsel %vm630, %v1477, 0
    %v2061 = vsel %vm630, %v1478, 0
    %v2064 = vsel %vm630, %v1479, 0
    %v2067 = vsel %vm630, %v1480, 0
    %v2070 = vsel %vm630, %v1481, 0
    %v2073 = vsel %vm630, %v1482, 0
    %v2076 = vsel %vm630, %v1483, 0
    %v2079 = vsel %vm630, %v1484, 0
    %v2082 = vsel %vm630, %v1485, 0
    %v2085 = vsel %vm630, %v1486, 0
    %v2088 = vsel %vm630, %v1487, 0
    %2090 = vmatprep.subr.mxu0 0.0
    %2091 = vmatpush1.msra.mxu0 %v1397
    %2092 = vmatprep.subr.mxu0 0.0
    %2093 = vmatpush1.msra.mxu0 %v1402
    %2094 = vmatprep.subr.mxu0 0.0
    %2095 = vmatpush1.msra.mxu0 %v1407
    %2096 = vmatprep.subr.mxu0 0.0
    %2097 = vmatpush1.msra.mxu0 %v1412
    %2098 = vmatprep.subr.mxu0 0.0
    %2099 = vmatpush1.msra.mxu0 %v1417
    %2100 = vmatprep.subr.mxu0 0.0
    %2101 = vmatpush1.msra.mxu0 %v1422
    %2102 = vmatprep.subr.mxu0 0.0
    %2103 = vmatpush1.msra.mxu0 %v1427
    %2104 = vmatprep.subr.mxu0 0.0
    %2105 = vmatpush1.msra.mxu0 %v1432
    %2106 = vmatprep.subr.mxu0 0.0
    %2107 = vmatpush1.msra.mxu0 %v1437
    %2108 = vmatprep.subr.mxu0 0.0
    %2109 = vmatpush1.msra.mxu0 %v1442
    %2110 = vmatprep.subr.mxu0 0.0
    %2111 = vmatpush1.msra.mxu0 %v1447
    %2112 = vmatprep.subr.mxu0 0.0
    %2113 = vmatpush1.msra.mxu0 %v1452
    %2114 = vmatprep.subr.mxu0 0.0
    %2115 = vmatpush1.msra.mxu0 0.0
    %2116 = vmatprep.subr.mxu0 0.0
    %2117 = vmatpush1.msra.mxu0 0.0
    %2118 = vmatprep.subr.mxu0 0.0
    %2119 = vmatpush1.msra.mxu0 0.0
    %2120 = vmatprep.subr.mxu0 0.0
    %2121 = vmatpush1.msra.mxu0 0.0
    %2122 = vmatprep.subr.mxu0 0.0
    %2123 = vmatpush1.msra.mxu0 0.0
    %2124 = vmatprep.subr.mxu0 0.0
    %2125 = vmatpush1.msra.mxu0 0.0
    %2126 = vmatprep.subr.mxu0 0.0
    %2127 = vmatpush1.msra.mxu0 0.0
    %2128 = vmatprep.subr.mxu0 0.0
    %2129 = vmatpush1.msra.mxu0 0.0
    %2130 = vmatprep.subr.mxu0 0.0
    %2131 = vmatpush1.msra.mxu0 0.0
    %2132 = vmatprep.subr.mxu0 0.0
    %2133 = vmatpush1.msra.mxu0 0.0
    %2134 = vmatprep.subr.mxu0 0.0
    %2135 = vmatpush1.msra.mxu0 0.0
    %2136 = vmatprep.subr.mxu0 0.0
    %2137 = vmatpush1.msra.mxu0 0.0
    %2138 = vmatprep.subr.mxu0 0.0
    %2139 = vmatpush1.msra.mxu0 0.0
    %2140 = vmatprep.subr.mxu0 0.0
    %2141 = vmatpush1.msra.mxu0 0.0
    %2142 = vmatprep.subr.mxu0 0.0
    %2143 = vmatpush1.msra.mxu0 0.0
    %2144 = vmatprep.subr.mxu0 0.0
    %2145 = vmatpush1.msra.mxu0 0.0
    %2146 = vmatprep.subr.mxu0 0.0
    %2147 = vmatpush1.msra.mxu0 0.0
    %2148 = vmatprep.subr.mxu0 0.0
    %2149 = vmatpush1.msra.mxu0 0.0
    %2150 = vmatprep.subr.mxu0 0.0
    %2151 = vmatpush1.msra.mxu0 0.0
    %2152 = vmatprep.subr.mxu0 0.0
    %2153 = vmatpush1.msra.mxu0 0.0
    %2154 = vmatprep.mubr.f32.mxu0 0.0
    %2155 = vmatmul.mubr.f32.gmra.mrb[0].mxu0 %v1992
    %v2156 = vpop.f32.mrb[0].mxu0
    %v2157 = vadd.f32 %v1828, %v2156
    %v2158 = vpop.f32.mrb[0].mxu0
    %2159 = vmatprep.mubr.f32.mxu0 0.0
    %2160 = vmatmul.mubr.f32.gmra.mrb[0].mxu0 %v1995
    %v2161 = vpop.f32.mrb[0].mxu0
    %v2162 = vadd.f32 %v1833, %v2161
    %v2163 = vpop.f32.mrb[0].mxu0
    %2164 = vmatprep.mubr.f32.mxu0 0.0
    %2165 = vmatmul.mubr.f32.gmra.mrb[0].mxu0 %v1998
    %v2166 = vpop.f32.mrb[0].mxu0
    %v2167 = vadd.f32 %v1838, %v2166
    %v2168 = vpop.f32.mrb[0].mxu0
    %2169 = vmatprep.mubr.f32.mxu0 0.0
    %2170 = vmatmul.mubr.f32.gmra.mrb[0].mxu0 %v2001
    %v2171 = vpop.f32.mrb[0].mxu0
    %v2172 = vadd.f32 %v1843, %v2171
    %v2173 = vpop.f32.mrb[0].mxu0
    %2174 = vmatprep.mubr.f32.mxu0 0.0
    %2175 = vmatmul.mubr.f32.gmra.mrb[0].mxu0 %v2004
    %v2176 = vpop.f32.mrb[0].mxu0
    %v2177 = vadd.f32 %v1848, %v2176
    %v2178 = vpop.f32.mrb[0].mxu0
    %2179 = vmatprep.mubr.f32.mxu0 0.0
    %2180 = vmatmul.mubr.f32.gmra.mrb[0].mxu0 %v2007
    %v2181 = vpop.f32.mrb[0].mxu0
    %v2182 = vadd.f32 %v1853, %v2181
    %v2183 = vpop.f32.mrb[0].mxu0
    %2184 = vmatprep.mubr.f32.mxu0 0.0
    %2185 = vmatmul.mubr.f32.gmra.mrb[0].mxu0 %v2010
    %v2186 = vpop.f32.mrb[0].mxu0
    %v2187 = vadd.f32 %v1858, %v2186
    %v2188 = vpop.f32.mrb[0].mxu0
    %2189 = vmatprep.mubr.f32.mxu0 0.0
    %2190 = vmatmul.mubr.f32.gmra.mrb[0].mxu0 %v2013
    %v2191 = vpop.f32.mrb[0].mxu0
    %v2192 = vadd.f32 %v1863, %v2191
    %v2193 = vpop.f32.mrb[0].mxu0
    %2194 = vmatprep.mubr.f32.mxu0 0.0
    %2195 = vmatmul.mubr.f32.gmra.mrb[0].mxu0 %v2016
    %v2196 = vpop.f32.mrb[0].mxu0
    %v2197 = vadd.f32 %v1868, %v2196
    %v2198 = vpop.f32.mrb[0].mxu0
    %2199 = vmatprep.mubr.f32.mxu0 0.0
    %2200 = vmatmul.mubr.f32.gmra.mrb[0].mxu0 %v2019
    %v2201 = vpop.f32.mrb[0].mxu0
    %v2202 = vadd.f32 %v1873, %v2201
    %v2203 = vpop.f32.mrb[0].mxu0
    %2204 = vmatprep.mubr.f32.mxu0 0.0
    %2205 = vmatmul.mubr.f32.gmra.mrb[0].mxu0 %v2022
    %v2206 = vpop.f32.mrb[0].mxu0
    %v2207 = vadd.f32 %v1878, %v2206
    %v2208 = vpop.f32.mrb[0].mxu0
    %2209 = vmatprep.mubr.f32.mxu0 0.0
    %2210 = vmatmul.mubr.f32.gmra.mrb[0].mxu0 %v2025
    %v2211 = vpop.f32.mrb[0].mxu0
    %v2212 = vadd.f32 %v1883, %v2211
    %v2213 = vpop.f32.mrb[0].mxu0
    %2214 = vmatprep.mubr.f32.mxu0 0.0
    %2215 = vmatmul.mubr.f32.gmra.mrb[0].mxu0 %v2028
    %v2216 = vpop.f32.mrb[0].mxu0
    %v2217 = vadd.f32 %v1888, %v2216
    %v2218 = vpop.f32.mrb[0].mxu0
    %2219 = vmatprep.mubr.f32.mxu0 0.0
    %2220 = vmatmul.mubr.f32.gmra.mrb[0].mxu0 %v2031
    %v2221 = vpop.f32.mrb[0].mxu0
    %v2222 = vadd.f32 %v1893, %v2221
    %v2223 = vpop.f32.mrb[0].mxu0
    %2224 = vmatprep.mubr.f32.mxu0 0.0
    %2225 = vmatmul.mubr.f32.gmra.mrb[0].mxu0 %v2034
    %v2226 = vpop.f32.mrb[0].mxu0
    %v2227 = vadd.f32 %v1898, %v2226
    %v2228 = vpop.f32.mrb[0].mxu0
    %2229 = vmatprep.mubr.f32.mxu0 0.0
    %2230 = vmatmul.mubr.f32.gmra.mrb[0].mxu0 %v2037
    %v2231 = vpop.f32.mrb[0].mxu0
    %v2232 = vadd.f32 %v1903, %v2231
    %v2233 = vpop.f32.mrb[0].mxu0
    %2234 = vmatprep.mubr.f32.mxu0 0.0
    %2235 = vmatmul.mubr.f32.gmra.mrb[0].mxu0 %v2040
    %v2236 = vpop.f32.mrb[0].mxu0
    %v2237 = vadd.f32 %v1908, %v2236
    %v2238 = vpop.f32.mrb[0].mxu0
    %2239 = vmatprep.mubr.f32.mxu0 0.0
    %2240 = vmatmul.mubr.f32.gmra.mrb[0].mxu0 %v2043
    %v2241 = vpop.f32.mrb[0].mxu0
    %v2242 = vadd.f32 %v1913, %v2241
    %v2243 = vpop.f32.mrb[0].mxu0
    %2244 = vmatprep.mubr.f32.mxu0 0.0
    %2245 = vmatmul.mubr.f32.gmra.mrb[0].mxu0 %v2046
    %v2246 = vpop.f32.mrb[0].mxu0
    %v2247 = vadd.f32 %v1918, %v2246
    %v2248 = vpop.f32.mrb[0].mxu0
    %2249 = vmatprep.mubr.f32.mxu0 0.0
    %2250 = vmatmul.mubr.f32.gmra.mrb[0].mxu0 %v2049
    %v2251 = vpop.f32.mrb[0].mxu0
    %v2252 = vadd.f32 %v1923, %v2251
    %v2253 = vpop.f32.mrb[0].mxu0
    %2254 = vmatprep.mubr.f32.mxu0 0.0
    %2255 = vmatmul.mubr.f32.gmra.mrb[0].mxu0 %v2052
    %v2256 = vpop.f32.mrb[0].mxu0
    %v2257 = vadd.f32 %v1928, %v2256
    %v2258 = vpop.f32.mrb[0].mxu0
    %2259 = vmatprep.mubr.f32.mxu0 0.0
    %2260 = vmatmul.mubr.f32.gmra.mrb[0].mxu0 %v2055
    %v2261 = vpop.f32.mrb[0].mxu0
    %v2262 = vadd.f32 %v1933, %v2261
    %v2263 = vpop.f32.mrb[0].mxu0
    %2264 = vmatprep.mubr.f32.mxu0 0.0
    %2265 = vmatmul.mubr.f32.gmra.mrb[0].mxu0 %v2058
    %v2266 = vpop.f32.mrb[0].mxu0
    %v2267 = vadd.f32 %v1938, %v2266
    %v2268 = vpop.f32.mrb[0].mxu0
    %2269 = vmatprep.mubr.f32.mxu0 0.0
    %2270 = vmatmul.mubr.f32.gmra.mrb[0].mxu0 %v2061
    %v2271 = vpop.f32.mrb[0].mxu0
    %v2272 = vadd.f32 %v1943, %v2271
    %v2273 = vpop.f32.mrb[0].mxu0
    %2274 = vmatprep.mubr.f32.mxu0 0.0
    %2275 = vmatmul.mubr.f32.gmra.mrb[0].mxu0 %v2064
    %v2276 = vpop.f32.mrb[0].mxu0
    %v2277 = vadd.f32 %v1948, %v2276
    %v2278 = vpop.f32.mrb[0].mxu0
    %2279 = vmatprep.mubr.f32.mxu0 0.0
    %2280 = vmatmul.mubr.f32.gmra.mrb[0].mxu0 %v2067
    %v2281 = vpop.f32.mrb[0].mxu0
    %v2282 = vadd.f32 %v1953, %v2281
    %v2283 = vpop.f32.mrb[0].mxu0
    %2284 = vmatprep.mubr.f32.mxu0 0.0
    %2285 = vmatmul.mubr.f32.gmra.mrb[0].mxu0 %v2070
    %v2286 = vpop.f32.mrb[0].mxu0
    %v2287 = vadd.f32 %v1958, %v2286
    %v2288 = vpop.f32.mrb[0].mxu0
    %2289 = vmatprep.mubr.f32.mxu0 0.0
    %2290 = vmatmul.mubr.f32.gmra.mrb[0].mxu0 %v2073
    %v2291 = vpop.f32.mrb[0].mxu0
    %v2292 = vadd.f32 %v1963, %v2291
    %v2293 = vpop.f32.mrb[0].mxu0
    %2294 = vmatprep.mubr.f32.mxu0 0.0
    %2295 = vmatmul.mubr.f32.gmra.mrb[0].mxu0 %v2076
    %v2296 = vpop.f32.mrb[0].mxu0
    %v2297 = vadd.f32 %v1968, %v2296
    %v2298 = vpop.f32.mrb[0].mxu0
    %2299 = vmatprep.mubr.f32.mxu0 0.0
    %2300 = vmatmul.mubr.f32.gmra.mrb[0].mxu0 %v2079
    %v2301 = vpop.f32.mrb[0].mxu0
    %v2302 = vadd.f32 %v1973, %v2301
    %v2303 = vpop.f32.mrb[0].mxu0
    %2304 = vmatprep.mubr.f32.mxu0 0.0
    %2305 = vmatmul.mubr.f32.gmra.mrb[0].mxu0 %v2082
    %v2306 = vpop.f32.mrb[0].mxu0
    %v2307 = vadd.f32 %v1978, %v2306
    %v2308 = vpop.f32.mrb[0].mxu0
    %2309 = vmatprep.mubr.f32.mxu0 0.0
    %2310 = vmatmul.mubr.f32.gmra.mrb[0].mxu0 %v2085
    %v2311 = vpop.f32.mrb[0].mxu0
    %v2312 = vadd.f32 %v1983, %v2311
    %v2313 = vpop.f32.mrb[0].mxu0
    %2314 = vmatprep.mubr.f32.mxu0 0.0
    %2315 = vmatmul.mubr.f32.gmra.mrb[0].mxu0 %v2088
    %v2316 = vpop.f32.mrb[0].mxu0
    %v2317 = vadd.f32 %v1988, %v2316
    %v2318 = vpop.f32.mrb[0].mxu0
    %2319 = vdwg.mxu0
    %v2320 = vld [vmem:[#allocation12] sm:$0xff]
    %v2321 = vld [vmem:[#allocation12 + $0x8] sm:$0xff]
    %v2322 = vld [vmem:[#allocation12 + $0x10] sm:$0xff]
    %v2323 = vld [vmem:[#allocation12 + $0x18] sm:$0xff]
    %v2324 = vld [vmem:[#allocation12 + $0x20] sm:$0xff]
    %v2325 = vld [vmem:[#allocation12 + $0x28] sm:$0xff]
    %v2326 = vld [vmem:[#allocation12 + $0x30] sm:$0xff]
    %v2327 = vld [vmem:[#allocation12 + $0x38] sm:$0xff]
    %v2328 = vld [vmem:[#allocation12 + $0x40] sm:$0xff]
    %v2329 = vld [vmem:[#allocation12 + $0x48] sm:$0xff]
    %v2330 = vld [vmem:[#allocation12 + $0x50] sm:$0xff]
    %v2331 = vld [vmem:[#allocation12 + $0x58] sm:$0xff]
    %v2332 = vld [vmem:[#allocation12 + $0x60] sm:$0xff]
    %v2333 = vld [vmem:[#allocation12 + $0x68] sm:$0xff]
    %v2334 = vld [vmem:[#allocation12 + $0x70] sm:$0xff]
    %v2335 = vld [vmem:[#allocation12 + $0x78] sm:$0xff]
    %v2336 = vld [vmem:[#allocation12 + $0x80] sm:$0xff]
    %v2337 = vld [vmem:[#allocation12 + $0x88] sm:$0xff]
    %v2338 = vld [vmem:[#allocation12 + $0x90] sm:$0xff]
    %v2339 = vld [vmem:[#allocation12 + $0x98] sm:$0xff]
    %v2340 = vld [vmem:[#allocation12 + $0xa0] sm:$0xff]
    %v2341 = vld [vmem:[#allocation12 + $0xa8] sm:$0xff]
    %v2342 = vld [vmem:[#allocation12 + $0xb0] sm:$0xff]
    %v2343 = vld [vmem:[#allocation12 + $0xb8] sm:$0xff]
    %v2344 = vld [vmem:[#allocation12 + $0xc0] sm:$0xff]
    %v2345 = vld [vmem:[#allocation12 + $0xc8] sm:$0xff]
    %v2346 = vld [vmem:[#allocation12 + $0xd0] sm:$0xff]
    %v2347 = vld [vmem:[#allocation12 + $0xd8] sm:$0xff]
    %v2348 = vld [vmem:[#allocation12 + $0xe0] sm:$0xff]
    %v2349 = vld [vmem:[#allocation12 + $0xe8] sm:$0xff]
    %v2350 = vld [vmem:[#allocation12 + $0xf0] sm:$0xff]
    %v2351 = vld [vmem:[#allocation12 + $0xf8] sm:$0xff]
    %v2352 = vld [vmem:[#allocation12 + $0x100] sm:$0xff]
    %2354 = vset.pattern.permute.xlu0 0
    %2355 = vperm.xlu0 %2354, %v2320
    %v2356 = vpop.permute.xlu0 %2355
    %2359 = vset.pattern.permute.xlu0 0
    %2360 = vperm.xlu0 %2359, %v2321
    %v2361 = vpop.permute.xlu0 %2360
    %2364 = vset.pattern.permute.xlu0 0
    %2365 = vperm.xlu0 %2364, %v2322
    %v2366 = vpop.permute.xlu0 %2365
    %2369 = vset.pattern.permute.xlu0 0
    %2370 = vperm.xlu0 %2369, %v2323
    %v2371 = vpop.permute.xlu0 %2370
    %2374 = vset.pattern.permute.xlu0 0
    %2375 = vperm.xlu0 %2374, %v2324
    %v2376 = vpop.permute.xlu0 %2375
    %2379 = vset.pattern.permute.xlu0 0
    %2380 = vperm.xlu0 %2379, %v2325
    %v2381 = vpop.permute.xlu0 %2380
    %2384 = vset.pattern.permute.xlu0 0
    %2385 = vperm.xlu0 %2384, %v2326
    %v2386 = vpop.permute.xlu0 %2385
    %2389 = vset.pattern.permute.xlu0 0
    %2390 = vperm.xlu0 %2389, %v2327
    %v2391 = vpop.permute.xlu0 %2390
    %2394 = vset.pattern.permute.xlu0 0
    %2395 = vperm.xlu0 %2394, %v2328
    %v2396 = vpop.permute.xlu0 %2395
    %2399 = vset.pattern.permute.xlu0 0
    %2400 = vperm.xlu0 %2399, %v2329
    %v2401 = vpop.permute.xlu0 %2400
    %2404 = vset.pattern.permute.xlu0 0
    %2405 = vperm.xlu0 %2404, %v2330
    %v2406 = vpop.permute.xlu0 %2405
    %2409 = vset.pattern.permute.xlu0 0
    %2410 = vperm.xlu0 %2409, %v2331
    %v2411 = vpop.permute.xlu0 %2410
    %2414 = vset.pattern.permute.xlu0 0
    %2415 = vperm.xlu0 %2414, %v2332
    %v2416 = vpop.permute.xlu0 %2415
    %2419 = vset.pattern.permute.xlu0 0
    %2420 = vperm.xlu0 %2419, %v2333
    %v2421 = vpop.permute.xlu0 %2420
    %2424 = vset.pattern.permute.xlu0 0
    %2425 = vperm.xlu0 %2424, %v2334
    %v2426 = vpop.permute.xlu0 %2425
    %2429 = vset.pattern.permute.xlu0 0
    %2430 = vperm.xlu0 %2429, %v2335
    %v2431 = vpop.permute.xlu0 %2430
    %2434 = vset.pattern.permute.xlu0 0
    %2435 = vperm.xlu0 %2434, %v2336
    %v2436 = vpop.permute.xlu0 %2435
    %2439 = vset.pattern.permute.xlu0 0
    %2440 = vperm.xlu0 %2439, %v2337
    %v2441 = vpop.permute.xlu0 %2440
    %2444 = vset.pattern.permute.xlu0 0
    %2445 = vperm.xlu0 %2444, %v2338
    %v2446 = vpop.permute.xlu0 %2445
    %2449 = vset.pattern.permute.xlu0 0
    %2450 = vperm.xlu0 %2449, %v2339
    %v2451 = vpop.permute.xlu0 %2450
    %2454 = vset.pattern.permute.xlu0 0
    %2455 = vperm.xlu0 %2454, %v2340
    %v2456 = vpop.permute.xlu0 %2455
    %2459 = vset.pattern.permute.xlu0 0
    %2460 = vperm.xlu0 %2459, %v2341
    %v2461 = vpop.permute.xlu0 %2460
    %2464 = vset.pattern.permute.xlu0 0
    %2465 = vperm.xlu0 %2464, %v2342
    %v2466 = vpop.permute.xlu0 %2465
    %2469 = vset.pattern.permute.xlu0 0
    %2470 = vperm.xlu0 %2469, %v2343
    %v2471 = vpop.permute.xlu0 %2470
    %2474 = vset.pattern.permute.xlu0 0
    %2475 = vperm.xlu0 %2474, %v2344
    %v2476 = vpop.permute.xlu0 %2475
    %2479 = vset.pattern.permute.xlu0 0
    %2480 = vperm.xlu0 %2479, %v2345
    %v2481 = vpop.permute.xlu0 %2480
    %2484 = vset.pattern.permute.xlu0 0
    %2485 = vperm.xlu0 %2484, %v2346
    %v2486 = vpop.permute.xlu0 %2485
    %2489 = vset.pattern.permute.xlu0 0
    %2490 = vperm.xlu0 %2489, %v2347
    %v2491 = vpop.permute.xlu0 %2490
    %2494 = vset.pattern.permute.xlu0 0
    %2495 = vperm.xlu0 %2494, %v2348
    %v2496 = vpop.permute.xlu0 %2495
    %2499 = vset.pattern.permute.xlu0 0
    %2500 = vperm.xlu0 %2499, %v2349
    %v2501 = vpop.permute.xlu0 %2500
    %2504 = vset.pattern.permute.xlu0 0
    %2505 = vperm.xlu0 %2504, %v2350
    %v2506 = vpop.permute.xlu0 %2505
    %2509 = vset.pattern.permute.xlu0 0
    %2510 = vperm.xlu0 %2509, %v2351
    %v2511 = vpop.permute.xlu0 %2510
    %2514 = vset.pattern.permute.xlu0 0
    %2515 = vperm.xlu0 %2514, %v2352
    %v2516 = vpop.permute.xlu0 %2515
    %v2518 = vadd.f32 %v2157, %v2356
    %v2519 = vadd.f32 %v2162, %v2361
    %v2520 = vadd.f32 %v2167, %v2366
    %v2521 = vadd.f32 %v2172, %v2371
    %v2522 = vadd.f32 %v2177, %v2376
    %v2523 = vadd.f32 %v2182, %v2381
    %v2524 = vadd.f32 %v2187, %v2386
    %v2525 = vadd.f32 %v2192, %v2391
    %v2526 = vadd.f32 %v2197, %v2396
    %v2527 = vadd.f32 %v2202, %v2401
    %v2528 = vadd.f32 %v2207, %v2406
    %v2529 = vadd.f32 %v2212, %v2411
    %v2530 = vadd.f32 %v2217, %v2416
    %v2531 = vadd.f32 %v2222, %v2421
    %v2532 = vadd.f32 %v2227, %v2426
    %v2533 = vadd.f32 %v2232, %v2431
    %v2534 = vadd.f32 %v2237, %v2436
    %v2535 = vadd.f32 %v2242, %v2441
    %v2536 = vadd.f32 %v2247, %v2446
    %v2537 = vadd.f32 %v2252, %v2451
    %v2538 = vadd.f32 %v2257, %v2456
    %v2539 = vadd.f32 %v2262, %v2461
    %v2540 = vadd.f32 %v2267, %v2466
    %v2541 = vadd.f32 %v2272, %v2471
    %v2542 = vadd.f32 %v2277, %v2476
    %v2543 = vadd.f32 %v2282, %v2481
    %v2544 = vadd.f32 %v2287, %v2486
    %v2545 = vadd.f32 %v2292, %v2491
    %v2546 = vadd.f32 %v2297, %v2496
    %v2547 = vadd.f32 %v2302, %v2501
    %v2548 = vadd.f32 %v2307, %v2506
    %v2549 = vadd.f32 %v2312, %v2511
    %v2550 = vadd.f32 %v2317, %v2516
    %v2551 = vld [vmem:[#allocation15] sm:$0xff]
    %v2552 = vld [vmem:[#allocation15 + $0x8] sm:$0xff]
    %v2553 = vld [vmem:[#allocation15 + $0x10] sm:$0xff]
    %v2554 = vld [vmem:[#allocation15 + $0x18] sm:$0xff]
    %v2555 = vld [vmem:[#allocation15 + $0x20] sm:$0xff]
    %vm2556 = vcmask 326656
    %v2558 = vsel %vm2556, %v2518, 0
    %v2561 = vsel %vm2556, %v2519, 0
    %v2564 = vsel %vm2556, %v2520, 0
    %v2567 = vsel %vm2556, %v2521, 0
    %v2570 = vsel %vm2556, %v2522, 0
    %v2573 = vsel %vm2556, %v2523, 0
    %v2576 = vsel %vm2556, %v2524, 0
    %v2579 = vsel %vm2556, %v2525, 0
    %v2582 = vsel %vm2556, %v2526, 0
    %v2585 = vsel %vm2556, %v2527, 0
    %v2588 = vsel %vm2556, %v2528, 0
    %v2591 = vsel %vm2556, %v2529, 0
    %v2594 = vsel %vm2556, %v2530, 0
    %v2597 = vsel %vm2556, %v2531, 0
    %v2600 = vsel %vm2556, %v2532, 0
    %v2603 = vsel %vm2556, %v2533, 0
    %v2606 = vsel %vm2556, %v2534, 0
    %v2609 = vsel %vm2556, %v2535, 0
    %v2612 = vsel %vm2556, %v2536, 0
    %v2615 = vsel %vm2556, %v2537, 0
    %v2618 = vsel %vm2556, %v2538, 0
    %v2621 = vsel %vm2556, %v2539, 0
    %v2624 = vsel %vm2556, %v2540, 0
    %v2627 = vsel %vm2556, %v2541, 0
    %v2630 = vsel %vm2556, %v2542, 0
    %v2633 = vsel %vm2556, %v2543, 0
    %v2636 = vsel %vm2556, %v2544, 0
    %v2639 = vsel %vm2556, %v2545, 0
    %v2642 = vsel %vm2556, %v2546, 0
    %v2645 = vsel %vm2556, %v2547, 0
    %v2648 = vsel %vm2556, %v2548, 0
    %v2651 = vsel %vm2556, %v2549, 0
    %v2654 = vsel %vm2556, %v2550, 0
    %2656 = vmatprep.subr.mxu0 0.0
    %2657 = vmatpush1.msra.mxu0 %v2551
    %2658 = vmatprep.subr.mxu0 0.0
    %2659 = vmatpush1.msra.mxu0 %v2552
    %2660 = vmatprep.subr.mxu0 0.0
    %2661 = vmatpush1.msra.mxu0 %v2553
    %2662 = vmatprep.subr.mxu0 0.0
    %2663 = vmatpush1.msra.mxu0 %v2554
    %2664 = vmatprep.subr.mxu0 0.0
    %2665 = vmatpush1.msra.mxu0 %v2555
    %2666 = vmatprep.subr.mxu0 0.0
    %2667 = vmatpush1.msra.mxu0 0.0
    %2668 = vmatprep.subr.mxu0 0.0
    %2669 = vmatpush1.msra.mxu0 0.0
    %2670 = vmatprep.subr.mxu0 0.0
    %2671 = vmatpush1.msra.mxu0 0.0
    %2672 = vmatprep.subr.mxu0 0.0
    %2673 = vmatpush1.msra.mxu0 0.0
    %2674 = vmatprep.subr.mxu0 0.0
    %2675 = vmatpush1.msra.mxu0 0.0
    %2676 = vmatprep.subr.mxu0 0.0
    %2677 = vmatpush1.msra.mxu0 0.0
    %2678 = vmatprep.subr.mxu0 0.0
    %2679 = vmatpush1.msra.mxu0 0.0
    %2680 = vmatprep.subr.mxu0 0.0
    %2681 = vmatpush1.msra.mxu0 0.0
    %2682 = vmatprep.subr.mxu0 0.0
    %2683 = vmatpush1.msra.mxu0 0.0
    %2684 = vmatprep.subr.mxu0 0.0
    %2685 = vmatpush1.msra.mxu0 0.0
    %2686 = vmatprep.subr.mxu0 0.0
    %2687 = vmatpush1.msra.mxu0 0.0
    %2688 = vmatprep.subr.mxu0 0.0
    %2689 = vmatpush1.msra.mxu0 0.0
    %2690 = vmatprep.subr.mxu0 0.0
    %2691 = vmatpush1.msra.mxu0 0.0
    %2692 = vmatprep.subr.mxu0 0.0
    %2693 = vmatpush1.msra.mxu0 0.0
    %2694 = vmatprep.subr.mxu0 0.0
    %2695 = vmatpush1.msra.mxu0 0.0
    %2696 = vmatprep.subr.mxu0 0.0
    %2697 = vmatpush1.msra.mxu0 0.0
    %2698 = vmatprep.subr.mxu0 0.0
    %2699 = vmatpush1.msra.mxu0 0.0
    %2700 = vmatprep.subr.mxu0 0.0
    %2701 = vmatpush1.msra.mxu0 0.0
    %2702 = vmatprep.subr.mxu0 0.0
    %2703 = vmatpush1.msra.mxu0 0.0
    %2704 = vmatprep.subr.mxu0 0.0
    %2705 = vmatpush1.msra.mxu0 0.0
    %2706 = vmatprep.subr.mxu0 0.0
    %2707 = vmatpush1.msra.mxu0 0.0
    %2708 = vmatprep.subr.mxu0 0.0
    %2709 = vmatpush1.msra.mxu0 0.0
    %2710 = vmatprep.subr.mxu0 0.0
    %2711 = vmatpush1.msra.mxu0 0.0
    %2712 = vmatprep.subr.mxu0 0.0
    %2713 = vmatpush1.msra.mxu0 0.0
    %2714 = vmatprep.subr.mxu0 0.0
    %2715 = vmatpush1.msra.mxu0 0.0
    %2716 = vmatprep.subr.mxu0 0.0
    %2717 = vmatpush1.msra.mxu0 0.0
    %2718 = vmatprep.subr.mxu0 0.0
    %2719 = vmatpush1.msra.mxu0 0.0
    %2720 = vmatprep.mubr.f32.mxu0 0.0
    %2721 = vmatmul.mubr.f32.gmra.mrb[0].mxu0 %v2558
    %v2722 = vpop.f32.mrb[0].mxu0
    %v2723 = vadd.f32 0.0, %v2722
    %v2724 = vpop.f32.mrb[0].mxu0
    %2725 = vmatprep.mubr.f32.mxu0 0.0
    %2726 = vmatmul.mubr.f32.gmra.mrb[0].mxu0 %v2561
    %v2727 = vpop.f32.mrb[0].mxu0
    %v2728 = vadd.f32 0.0, %v2727
    %v2729 = vpop.f32.mrb[0].mxu0
    %2730 = vmatprep.mubr.f32.mxu0 0.0
    %2731 = vmatmul.mubr.f32.gmra.mrb[0].mxu0 %v2564
    %v2732 = vpop.f32.mrb[0].mxu0
    %v2733 = vadd.f32 0.0, %v2732
    %v2734 = vpop.f32.mrb[0].mxu0
    %2735 = vmatprep.mubr.f32.mxu0 0.0
    %2736 = vmatmul.mubr.f32.gmra.mrb[0].mxu0 %v2567
    %v2737 = vpop.f32.mrb[0].mxu0
    %v2738 = vadd.f32 0.0, %v2737
    %v2739 = vpop.f32.mrb[0].mxu0
    %2740 = vmatprep.mubr.f32.mxu0 0.0
    %2741 = vmatmul.mubr.f32.gmra.mrb[0].mxu0 %v2570
    %v2742 = vpop.f32.mrb[0].mxu0
    %v2743 = vadd.f32 0.0, %v2742
    %v2744 = vpop.f32.mrb[0].mxu0
    %2745 = vmatprep.mubr.f32.mxu0 0.0
    %2746 = vmatmul.mubr.f32.gmra.mrb[0].mxu0 %v2573
    %v2747 = vpop.f32.mrb[0].mxu0
    %v2748 = vadd.f32 0.0, %v2747
    %v2749 = vpop.f32.mrb[0].mxu0
    %2750 = vmatprep.mubr.f32.mxu0 0.0
    %2751 = vmatmul.mubr.f32.gmra.mrb[0].mxu0 %v2576
    %v2752 = vpop.f32.mrb[0].mxu0
    %v2753 = vadd.f32 0.0, %v2752
    %v2754 = vpop.f32.mrb[0].mxu0
    %2755 = vmatprep.mubr.f32.mxu0 0.0
    %2756 = vmatmul.mubr.f32.gmra.mrb[0].mxu0 %v2579
    %v2757 = vpop.f32.mrb[0].mxu0
    %v2758 = vadd.f32 0.0, %v2757
    %v2759 = vpop.f32.mrb[0].mxu0
    %2760 = vmatprep.mubr.f32.mxu0 0.0
    %2761 = vmatmul.mubr.f32.gmra.mrb[0].mxu0 %v2582
    %v2762 = vpop.f32.mrb[0].mxu0
    %v2763 = vadd.f32 0.0, %v2762
    %v2764 = vpop.f32.mrb[0].mxu0
    %2765 = vmatprep.mubr.f32.mxu0 0.0
    %2766 = vmatmul.mubr.f32.gmra.mrb[0].mxu0 %v2585
    %v2767 = vpop.f32.mrb[0].mxu0
    %v2768 = vadd.f32 0.0, %v2767
    %v2769 = vpop.f32.mrb[0].mxu0
    %2770 = vmatprep.mubr.f32.mxu0 0.0
    %2771 = vmatmul.mubr.f32.gmra.mrb[0].mxu0 %v2588
    %v2772 = vpop.f32.mrb[0].mxu0
    %v2773 = vadd.f32 0.0, %v2772
    %v2774 = vpop.f32.mrb[0].mxu0
    %2775 = vmatprep.mubr.f32.mxu0 0.0
    %2776 = vmatmul.mubr.f32.gmra.mrb[0].mxu0 %v2591
    %v2777 = vpop.f32.mrb[0].mxu0
    %v2778 = vadd.f32 0.0, %v2777
    %v2779 = vpop.f32.mrb[0].mxu0
    %2780 = vmatprep.mubr.f32.mxu0 0.0
    %2781 = vmatmul.mubr.f32.gmra.mrb[0].mxu0 %v2594
    %v2782 = vpop.f32.mrb[0].mxu0
    %v2783 = vadd.f32 0.0, %v2782
    %v2784 = vpop.f32.mrb[0].mxu0
    %2785 = vmatprep.mubr.f32.mxu0 0.0
    %2786 = vmatmul.mubr.f32.gmra.mrb[0].mxu0 %v2597
    %v2787 = vpop.f32.mrb[0].mxu0
    %v2788 = vadd.f32 0.0, %v2787
    %v2789 = vpop.f32.mrb[0].mxu0
    %2790 = vmatprep.mubr.f32.mxu0 0.0
    %2791 = vmatmul.mubr.f32.gmra.mrb[0].mxu0 %v2600
    %v2792 = vpop.f32.mrb[0].mxu0
    %v2793 = vadd.f32 0.0, %v2792
    %v2794 = vpop.f32.mrb[0].mxu0
    %2795 = vmatprep.mubr.f32.mxu0 0.0
    %2796 = vmatmul.mubr.f32.gmra.mrb[0].mxu0 %v2603
    %v2797 = vpop.f32.mrb[0].mxu0
    %v2798 = vadd.f32 0.0, %v2797
    %v2799 = vpop.f32.mrb[0].mxu0
    %2800 = vmatprep.mubr.f32.mxu0 0.0
    %2801 = vmatmul.mubr.f32.gmra.mrb[0].mxu0 %v2606
    %v2802 = vpop.f32.mrb[0].mxu0
    %v2803 = vadd.f32 0.0, %v2802
    %v2804 = vpop.f32.mrb[0].mxu0
    %2805 = vmatprep.mubr.f32.mxu0 0.0
    %2806 = vmatmul.mubr.f32.gmra.mrb[0].mxu0 %v2609
    %v2807 = vpop.f32.mrb[0].mxu0
    %v2808 = vadd.f32 0.0, %v2807
    %v2809 = vpop.f32.mrb[0].mxu0
    %2810 = vmatprep.mubr.f32.mxu0 0.0
    %2811 = vmatmul.mubr.f32.gmra.mrb[0].mxu0 %v2612
    %v2812 = vpop.f32.mrb[0].mxu0
    %v2813 = vadd.f32 0.0, %v2812
    %v2814 = vpop.f32.mrb[0].mxu0
    %2815 = vmatprep.mubr.f32.mxu0 0.0
    %2816 = vmatmul.mubr.f32.gmra.mrb[0].mxu0 %v2615
    %v2817 = vpop.f32.mrb[0].mxu0
    %v2818 = vadd.f32 0.0, %v2817
    %v2819 = vpop.f32.mrb[0].mxu0
    %2820 = vmatprep.mubr.f32.mxu0 0.0
    %2821 = vmatmul.mubr.f32.gmra.mrb[0].mxu0 %v2618
    %v2822 = vpop.f32.mrb[0].mxu0
    %v2823 = vadd.f32 0.0, %v2822
    %v2824 = vpop.f32.mrb[0].mxu0
    %2825 = vmatprep.mubr.f32.mxu0 0.0
    %2826 = vmatmul.mubr.f32.gmra.mrb[0].mxu0 %v2621
    %v2827 = vpop.f32.mrb[0].mxu0
    %v2828 = vadd.f32 0.0, %v2827
    %v2829 = vpop.f32.mrb[0].mxu0
    %2830 = vmatprep.mubr.f32.mxu0 0.0
    %2831 = vmatmul.mubr.f32.gmra.mrb[0].mxu0 %v2624
    %v2832 = vpop.f32.mrb[0].mxu0
    %v2833 = vadd.f32 0.0, %v2832
    %v2834 = vpop.f32.mrb[0].mxu0
    %2835 = vmatprep.mubr.f32.mxu0 0.0
    %2836 = vmatmul.mubr.f32.gmra.mrb[0].mxu0 %v2627
    %v2837 = vpop.f32.mrb[0].mxu0
    %v2838 = vadd.f32 0.0, %v2837
    %v2839 = vpop.f32.mrb[0].mxu0
    %2840 = vmatprep.mubr.f32.mxu0 0.0
    %2841 = vmatmul.mubr.f32.gmra.mrb[0].mxu0 %v2630
    %v2842 = vpop.f32.mrb[0].mxu0
    %v2843 = vadd.f32 0.0, %v2842
    %v2844 = vpop.f32.mrb[0].mxu0
    %2845 = vmatprep.mubr.f32.mxu0 0.0
    %2846 = vmatmul.mubr.f32.gmra.mrb[0].mxu0 %v2633
    %v2847 = vpop.f32.mrb[0].mxu0
    %v2848 = vadd.f32 0.0, %v2847
    %v2849 = vpop.f32.mrb[0].mxu0
    %2850 = vmatprep.mubr.f32.mxu0 0.0
    %2851 = vmatmul.mubr.f32.gmra.mrb[0].mxu0 %v2636
    %v2852 = vpop.f32.mrb[0].mxu0
    %v2853 = vadd.f32 0.0, %v2852
    %v2854 = vpop.f32.mrb[0].mxu0
    %2855 = vmatprep.mubr.f32.mxu0 0.0
    %2856 = vmatmul.mubr.f32.gmra.mrb[0].mxu0 %v2639
    %v2857 = vpop.f32.mrb[0].mxu0
    %v2858 = vadd.f32 0.0, %v2857
    %v2859 = vpop.f32.mrb[0].mxu0
    %2860 = vmatprep.mubr.f32.mxu0 0.0
    %2861 = vmatmul.mubr.f32.gmra.mrb[0].mxu0 %v2642
    %v2862 = vpop.f32.mrb[0].mxu0
    %v2863 = vadd.f32 0.0, %v2862
    %v2864 = vpop.f32.mrb[0].mxu0
    %2865 = vmatprep.mubr.f32.mxu0 0.0
    %2866 = vmatmul.mubr.f32.gmra.mrb[0].mxu0 %v2645
    %v2867 = vpop.f32.mrb[0].mxu0
    %v2868 = vadd.f32 0.0, %v2867
    %v2869 = vpop.f32.mrb[0].mxu0
    %2870 = vmatprep.mubr.f32.mxu0 0.0
    %2871 = vmatmul.mubr.f32.gmra.mrb[0].mxu0 %v2648
    %v2872 = vpop.f32.mrb[0].mxu0
    %v2873 = vadd.f32 0.0, %v2872
    %v2874 = vpop.f32.mrb[0].mxu0
    %2875 = vmatprep.mubr.f32.mxu0 0.0
    %2876 = vmatmul.mubr.f32.gmra.mrb[0].mxu0 %v2651
    %v2877 = vpop.f32.mrb[0].mxu0
    %v2878 = vadd.f32 0.0, %v2877
    %v2879 = vpop.f32.mrb[0].mxu0
    %2880 = vmatprep.mubr.f32.mxu0 0.0
    %2881 = vmatmul.mubr.f32.gmra.mrb[0].mxu0 %v2654
    %v2882 = vpop.f32.mrb[0].mxu0
    %v2883 = vadd.f32 0.0, %v2882
    %v2884 = vpop.f32.mrb[0].mxu0
    %2885 = vdwg.mxu0
    %v2886 = vld [vmem:[#allocation13] sm:$0xff]
    %v2887 = vld [vmem:[#allocation13 + $0x8] sm:$0xff]
    %v2888 = vld [vmem:[#allocation13 + $0x10] sm:$0xff]
    %v2889 = vld [vmem:[#allocation13 + $0x18] sm:$0xff]
    %v2890 = vld [vmem:[#allocation13 + $0x20] sm:$0xff]
    %v2891 = vld [vmem:[#allocation13 + $0x28] sm:$0xff]
    %v2892 = vld [vmem:[#allocation13 + $0x30] sm:$0xff]
    %v2893 = vld [vmem:[#allocation13 + $0x38] sm:$0xff]
    %v2894 = vld [vmem:[#allocation13 + $0x40] sm:$0xff]
    %v2895 = vld [vmem:[#allocation13 + $0x48] sm:$0xff]
    %v2896 = vld [vmem:[#allocation13 + $0x50] sm:$0xff]
    %v2897 = vld [vmem:[#allocation13 + $0x58] sm:$0xff]
    %v2898 = vld [vmem:[#allocation13 + $0x60] sm:$0xff]
    %v2899 = vld [vmem:[#allocation13 + $0x68] sm:$0xff]
    %v2900 = vld [vmem:[#allocation13 + $0x70] sm:$0xff]
    %v2901 = vld [vmem:[#allocation13 + $0x78] sm:$0xff]
    %v2902 = vld [vmem:[#allocation13 + $0x80] sm:$0xff]
    %v2903 = vld [vmem:[#allocation13 + $0x88] sm:$0xff]
    %v2904 = vld [vmem:[#allocation13 + $0x90] sm:$0xff]
    %v2905 = vld [vmem:[#allocation13 + $0x98] sm:$0xff]
    %v2906 = vld [vmem:[#allocation13 + $0xa0] sm:$0xff]
    %v2907 = vld [vmem:[#allocation13 + $0xa8] sm:$0xff]
    %v2908 = vld [vmem:[#allocation13 + $0xb0] sm:$0xff]
    %v2909 = vld [vmem:[#allocation13 + $0xb8] sm:$0xff]
    %v2910 = vld [vmem:[#allocation13 + $0xc0] sm:$0xff]
    %v2911 = vld [vmem:[#allocation13 + $0xc8] sm:$0xff]
    %v2912 = vld [vmem:[#allocation13 + $0xd0] sm:$0xff]
    %v2913 = vld [vmem:[#allocation13 + $0xd8] sm:$0xff]
    %v2914 = vld [vmem:[#allocation13 + $0xe0] sm:$0xff]
    %v2915 = vld [vmem:[#allocation13 + $0xe8] sm:$0xff]
    %v2916 = vld [vmem:[#allocation13 + $0xf0] sm:$0xff]
    %v2917 = vld [vmem:[#allocation13 + $0xf8] sm:$0xff]
    %v2918 = vld [vmem:[#allocation13 + $0x100] sm:$0xff]
    %v2919 = vld [vmem:[#allocation13 + $0x108] sm:$0xff]
    %v2920 = vld [vmem:[#allocation13 + $0x110] sm:$0xff]
    %v2921 = vld [vmem:[#allocation13 + $0x118] sm:$0xff]
    %v2922 = vld [vmem:[#allocation13 + $0x120] sm:$0xff]
    %v2923 = vld [vmem:[#allocation13 + $0x128] sm:$0xff]
    %v2924 = vld [vmem:[#allocation13 + $0x130] sm:$0xff]
    %v2925 = vld [vmem:[#allocation13 + $0x138] sm:$0xff]
    %v2926 = vld [vmem:[#allocation13 + $0x140] sm:$0xff]
    %v2927 = vld [vmem:[#allocation13 + $0x148] sm:$0xff]
    %v2928 = vld [vmem:[#allocation13 + $0x150] sm:$0xff]
    %v2929 = vld [vmem:[#allocation13 + $0x158] sm:$0xff]
    %v2930 = vld [vmem:[#allocation13 + $0x160] sm:$0xff]
    %v2931 = vld [vmem:[#allocation13 + $0x168] sm:$0xff]
    %v2932 = vld [vmem:[#allocation13 + $0x170] sm:$0xff]
    %v2933 = vld [vmem:[#allocation13 + $0x178] sm:$0xff]
    %v2934 = vld [vmem:[#allocation13 + $0x180] sm:$0xff]
    %v2935 = vld [vmem:[#allocation13 + $0x188] sm:$0xff]
    %v2936 = vld [vmem:[#allocation13 + $0x190] sm:$0xff]
    %2942 = vrot.lane.b32.xlu0 %v2551, 104
    %v2943 = vpop.permute.xlu0 %2942
    %2944 = vrot.lane.b32.xlu0 %v2552, 104
    %v2945 = vpop.permute.xlu0 %2944
    %2946 = vrot.lane.b32.xlu0 %v2553, 104
    %v2947 = vpop.permute.xlu0 %2946
    %2948 = vrot.lane.b32.xlu0 %v2554, 104
    %v2949 = vpop.permute.xlu0 %2948
    %2950 = vrot.lane.b32.xlu0 %v2555, 104
    %v2951 = vpop.permute.xlu0 %2950
    %2957 = vmatprep.subr.mxu0 0.0
    %2958 = vmatpush1.msra.mxu0 %v2943
    %2959 = vmatprep.subr.mxu0 0.0
    %2960 = vmatpush1.msra.mxu0 %v2945
    %2961 = vmatprep.subr.mxu0 0.0
    %2962 = vmatpush1.msra.mxu0 %v2947
    %2963 = vmatprep.subr.mxu0 0.0
    %2964 = vmatpush1.msra.mxu0 %v2949
    %2965 = vmatprep.subr.mxu0 0.0
    %2966 = vmatpush1.msra.mxu0 %v2951
    %2967 = vmatprep.subr.mxu0 0.0
    %2968 = vmatpush1.msra.mxu0 0.0
    %2969 = vmatprep.subr.mxu0 0.0
    %2970 = vmatpush1.msra.mxu0 0.0
    %2971 = vmatprep.subr.mxu0 0.0
    %2972 = vmatpush1.msra.mxu0 0.0
    %2973 = vmatprep.subr.mxu0 0.0
    %2974 = vmatpush1.msra.mxu0 0.0
    %2975 = vmatprep.subr.mxu0 0.0
    %2976 = vmatpush1.msra.mxu0 0.0
    %2977 = vmatprep.subr.mxu0 0.0
    %2978 = vmatpush1.msra.mxu0 0.0
    %2979 = vmatprep.subr.mxu0 0.0
    %2980 = vmatpush1.msra.mxu0 0.0
    %2981 = vmatprep.subr.mxu0 0.0
    %2982 = vmatpush1.msra.mxu0 0.0
    %2983 = vmatprep.subr.mxu0 0.0
    %2984 = vmatpush1.msra.mxu0 0.0
    %2985 = vmatprep.subr.mxu0 0.0
    %2986 = vmatpush1.msra.mxu0 0.0
    %2987 = vmatprep.subr.mxu0 0.0
    %2988 = vmatpush1.msra.mxu0 0.0
    %2989 = vmatprep.subr.mxu0 0.0
    %2990 = vmatpush1.msra.mxu0 0.0
    %2991 = vmatprep.subr.mxu0 0.0
    %2992 = vmatpush1.msra.mxu0 0.0
    %2993 = vmatprep.subr.mxu0 0.0
    %2994 = vmatpush1.msra.mxu0 0.0
    %2995 = vmatprep.subr.mxu0 0.0
    %2996 = vmatpush1.msra.mxu0 0.0
    %2997 = vmatprep.subr.mxu0 0.0
    %2998 = vmatpush1.msra.mxu0 0.0
    %2999 = vmatprep.subr.mxu0 0.0
    %3000 = vmatpush1.msra.mxu0 0.0
    %3001 = vmatprep.subr.mxu0 0.0
    %3002 = vmatpush1.msra.mxu0 0.0
    %3003 = vmatprep.subr.mxu0 0.0
    %3004 = vmatpush1.msra.mxu0 0.0
    %3005 = vmatprep.subr.mxu0 0.0
    %3006 = vmatpush1.msra.mxu0 0.0
    %3007 = vmatprep.subr.mxu0 0.0
    %3008 = vmatpush1.msra.mxu0 0.0
    %3009 = vmatprep.subr.mxu0 0.0
    %3010 = vmatpush1.msra.mxu0 0.0
    %3011 = vmatprep.subr.mxu0 0.0
    %3012 = vmatpush1.msra.mxu0 0.0
    %3013 = vmatprep.subr.mxu0 0.0
    %3014 = vmatpush1.msra.mxu0 0.0
    %3015 = vmatprep.subr.mxu0 0.0
    %3016 = vmatpush1.msra.mxu0 0.0
    %3017 = vmatprep.subr.mxu0 0.0
    %3018 = vmatpush1.msra.mxu0 0.0
    %3019 = vmatprep.subr.mxu0 0.0
    %3020 = vmatpush1.msra.mxu0 0.0
    %3021 = vmatprep.mubr.f32.mxu0 0.0
    %3022 = vmatmul.mubr.f32.gmra.mrb[0].mxu0 %v2558
    %v3023 = vpop.f32.mrb[0].mxu0
    %v3024 = vadd.f32 0.0, %v3023
    %v3025 = vpop.f32.mrb[0].mxu0
    %3026 = vmatprep.mubr.f32.mxu0 0.0
    %3027 = vmatmul.mubr.f32.gmra.mrb[0].mxu0 %v2561
    %v3028 = vpop.f32.mrb[0].mxu0
    %v3029 = vadd.f32 0.0, %v3028
    %v3030 = vpop.f32.mrb[0].mxu0
    %3031 = vmatprep.mubr.f32.mxu0 0.0
    %3032 = vmatmul.mubr.f32.gmra.mrb[0].mxu0 %v2564
    %v3033 = vpop.f32.mrb[0].mxu0
    %v3034 = vadd.f32 0.0, %v3033
    %v3035 = vpop.f32.mrb[0].mxu0
    %3036 = vmatprep.mubr.f32.mxu0 0.0
    %3037 = vmatmul.mubr.f32.gmra.mrb[0].mxu0 %v2567
    %v3038 = vpop.f32.mrb[0].mxu0
    %v3039 = vadd.f32 0.0, %v3038
    %v3040 = vpop.f32.mrb[0].mxu0
    %3041 = vmatprep.mubr.f32.mxu0 0.0
    %3042 = vmatmul.mubr.f32.gmra.mrb[0].mxu0 %v2570
    %v3043 = vpop.f32.mrb[0].mxu0
    %v3044 = vadd.f32 0.0, %v3043
    %v3045 = vpop.f32.mrb[0].mxu0
    %3046 = vmatprep.mubr.f32.mxu0 0.0
    %3047 = vmatmul.mubr.f32.gmra.mrb[0].mxu0 %v2573
    %v3048 = vpop.f32.mrb[0].mxu0
    %v3049 = vadd.f32 0.0, %v3048
    %v3050 = vpop.f32.mrb[0].mxu0
    %3051 = vmatprep.mubr.f32.mxu0 0.0
    %3052 = vmatmul.mubr.f32.gmra.mrb[0].mxu0 %v2576
    %v3053 = vpop.f32.mrb[0].mxu0
    %v3054 = vadd.f32 0.0, %v3053
    %v3055 = vpop.f32.mrb[0].mxu0
    %3056 = vmatprep.mubr.f32.mxu0 0.0
    %3057 = vmatmul.mubr.f32.gmra.mrb[0].mxu0 %v2579
    %v3058 = vpop.f32.mrb[0].mxu0
    %v3059 = vadd.f32 0.0, %v3058
    %v3060 = vpop.f32.mrb[0].mxu0
    %3061 = vmatprep.mubr.f32.mxu0 0.0
    %3062 = vmatmul.mubr.f32.gmra.mrb[0].mxu0 %v2582
    %v3063 = vpop.f32.mrb[0].mxu0
    %v3064 = vadd.f32 0.0, %v3063
    %v3065 = vpop.f32.mrb[0].mxu0
    %3066 = vmatprep.mubr.f32.mxu0 0.0
    %3067 = vmatmul.mubr.f32.gmra.mrb[0].mxu0 %v2585
    %v3068 = vpop.f32.mrb[0].mxu0
    %v3069 = vadd.f32 0.0, %v3068
    %v3070 = vpop.f32.mrb[0].mxu0
    %3071 = vmatprep.mubr.f32.mxu0 0.0
    %3072 = vmatmul.mubr.f32.gmra.mrb[0].mxu0 %v2588
    %v3073 = vpop.f32.mrb[0].mxu0
    %v3074 = vadd.f32 0.0, %v3073
    %v3075 = vpop.f32.mrb[0].mxu0
    %3076 = vmatprep.mubr.f32.mxu0 0.0
    %3077 = vmatmul.mubr.f32.gmra.mrb[0].mxu0 %v2591
    %v3078 = vpop.f32.mrb[0].mxu0
    %v3079 = vadd.f32 0.0, %v3078
    %v3080 = vpop.f32.mrb[0].mxu0
    %3081 = vmatprep.mubr.f32.mxu0 0.0
    %3082 = vmatmul.mubr.f32.gmra.mrb[0].mxu0 %v2594
    %v3083 = vpop.f32.mrb[0].mxu0
    %v3084 = vadd.f32 0.0, %v3083
    %v3085 = vpop.f32.mrb[0].mxu0
    %3086 = vmatprep.mubr.f32.mxu0 0.0
    %3087 = vmatmul.mubr.f32.gmra.mrb[0].mxu0 %v2597
    %v3088 = vpop.f32.mrb[0].mxu0
    %v3089 = vadd.f32 0.0, %v3088
    %v3090 = vpop.f32.mrb[0].mxu0
    %3091 = vmatprep.mubr.f32.mxu0 0.0
    %3092 = vmatmul.mubr.f32.gmra.mrb[0].mxu0 %v2600
    %v3093 = vpop.f32.mrb[0].mxu0
    %v3094 = vadd.f32 0.0, %v3093
    %v3095 = vpop.f32.mrb[0].mxu0
    %3096 = vmatprep.mubr.f32.mxu0 0.0
    %3097 = vmatmul.mubr.f32.gmra.mrb[0].mxu0 %v2603
    %v3098 = vpop.f32.mrb[0].mxu0
    %v3099 = vadd.f32 0.0, %v3098
    %v3100 = vpop.f32.mrb[0].mxu0
    %3101 = vmatprep.mubr.f32.mxu0 0.0
    %3102 = vmatmul.mubr.f32.gmra.mrb[0].mxu0 %v2606
    %v3103 = vpop.f32.mrb[0].mxu0
    %v3104 = vadd.f32 0.0, %v3103
    %v3105 = vpop.f32.mrb[0].mxu0
    %3106 = vmatprep.mubr.f32.mxu0 0.0
    %3107 = vmatmul.mubr.f32.gmra.mrb[0].mxu0 %v2609
    %v3108 = vpop.f32.mrb[0].mxu0
    %v3109 = vadd.f32 0.0, %v3108
    %v3110 = vpop.f32.mrb[0].mxu0
    %3111 = vmatprep.mubr.f32.mxu0 0.0
    %3112 = vmatmul.mubr.f32.gmra.mrb[0].mxu0 %v2612
    %v3113 = vpop.f32.mrb[0].mxu0
    %v3114 = vadd.f32 0.0, %v3113
    %v3115 = vpop.f32.mrb[0].mxu0
    %3116 = vmatprep.mubr.f32.mxu0 0.0
    %3117 = vmatmul.mubr.f32.gmra.mrb[0].mxu0 %v2615
    %v3118 = vpop.f32.mrb[0].mxu0
    %v3119 = vadd.f32 0.0, %v3118
    %v3120 = vpop.f32.mrb[0].mxu0
    %3121 = vmatprep.mubr.f32.mxu0 0.0
    %3122 = vmatmul.mubr.f32.gmra.mrb[0].mxu0 %v2618
    %v3123 = vpop.f32.mrb[0].mxu0
    %v3124 = vadd.f32 0.0, %v3123
    %v3125 = vpop.f32.mrb[0].mxu0
    %3126 = vmatprep.mubr.f32.mxu0 0.0
    %3127 = vmatmul.mubr.f32.gmra.mrb[0].mxu0 %v2621
    %v3128 = vpop.f32.mrb[0].mxu0
    %v3129 = vadd.f32 0.0, %v3128
    %v3130 = vpop.f32.mrb[0].mxu0
    %3131 = vmatprep.mubr.f32.mxu0 0.0
    %3132 = vmatmul.mubr.f32.gmra.mrb[0].mxu0 %v2624
    %v3133 = vpop.f32.mrb[0].mxu0
    %v3134 = vadd.f32 0.0, %v3133
    %v3135 = vpop.f32.mrb[0].mxu0
    %3136 = vmatprep.mubr.f32.mxu0 0.0
    %3137 = vmatmul.mubr.f32.gmra.mrb[0].mxu0 %v2627
    %v3138 = vpop.f32.mrb[0].mxu0
    %v3139 = vadd.f32 0.0, %v3138
    %v3140 = vpop.f32.mrb[0].mxu0
    %3141 = vmatprep.mubr.f32.mxu0 0.0
    %3142 = vmatmul.mubr.f32.gmra.mrb[0].mxu0 %v2630
    %v3143 = vpop.f32.mrb[0].mxu0
    %v3144 = vadd.f32 0.0, %v3143
    %v3145 = vpop.f32.mrb[0].mxu0
    %3146 = vmatprep.mubr.f32.mxu0 0.0
    %3147 = vmatmul.mubr.f32.gmra.mrb[0].mxu0 %v2633
    %v3148 = vpop.f32.mrb[0].mxu0
    %v3149 = vadd.f32 0.0, %v3148
    %v3150 = vpop.f32.mrb[0].mxu0
    %3151 = vmatprep.mubr.f32.mxu0 0.0
    %3152 = vmatmul.mubr.f32.gmra.mrb[0].mxu0 %v2636
    %v3153 = vpop.f32.mrb[0].mxu0
    %v3154 = vadd.f32 0.0, %v3153
    %v3155 = vpop.f32.mrb[0].mxu0
    %3156 = vmatprep.mubr.f32.mxu0 0.0
    %3157 = vmatmul.mubr.f32.gmra.mrb[0].mxu0 %v2639
    %v3158 = vpop.f32.mrb[0].mxu0
    %v3159 = vadd.f32 0.0, %v3158
    %v3160 = vpop.f32.mrb[0].mxu0
    %3161 = vmatprep.mubr.f32.mxu0 0.0
    %3162 = vmatmul.mubr.f32.gmra.mrb[0].mxu0 %v2642
    %v3163 = vpop.f32.mrb[0].mxu0
    %v3164 = vadd.f32 0.0, %v3163
    %v3165 = vpop.f32.mrb[0].mxu0
    %3166 = vmatprep.mubr.f32.mxu0 0.0
    %3167 = vmatmul.mubr.f32.gmra.mrb[0].mxu0 %v2645
    %v3168 = vpop.f32.mrb[0].mxu0
    %v3169 = vadd.f32 0.0, %v3168
    %v3170 = vpop.f32.mrb[0].mxu0
    %3171 = vmatprep.mubr.f32.mxu0 0.0
    %3172 = vmatmul.mubr.f32.gmra.mrb[0].mxu0 %v2648
    %v3173 = vpop.f32.mrb[0].mxu0
    %v3174 = vadd.f32 0.0, %v3173
    %v3175 = vpop.f32.mrb[0].mxu0
    %3176 = vmatprep.mubr.f32.mxu0 0.0
    %3177 = vmatmul.mubr.f32.gmra.mrb[0].mxu0 %v2651
    %v3178 = vpop.f32.mrb[0].mxu0
    %v3179 = vadd.f32 0.0, %v3178
    %v3180 = vpop.f32.mrb[0].mxu0
    %3181 = vmatprep.mubr.f32.mxu0 0.0
    %3182 = vmatmul.mubr.f32.gmra.mrb[0].mxu0 %v2654
    %v3183 = vpop.f32.mrb[0].mxu0
    %v3184 = vadd.f32 0.0, %v3183
    %v3185 = vpop.f32.mrb[0].mxu0
    %3186 = vdwg.mxu0
    %v3187 = vld [vmem:[#allocation13 + $0x198] sm:$0xff]
    %v3188 = vld [vmem:[#allocation13 + $0x1a0] sm:$0xff]
    %v3189 = vld [vmem:[#allocation13 + $0x1a8] sm:$0xff]
    %v3190 = vld [vmem:[#allocation13 + $0x1b0] sm:$0xff]
    %v3191 = vld [vmem:[#allocation13 + $0x1b8] sm:$0xff]
    %v3192 = vld [vmem:[#allocation13 + $0x1c0] sm:$0xff]
    %v3193 = vld [vmem:[#allocation13 + $0x1c8] sm:$0xff]
    %v3194 = vld [vmem:[#allocation13 + $0x1d0] sm:$0xff]
    %v3195 = vld [vmem:[#allocation13 + $0x1d8] sm:$0xff]
    %v3196 = vld [vmem:[#allocation13 + $0x1e0] sm:$0xff]
    %v3197 = vld [vmem:[#allocation13 + $0x1e8] sm:$0xff]
    %v3198 = vld [vmem:[#allocation13 + $0x1f0] sm:$0xff]
    %v3199 = vld [vmem:[#allocation13 + $0x1f8] sm:$0xff]
    %v3200 = vld [vmem:[#allocation13 + $0x200] sm:$0xff]
    %v3201 = vld [vmem:[#allocation13 + $0x208] sm:$0xff]
    %v3202 = vld [vmem:[#allocation13 + $0x210] sm:$0xff]
    %v3203 = vld [vmem:[#allocation13 + $0x218] sm:$0xff]
    %v3204 = vld [vmem:[#allocation13 + $0x220] sm:$0xff]
    %v3205 = vld [vmem:[#allocation13 + $0x228] sm:$0xff]
    %v3206 = vld [vmem:[#allocation13 + $0x230] sm:$0xff]
    %v3207 = vld [vmem:[#allocation13 + $0x238] sm:$0xff]
    %v3208 = vld [vmem:[#allocation13 + $0x240] sm:$0xff]
    %v3209 = vld [vmem:[#allocation13 + $0x248] sm:$0xff]
    %v3210 = vld [vmem:[#allocation13 + $0x250] sm:$0xff]
    %v3211 = vld [vmem:[#allocation13 + $0x258] sm:$0xff]
    %v3212 = vld [vmem:[#allocation13 + $0x260] sm:$0xff]
    %v3213 = vld [vmem:[#allocation13 + $0x268] sm:$0xff]
    %v3214 = vld [vmem:[#allocation13 + $0x270] sm:$0xff]
    %v3215 = vld [vmem:[#allocation13 + $0x278] sm:$0xff]
    %v3216 = vld [vmem:[#allocation13 + $0x280] sm:$0xff]
    %v3217 = vld [vmem:[#allocation13 + $0x288] sm:$0xff]
    %v3218 = vld [vmem:[#allocation13 + $0x290] sm:$0xff]
    %v3219 = vld [vmem:[#allocation13 + $0x298] sm:$0xff]
    %v3220 = vld [vmem:[#allocation13 + $0x2a0] sm:$0xff]
    %v3221 = vld [vmem:[#allocation13 + $0x2a8] sm:$0xff]
    %v3222 = vld [vmem:[#allocation13 + $0x2b0] sm:$0xff]
    %v3223 = vld [vmem:[#allocation13 + $0x2b8] sm:$0xff]
    %v3224 = vld [vmem:[#allocation13 + $0x2c0] sm:$0xff]
    %v3225 = vld [vmem:[#allocation13 + $0x2c8] sm:$0xff]
    %v3226 = vld [vmem:[#allocation13 + $0x2d0] sm:$0xff]
    %v3227 = vld [vmem:[#allocation13 + $0x2d8] sm:$0xff]
    %v3228 = vld [vmem:[#allocation13 + $0x2e0] sm:$0xff]
    %v3229 = vld [vmem:[#allocation13 + $0x2e8] sm:$0xff]
    %v3230 = vld [vmem:[#allocation13 + $0x2f0] sm:$0xff]
    %v3231 = vld [vmem:[#allocation13 + $0x2f8] sm:$0xff]
    %v3232 = vld [vmem:[#allocation13 + $0x300] sm:$0xff]
    %v3233 = vld [vmem:[#allocation13 + $0x308] sm:$0xff]
    %v3234 = vld [vmem:[#allocation13 + $0x310] sm:$0xff]
    %v3235 = vld [vmem:[#allocation13 + $0x318] sm:$0xff]
    %v3236 = vld [vmem:[#allocation13 + $0x320] sm:$0xff]
    %v3237 = vld [vmem:[#allocation13 + $0x328] sm:$0xff]
    %vm3238 = vcmask 64512
    %v3240 = vsel %vm3238, %v3189, 0
    %v3243 = vsel %vm3238, %v3192, 0
    %v3246 = vsel %vm3238, %v3195, 0
    %v3249 = vsel %vm3238, %v3198, 0
    %v3252 = vsel %vm3238, %v3201, 0
    %v3255 = vsel %vm3238, %v3204, 0
    %v3258 = vsel %vm3238, %v3207, 0
    %v3261 = vsel %vm3238, %v3210, 0
    %v3264 = vsel %vm3238, %v3213, 0
    %v3267 = vsel %vm3238, %v3216, 0
    %v3270 = vsel %vm3238, %v3219, 0
    %v3273 = vsel %vm3238, %v3222, 0
    %v3276 = vsel %vm3238, %v3225, 0
    %v3279 = vsel %vm3238, %v3228, 0
    %v3282 = vsel %vm3238, %v3231, 0
    %v3285 = vsel %vm3238, %v3234, 0
    %v3288 = vsel %vm3238, %v3237, 0
    %3290 = vmatprep.subr.mxu0 0.0
    %3291 = vmatpush1.msra.mxu0 %v3024
    %3292 = vmatprep.subr.mxu0 0.0
    %3293 = vmatpush1.msra.mxu0 %v3029
    %3294 = vmatprep.subr.mxu0 0.0
    %3295 = vmatpush1.msra.mxu0 %v3034
    %3296 = vmatprep.subr.mxu0 0.0
    %3297 = vmatpush1.msra.mxu0 %v3039
    %3298 = vmatprep.subr.mxu0 0.0
    %3299 = vmatpush1.msra.mxu0 %v3044
    %3300 = vmatprep.subr.mxu0 0.0
    %3301 = vmatpush1.msra.mxu0 %v3049
    %3302 = vmatprep.subr.mxu0 0.0
    %3303 = vmatpush1.msra.mxu0 %v3054
    %3304 = vmatprep.subr.mxu0 0.0
    %3305 = vmatpush1.msra.mxu0 %v3059
    %3306 = vmatprep.subr.mxu0 0.0
    %3307 = vmatpush1.msra.mxu0 %v3064
    %3308 = vmatprep.subr.mxu0 0.0
    %3309 = vmatpush1.msra.mxu0 %v3069
    %3310 = vmatprep.subr.mxu0 0.0
    %3311 = vmatpush1.msra.mxu0 %v3074
    %3312 = vmatprep.subr.mxu0 0.0
    %3313 = vmatpush1.msra.mxu0 %v3079
    %3314 = vmatprep.subr.mxu0 0.0
    %3315 = vmatpush1.msra.mxu0 %v3084
    %3316 = vmatprep.subr.mxu0 0.0
    %3317 = vmatpush1.msra.mxu0 %v3089
    %3318 = vmatprep.subr.mxu0 0.0
    %3319 = vmatpush1.msra.mxu0 %v3094
    %3320 = vmatprep.subr.mxu0 0.0
    %3321 = vmatpush1.msra.mxu0 %v3099
    %3322 = vmatprep.subr.mxu0 0.0
    %3323 = vmatpush1.msra.mxu0 %v3104
    %3324 = vmatprep.subr.mxu0 0.0
    %3325 = vmatpush1.msra.mxu0 %v3109
    %3326 = vmatprep.subr.mxu0 0.0
    %3327 = vmatpush1.msra.mxu0 %v3114
    %3328 = vmatprep.subr.mxu0 0.0
    %3329 = vmatpush1.msra.mxu0 %v3119
    %3330 = vmatprep.subr.mxu0 0.0
    %3331 = vmatpush1.msra.mxu0 %v3124
    %3332 = vmatprep.subr.mxu0 0.0
    %3333 = vmatpush1.msra.mxu0 %v3129
    %3334 = vmatprep.subr.mxu0 0.0
    %3335 = vmatpush1.msra.mxu0 %v3134
    %3336 = vmatprep.subr.mxu0 0.0
    %3337 = vmatpush1.msra.mxu0 %v3139
    %3338 = vmatprep.subr.mxu0 0.0
    %3339 = vmatpush1.msra.mxu0 %v3144
    %3340 = vmatprep.subr.mxu0 0.0
    %3341 = vmatpush1.msra.mxu0 %v3149
    %3342 = vmatprep.subr.mxu0 0.0
    %3343 = vmatpush1.msra.mxu0 %v3154
    %3344 = vmatprep.subr.mxu0 0.0
    %3345 = vmatpush1.msra.mxu0 %v3159
    %3346 = vmatprep.subr.mxu0 0.0
    %3347 = vmatpush1.msra.mxu0 %v3164
    %3348 = vmatprep.subr.mxu0 0.0
    %3349 = vmatpush1.msra.mxu0 %v3169
    %3350 = vmatprep.subr.mxu0 0.0
    %3351 = vmatpush1.msra.mxu0 %v3174
    %3352 = vmatprep.subr.mxu0 0.0
    %3353 = vmatpush1.msra.mxu0 %v3179
    %3354 = vmatprep.mubr.f32.mxu0 %v3188
    %3355 = vmatmul.mubr.f32.gmra.mrb[0].mxu0 %v3187
    %v3356 = vpop.f32.mrb[0].mxu0
    %v3357 = vadd.f32 0.0, %v3356
    %v3358 = vpop.f32.mrb[0].mxu0
    %3359 = vmatprep.mubr.f32.mxu0 %v3191
    %3360 = vmatmul.mubr.f32.gmra.mrb[0].mxu0 %v3190
    %v3361 = vpop.f32.mrb[0].mxu0
    %v3362 = vadd.f32 0.0, %v3361
    %v3363 = vpop.f32.mrb[0].mxu0
    %3364 = vmatprep.mubr.f32.mxu0 %v3194
    %3365 = vmatmul.mubr.f32.gmra.mrb[0].mxu0 %v3193
    %v3366 = vpop.f32.mrb[0].mxu0
    %v3367 = vadd.f32 0.0, %v3366
    %v3368 = vpop.f32.mrb[0].mxu0
    %3369 = vmatprep.mubr.f32.mxu0 %v3197
    %3370 = vmatmul.mubr.f32.gmra.mrb[0].mxu0 %v3196
    %v3371 = vpop.f32.mrb[0].mxu0
    %v3372 = vadd.f32 0.0, %v3371
    %v3373 = vpop.f32.mrb[0].mxu0
    %3374 = vmatprep.mubr.f32.mxu0 %v3200
    %3375 = vmatmul.mubr.f32.gmra.mrb[0].mxu0 %v3199
    %v3376 = vpop.f32.mrb[0].mxu0
    %v3377 = vadd.f32 0.0, %v3376
    %v3378 = vpop.f32.mrb[0].mxu0
    %3379 = vmatprep.mubr.f32.mxu0 %v3203
    %3380 = vmatmul.mubr.f32.gmra.mrb[0].mxu0 %v3202
    %v3381 = vpop.f32.mrb[0].mxu0
    %v3382 = vadd.f32 0.0, %v3381
    %v3383 = vpop.f32.mrb[0].mxu0
    %3384 = vmatprep.mubr.f32.mxu0 %v3206
    %3385 = vmatmul.mubr.f32.gmra.mrb[0].mxu0 %v3205
    %v3386 = vpop.f32.mrb[0].mxu0
    %v3387 = vadd.f32 0.0, %v3386
    %v3388 = vpop.f32.mrb[0].mxu0
    %3389 = vmatprep.mubr.f32.mxu0 %v3209
    %3390 = vmatmul.mubr.f32.gmra.mrb[0].mxu0 %v3208
    %v3391 = vpop.f32.mrb[0].mxu0
    %v3392 = vadd.f32 0.0, %v3391
    %v3393 = vpop.f32.mrb[0].mxu0
    %3394 = vmatprep.mubr.f32.mxu0 %v3212
    %3395 = vmatmul.mubr.f32.gmra.mrb[0].mxu0 %v3211
    %v3396 = vpop.f32.mrb[0].mxu0
    %v3397 = vadd.f32 0.0, %v3396
    %v3398 = vpop.f32.mrb[0].mxu0
    %3399 = vmatprep.mubr.f32.mxu0 %v3215
    %3400 = vmatmul.mubr.f32.gmra.mrb[0].mxu0 %v3214
    %v3401 = vpop.f32.mrb[0].mxu0
    %v3402 = vadd.f32 0.0, %v3401
    %v3403 = vpop.f32.mrb[0].mxu0
    %3404 = vmatprep.mubr.f32.mxu0 %v3218
    %3405 = vmatmul.mubr.f32.gmra.mrb[0].mxu0 %v3217
    %v3406 = vpop.f32.mrb[0].mxu0
    %v3407 = vadd.f32 0.0, %v3406
    %v3408 = vpop.f32.mrb[0].mxu0
    %3409 = vmatprep.mubr.f32.mxu0 %v3221
    %3410 = vmatmul.mubr.f32.gmra.mrb[0].mxu0 %v3220
    %v3411 = vpop.f32.mrb[0].mxu0
    %v3412 = vadd.f32 0.0, %v3411
    %v3413 = vpop.f32.mrb[0].mxu0
    %3414 = vmatprep.mubr.f32.mxu0 %v3224
    %3415 = vmatmul.mubr.f32.gmra.mrb[0].mxu0 %v3223
    %v3416 = vpop.f32.mrb[0].mxu0
    %v3417 = vadd.f32 0.0, %v3416
    %v3418 = vpop.f32.mrb[0].mxu0
    %3419 = vmatprep.mubr.f32.mxu0 %v3227
    %3420 = vmatmul.mubr.f32.gmra.mrb[0].mxu0 %v3226
    %v3421 = vpop.f32.mrb[0].mxu0
    %v3422 = vadd.f32 0.0, %v3421
    %v3423 = vpop.f32.mrb[0].mxu0
    %3424 = vmatprep.mubr.f32.mxu0 %v3230
    %3425 = vmatmul.mubr.f32.gmra.mrb[0].mxu0 %v3229
    %v3426 = vpop.f32.mrb[0].mxu0
    %v3427 = vadd.f32 0.0, %v3426
    %v3428 = vpop.f32.mrb[0].mxu0
    %3429 = vmatprep.mubr.f32.mxu0 %v3233
    %3430 = vmatmul.mubr.f32.gmra.mrb[0].mxu0 %v3232
    %v3431 = vpop.f32.mrb[0].mxu0
    %v3432 = vadd.f32 0.0, %v3431
    %v3433 = vpop.f32.mrb[0].mxu0
    %3434 = vmatprep.mubr.f32.mxu0 %v3236
    %3435 = vmatmul.mubr.f32.gmra.mrb[0].mxu0 %v3235
    %v3436 = vpop.f32.mrb[0].mxu0
    %v3437 = vadd.f32 0.0, %v3436
    %v3438 = vpop.f32.mrb[0].mxu0
    %3439 = vdwg.mxu0
    %3440 = vmatprep.subr.mxu0 0.0
    %3441 = vmatpush1.msra.mxu0 %v3184
    %3442 = vmatprep.subr.mxu0 0.0
    %3443 = vmatpush1.msra.mxu0 0.0
    %3444 = vmatprep.subr.mxu0 0.0
    %3445 = vmatpush1.msra.mxu0 0.0
    %3446 = vmatprep.subr.mxu0 0.0
    %3447 = vmatpush1.msra.mxu0 0.0
    %3448 = vmatprep.subr.mxu0 0.0
    %3449 = vmatpush1.msra.mxu0 0.0
    %3450 = vmatprep.subr.mxu0 0.0
    %3451 = vmatpush1.msra.mxu0 0.0
    %3452 = vmatprep.subr.mxu0 0.0
    %3453 = vmatpush1.msra.mxu0 0.0
    %3454 = vmatprep.subr.mxu0 0.0
    %3455 = vmatpush1.msra.mxu0 0.0
    %3456 = vmatprep.subr.mxu0 0.0
    %3457 = vmatpush1.msra.mxu0 0.0
    %3458 = vmatprep.subr.mxu0 0.0
    %3459 = vmatpush1.msra.mxu0 0.0
    %3460 = vmatprep.subr.mxu0 0.0
    %3461 = vmatpush1.msra.mxu0 0.0
    %3462 = vmatprep.subr.mxu0 0.0
    %3463 = vmatpush1.msra.mxu0 0.0
    %3464 = vmatprep.subr.mxu0 0.0
    %3465 = vmatpush1.msra.mxu0 0.0
    %3466 = vmatprep.subr.mxu0 0.0
    %3467 = vmatpush1.msra.mxu0 0.0
    %3468 = vmatprep.subr.mxu0 0.0
    %3469 = vmatpush1.msra.mxu0 0.0
    %3470 = vmatprep.subr.mxu0 0.0
    %3471 = vmatpush1.msra.mxu0 0.0
    %3472 = vmatprep.subr.mxu0 0.0
    %3473 = vmatpush1.msra.mxu0 0.0
    %3474 = vmatprep.subr.mxu0 0.0
    %3475 = vmatpush1.msra.mxu0 0.0
    %3476 = vmatprep.subr.mxu0 0.0
    %3477 = vmatpush1.msra.mxu0 0.0
    %3478 = vmatprep.subr.mxu0 0.0
    %3479 = vmatpush1.msra.mxu0 0.0
    %3480 = vmatprep.subr.mxu0 0.0
    %3481 = vmatpush1.msra.mxu0 0.0
    %3482 = vmatprep.subr.mxu0 0.0
    %3483 = vmatpush1.msra.mxu0 0.0
    %3484 = vmatprep.subr.mxu0 0.0
    %3485 = vmatpush1.msra.mxu0 0.0
    %3486 = vmatprep.subr.mxu0 0.0
    %3487 = vmatpush1.msra.mxu0 0.0
    %3488 = vmatprep.subr.mxu0 0.0
    %3489 = vmatpush1.msra.mxu0 0.0
    %3490 = vmatprep.subr.mxu0 0.0
    %3491 = vmatpush1.msra.mxu0 0.0
    %3492 = vmatprep.subr.mxu0 0.0
    %3493 = vmatpush1.msra.mxu0 0.0
    %3494 = vmatprep.subr.mxu0 0.0
    %3495 = vmatpush1.msra.mxu0 0.0
    %3496 = vmatprep.subr.mxu0 0.0
    %3497 = vmatpush1.msra.mxu0 0.0
    %3498 = vmatprep.subr.mxu0 0.0
    %3499 = vmatpush1.msra.mxu0 0.0
    %3500 = vmatprep.subr.mxu0 0.0
    %3501 = vmatpush1.msra.mxu0 0.0
    %3502 = vmatprep.subr.mxu0 0.0
    %3503 = vmatpush1.msra.mxu0 0.0
    %3504 = vmatprep.mubr.f32.mxu0 0.0
    %3505 = vmatmul.mubr.f32.gmra.mrb[0].mxu0 %v3240
    %v3506 = vpop.f32.mrb[0].mxu0
    %v3507 = vadd.f32 %v3357, %v3506
    %v3508 = vpop.f32.mrb[0].mxu0
    %3509 = vmatprep.mubr.f32.mxu0 0.0
    %3510 = vmatmul.mubr.f32.gmra.mrb[0].mxu0 %v3243
    %v3511 = vpop.f32.mrb[0].mxu0
    %v3512 = vadd.f32 %v3362, %v3511
    %v3513 = vpop.f32.mrb[0].mxu0
    %3514 = vmatprep.mubr.f32.mxu0 0.0
    %3515 = vmatmul.mubr.f32.gmra.mrb[0].mxu0 %v3246
    %v3516 = vpop.f32.mrb[0].mxu0
    %v3517 = vadd.f32 %v3367, %v3516
    %v3518 = vpop.f32.mrb[0].mxu0
    %3519 = vmatprep.mubr.f32.mxu0 0.0
    %3520 = vmatmul.mubr.f32.gmra.mrb[0].mxu0 %v3249
    %v3521 = vpop.f32.mrb[0].mxu0
    %v3522 = vadd.f32 %v3372, %v3521
    %v3523 = vpop.f32.mrb[0].mxu0
    %3524 = vmatprep.mubr.f32.mxu0 0.0
    %3525 = vmatmul.mubr.f32.gmra.mrb[0].mxu0 %v3252
    %v3526 = vpop.f32.mrb[0].mxu0
    %v3527 = vadd.f32 %v3377, %v3526
    %v3528 = vpop.f32.mrb[0].mxu0
    %3529 = vmatprep.mubr.f32.mxu0 0.0
    %3530 = vmatmul.mubr.f32.gmra.mrb[0].mxu0 %v3255
    %v3531 = vpop.f32.mrb[0].mxu0
    %v3532 = vadd.f32 %v3382, %v3531
    %v3533 = vpop.f32.mrb[0].mxu0
    %3534 = vmatprep.mubr.f32.mxu0 0.0
    %3535 = vmatmul.mubr.f32.gmra.mrb[0].mxu0 %v3258
    %v3536 = vpop.f32.mrb[0].mxu0
    %v3537 = vadd.f32 %v3387, %v3536
    %v3538 = vpop.f32.mrb[0].mxu0
    %3539 = vmatprep.mubr.f32.mxu0 0.0
    %3540 = vmatmul.mubr.f32.gmra.mrb[0].mxu0 %v3261
    %v3541 = vpop.f32.mrb[0].mxu0
    %v3542 = vadd.f32 %v3392, %v3541
    %v3543 = vpop.f32.mrb[0].mxu0
    %3544 = vmatprep.mubr.f32.mxu0 0.0
    %3545 = vmatmul.mubr.f32.gmra.mrb[0].mxu0 %v3264
    %v3546 = vpop.f32.mrb[0].mxu0
    %v3547 = vadd.f32 %v3397, %v3546
    %v3548 = vpop.f32.mrb[0].mxu0
    %3549 = vmatprep.mubr.f32.mxu0 0.0
    %3550 = vmatmul.mubr.f32.gmra.mrb[0].mxu0 %v3267
    %v3551 = vpop.f32.mrb[0].mxu0
    %v3552 = vadd.f32 %v3402, %v3551
    %v3553 = vpop.f32.mrb[0].mxu0
    %3554 = vmatprep.mubr.f32.mxu0 0.0
    %3555 = vmatmul.mubr.f32.gmra.mrb[0].mxu0 %v3270
    %v3556 = vpop.f32.mrb[0].mxu0
    %v3557 = vadd.f32 %v3407, %v3556
    %v3558 = vpop.f32.mrb[0].mxu0
    %3559 = vmatprep.mubr.f32.mxu0 0.0
    %3560 = vmatmul.mubr.f32.gmra.mrb[0].mxu0 %v3273
    %v3561 = vpop.f32.mrb[0].mxu0
    %v3562 = vadd.f32 %v3412, %v3561
    %v3563 = vpop.f32.mrb[0].mxu0
    %3564 = vmatprep.mubr.f32.mxu0 0.0
    %3565 = vmatmul.mubr.f32.gmra.mrb[0].mxu0 %v3276
    %v3566 = vpop.f32.mrb[0].mxu0
    %v3567 = vadd.f32 %v3417, %v3566
    %v3568 = vpop.f32.mrb[0].mxu0
    %3569 = vmatprep.mubr.f32.mxu0 0.0
    %3570 = vmatmul.mubr.f32.gmra.mrb[0].mxu0 %v3279
    %v3571 = vpop.f32.mrb[0].mxu0
    %v3572 = vadd.f32 %v3422, %v3571
    %v3573 = vpop.f32.mrb[0].mxu0
    %3574 = vmatprep.mubr.f32.mxu0 0.0
    %3575 = vmatmul.mubr.f32.gmra.mrb[0].mxu0 %v3282
    %v3576 = vpop.f32.mrb[0].mxu0
    %v3577 = vadd.f32 %v3427, %v3576
    %v3578 = vpop.f32.mrb[0].mxu0
    %3579 = vmatprep.mubr.f32.mxu0 0.0
    %3580 = vmatmul.mubr.f32.gmra.mrb[0].mxu0 %v3285
    %v3581 = vpop.f32.mrb[0].mxu0
    %v3582 = vadd.f32 %v3432, %v3581
    %v3583 = vpop.f32.mrb[0].mxu0
    %3584 = vmatprep.mubr.f32.mxu0 0.0
    %3585 = vmatmul.mubr.f32.gmra.mrb[0].mxu0 %v3288
    %v3586 = vpop.f32.mrb[0].mxu0
    %v3587 = vadd.f32 %v3437, %v3586
    %v3588 = vpop.f32.mrb[0].mxu0
    %3589 = vdwg.mxu0
    %v3591 = vsel %vm3238, %v2888, 0
    %v3594 = vsel %vm3238, %v2891, 0
    %v3597 = vsel %vm3238, %v2894, 0
    %v3600 = vsel %vm3238, %v2897, 0
    %v3603 = vsel %vm3238, %v2900, 0
    %v3606 = vsel %vm3238, %v2903, 0
    %v3609 = vsel %vm3238, %v2906, 0
    %v3612 = vsel %vm3238, %v2909, 0
    %v3615 = vsel %vm3238, %v2912, 0
    %v3618 = vsel %vm3238, %v2915, 0
    %v3621 = vsel %vm3238, %v2918, 0
    %v3624 = vsel %vm3238, %v2921, 0
    %v3627 = vsel %vm3238, %v2924, 0
    %v3630 = vsel %vm3238, %v2927, 0
    %v3633 = vsel %vm3238, %v2930, 0
    %v3636 = vsel %vm3238, %v2933, 0
    %v3639 = vsel %vm3238, %v2936, 0
    %3641 = vmatprep.subr.mxu0 0.0
    %3642 = vmatpush1.msra.mxu0 %v2723
    %3643 = vmatprep.subr.mxu0 0.0
    %3644 = vmatpush1.msra.mxu0 %v2728
    %3645 = vmatprep.subr.mxu0 0.0
    %3646 = vmatpush1.msra.mxu0 %v2733
    %3647 = vmatprep.subr.mxu0 0.0
    %3648 = vmatpush1.msra.mxu0 %v2738
    %3649 = vmatprep.subr.mxu0 0.0
    %3650 = vmatpush1.msra.mxu0 %v2743
    %3651 = vmatprep.subr.mxu0 0.0
    %3652 = vmatpush1.msra.mxu0 %v2748
    %3653 = vmatprep.subr.mxu0 0.0
    %3654 = vmatpush1.msra.mxu0 %v2753
    %3655 = vmatprep.subr.mxu0 0.0
    %3656 = vmatpush1.msra.mxu0 %v2758
    %3657 = vmatprep.subr.mxu0 0.0
    %3658 = vmatpush1.msra.mxu0 %v2763
    %3659 = vmatprep.subr.mxu0 0.0
    %3660 = vmatpush1.msra.mxu0 %v2768
    %3661 = vmatprep.subr.mxu0 0.0
    %3662 = vmatpush1.msra.mxu0 %v2773
    %3663 = vmatprep.subr.mxu0 0.0
    %3664 = vmatpush1.msra.mxu0 %v2778
    %3665 = vmatprep.subr.mxu0 0.0
    %3666 = vmatpush1.msra.mxu0 %v2783
    %3667 = vmatprep.subr.mxu0 0.0
    %3668 = vmatpush1.msra.mxu0 %v2788
    %3669 = vmatprep.subr.mxu0 0.0
    %3670 = vmatpush1.msra.mxu0 %v2793
    %3671 = vmatprep.subr.mxu0 0.0
    %3672 = vmatpush1.msra.mxu0 %v2798
    %3673 = vmatprep.subr.mxu0 0.0
    %3674 = vmatpush1.msra.mxu0 %v2803
    %3675 = vmatprep.subr.mxu0 0.0
    %3676 = vmatpush1.msra.mxu0 %v2808
    %3677 = vmatprep.subr.mxu0 0.0
    %3678 = vmatpush1.msra.mxu0 %v2813
    %3679 = vmatprep.subr.mxu0 0.0
    %3680 = vmatpush1.msra.mxu0 %v2818
    %3681 = vmatprep.subr.mxu0 0.0
    %3682 = vmatpush1.msra.mxu0 %v2823
    %3683 = vmatprep.subr.mxu0 0.0
    %3684 = vmatpush1.msra.mxu0 %v2828
    %3685 = vmatprep.subr.mxu0 0.0
    %3686 = vmatpush1.msra.mxu0 %v2833
    %3687 = vmatprep.subr.mxu0 0.0
    %3688 = vmatpush1.msra.mxu0 %v2838
    %3689 = vmatprep.subr.mxu0 0.0
    %3690 = vmatpush1.msra.mxu0 %v2843
    %3691 = vmatprep.subr.mxu0 0.0
    %3692 = vmatpush1.msra.mxu0 %v2848
    %3693 = vmatprep.subr.mxu0 0.0
    %3694 = vmatpush1.msra.mxu0 %v2853
    %3695 = vmatprep.subr.mxu0 0.0
    %3696 = vmatpush1.msra.mxu0 %v2858
    %3697 = vmatprep.subr.mxu0 0.0
    %3698 = vmatpush1.msra.mxu0 %v2863
    %3699 = vmatprep.subr.mxu0 0.0
    %3700 = vmatpush1.msra.mxu0 %v2868
    %3701 = vmatprep.subr.mxu0 0.0
    %3702 = vmatpush1.msra.mxu0 %v2873
    %3703 = vmatprep.subr.mxu0 0.0
    %3704 = vmatpush1.msra.mxu0 %v2878
    %3705 = vmatprep.mubr.f32.mxu0 %v2887
    %3706 = vmatmul.mubr.f32.gmra.mrb[0].mxu0 %v2886
    %v3707 = vpop.f32.mrb[0].mxu0
    %v3708 = vadd.f32 %v3507, %v3707
    %v3709 = vpop.f32.mrb[0].mxu0
    %3710 = vmatprep.mubr.f32.mxu0 %v2890
    %3711 = vmatmul.mubr.f32.gmra.mrb[0].mxu0 %v2889
    %v3712 = vpop.f32.mrb[0].mxu0
    %v3713 = vadd.f32 %v3512, %v3712
    %v3714 = vpop.f32.mrb[0].mxu0
    %3715 = vmatprep.mubr.f32.mxu0 %v2893
    %3716 = vmatmul.mubr.f32.gmra.mrb[0].mxu0 %v2892
    %v3717 = vpop.f32.mrb[0].mxu0
    %v3718 = vadd.f32 %v3517, %v3717
    %v3719 = vpop.f32.mrb[0].mxu0
    %3720 = vmatprep.mubr.f32.mxu0 %v2896
    %3721 = vmatmul.mubr.f32.gmra.mrb[0].mxu0 %v2895
    %v3722 = vpop.f32.mrb[0].mxu0
    %v3723 = vadd.f32 %v3522, %v3722
    %v3724 = vpop.f32.mrb[0].mxu0
    %3725 = vmatprep.mubr.f32.mxu0 %v2899
    %3726 = vmatmul.mubr.f32.gmra.mrb[0].mxu0 %v2898
    %v3727 = vpop.f32.mrb[0].mxu0
    %v3728 = vadd.f32 %v3527, %v3727
    %v3729 = vpop.f32.mrb[0].mxu0
    %3730 = vmatprep.mubr.f32.mxu0 %v2902
    %3731 = vmatmul.mubr.f32.gmra.mrb[0].mxu0 %v2901
    %v3732 = vpop.f32.mrb[0].mxu0
    %v3733 = vadd.f32 %v3532, %v3732
    %v3734 = vpop.f32.mrb[0].mxu0
    %3735 = vmatprep.mubr.f32.mxu0 %v2905
    %3736 = vmatmul.mubr.f32.gmra.mrb[0].mxu0 %v2904
    %v3737 = vpop.f32.mrb[0].mxu0
    %v3738 = vadd.f32 %v3537, %v3737
    %v3739 = vpop.f32.mrb[0].mxu0
    %3740 = vmatprep.mubr.f32.mxu0 %v2908
    %3741 = vmatmul.mubr.f32.gmra.mrb[0].mxu0 %v2907
    %v3742 = vpop.f32.mrb[0].mxu0
    %v3743 = vadd.f32 %v3542, %v3742
    %v3744 = vpop.f32.mrb[0].mxu0
    %3745 = vmatprep.mubr.f32.mxu0 %v2911
    %3746 = vmatmul.mubr.f32.gmra.mrb[0].mxu0 %v2910
    %v3747 = vpop.f32.mrb[0].mxu0
    %v3748 = vadd.f32 %v3547, %v3747
    %v3749 = vpop.f32.mrb[0].mxu0
    %3750 = vmatprep.mubr.f32.mxu0 %v2914
    %3751 = vmatmul.mubr.f32.gmra.mrb[0].mxu0 %v2913
    %v3752 = vpop.f32.mrb[0].mxu0
    %v3753 = vadd.f32 %v3552, %v3752
    %v3754 = vpop.f32.mrb[0].mxu0
    %3755 = vmatprep.mubr.f32.mxu0 %v2917
    %3756 = vmatmul.mubr.f32.gmra.mrb[0].mxu0 %v2916
    %v3757 = vpop.f32.mrb[0].mxu0
    %v3758 = vadd.f32 %v3557, %v3757
    %v3759 = vpop.f32.mrb[0].mxu0
    %3760 = vmatprep.mubr.f32.mxu0 %v2920
    %3761 = vmatmul.mubr.f32.gmra.mrb[0].mxu0 %v2919
    %v3762 = vpop.f32.mrb[0].mxu0
    %v3763 = vadd.f32 %v3562, %v3762
    %v3764 = vpop.f32.mrb[0].mxu0
    %3765 = vmatprep.mubr.f32.mxu0 %v2923
    %3766 = vmatmul.mubr.f32.gmra.mrb[0].mxu0 %v2922
    %v3767 = vpop.f32.mrb[0].mxu0
    %v3768 = vadd.f32 %v3567, %v3767
    %v3769 = vpop.f32.mrb[0].mxu0
    %3770 = vmatprep.mubr.f32.mxu0 %v2926
    %3771 = vmatmul.mubr.f32.gmra.mrb[0].mxu0 %v2925
    %v3772 = vpop.f32.mrb[0].mxu0
    %v3773 = vadd.f32 %v3572, %v3772
    %v3774 = vpop.f32.mrb[0].mxu0
    %3775 = vmatprep.mubr.f32.mxu0 %v2929
    %3776 = vmatmul.mubr.f32.gmra.mrb[0].mxu0 %v2928
    %v3777 = vpop.f32.mrb[0].mxu0
    %v3778 = vadd.f32 %v3577, %v3777
    %v3779 = vpop.f32.mrb[0].mxu0
    %3780 = vmatprep.mubr.f32.mxu0 %v2932
    %3781 = vmatmul.mubr.f32.gmra.mrb[0].mxu0 %v2931
    %v3782 = vpop.f32.mrb[0].mxu0
    %v3783 = vadd.f32 %v3582, %v3782
    %v3784 = vpop.f32.mrb[0].mxu0
    %3785 = vmatprep.mubr.f32.mxu0 %v2935
    %3786 = vmatmul.mubr.f32.gmra.mrb[0].mxu0 %v2934
    %v3787 = vpop.f32.mrb[0].mxu0
    %v3788 = vadd.f32 %v3587, %v3787
    %v3789 = vpop.f32.mrb[0].mxu0
    %3790 = vdwg.mxu0
    %3791 = vmatprep.subr.mxu0 0.0
    %3792 = vmatpush1.msra.mxu0 %v2883
    %3793 = vmatprep.subr.mxu0 0.0
    %3794 = vmatpush1.msra.mxu0 0.0
    %3795 = vmatprep.subr.mxu0 0.0
    %3796 = vmatpush1.msra.mxu0 0.0
    %3797 = vmatprep.subr.mxu0 0.0
    %3798 = vmatpush1.msra.mxu0 0.0
    %3799 = vmatprep.subr.mxu0 0.0
    %3800 = vmatpush1.msra.mxu0 0.0
    %3801 = vmatprep.subr.mxu0 0.0
    %3802 = vmatpush1.msra.mxu0 0.0
    %3803 = vmatprep.subr.mxu0 0.0
    %3804 = vmatpush1.msra.mxu0 0.0
    %3805 = vmatprep.subr.mxu0 0.0
    %3806 = vmatpush1.msra.mxu0 0.0
    %3807 = vmatprep.subr.mxu0 0.0
    %3808 = vmatpush1.msra.mxu0 0.0
    %3809 = vmatprep.subr.mxu0 0.0
    %3810 = vmatpush1.msra.mxu0 0.0
    %3811 = vmatprep.subr.mxu0 0.0
    %3812 = vmatpush1.msra.mxu0 0.0
    %3813 = vmatprep.subr.mxu0 0.0
    %3814 = vmatpush1.msra.mxu0 0.0
    %3815 = vmatprep.subr.mxu0 0.0
    %3816 = vmatpush1.msra.mxu0 0.0
    %3817 = vmatprep.subr.mxu0 0.0
    %3818 = vmatpush1.msra.mxu0 0.0
    %3819 = vmatprep.subr.mxu0 0.0
    %3820 = vmatpush1.msra.mxu0 0.0
    %3821 = vmatprep.subr.mxu0 0.0
    %3822 = vmatpush1.msra.mxu0 0.0
    %3823 = vmatprep.subr.mxu0 0.0
    %3824 = vmatpush1.msra.mxu0 0.0
    %3825 = vmatprep.subr.mxu0 0.0
    %3826 = vmatpush1.msra.mxu0 0.0
    %3827 = vmatprep.subr.mxu0 0.0
    %3828 = vmatpush1.msra.mxu0 0.0
    %3829 = vmatprep.subr.mxu0 0.0
    %3830 = vmatpush1.msra.mxu0 0.0
    %3831 = vmatprep.subr.mxu0 0.0
    %3832 = vmatpush1.msra.mxu0 0.0
    %3833 = vmatprep.subr.mxu0 0.0
    %3834 = vmatpush1.msra.mxu0 0.0
    %3835 = vmatprep.subr.mxu0 0.0
    %3836 = vmatpush1.msra.mxu0 0.0
    %3837 = vmatprep.subr.mxu0 0.0
    %3838 = vmatpush1.msra.mxu0 0.0
    %3839 = vmatprep.subr.mxu0 0.0
    %3840 = vmatpush1.msra.mxu0 0.0
    %3841 = vmatprep.subr.mxu0 0.0
    %3842 = vmatpush1.msra.mxu0 0.0
    %3843 = vmatprep.subr.mxu0 0.0
    %3844 = vmatpush1.msra.mxu0 0.0
    %3845 = vmatprep.subr.mxu0 0.0
    %3846 = vmatpush1.msra.mxu0 0.0
    %3847 = vmatprep.subr.mxu0 0.0
    %3848 = vmatpush1.msra.mxu0 0.0
    %3849 = vmatprep.subr.mxu0 0.0
    %3850 = vmatpush1.msra.mxu0 0.0
    %3851 = vmatprep.subr.mxu0 0.0
    %3852 = vmatpush1.msra.mxu0 0.0
    %3853 = vmatprep.subr.mxu0 0.0
    %3854 = vmatpush1.msra.mxu0 0.0
    %3855 = vmatprep.mubr.f32.mxu0 0.0
    %3856 = vmatmul.mubr.f32.gmra.mrb[0].mxu0 %v3591
    %v3857 = vpop.f32.mrb[0].mxu0
    %v3858 = vadd.f32 %v3708, %v3857
    %v3859 = vpop.f32.mrb[0].mxu0
    %3860 = vmatprep.mubr.f32.mxu0 0.0
    %3861 = vmatmul.mubr.f32.gmra.mrb[0].mxu0 %v3594
    %v3862 = vpop.f32.mrb[0].mxu0
    %v3863 = vadd.f32 %v3713, %v3862
    %v3864 = vpop.f32.mrb[0].mxu0
    %3865 = vmatprep.mubr.f32.mxu0 0.0
    %3866 = vmatmul.mubr.f32.gmra.mrb[0].mxu0 %v3597
    %v3867 = vpop.f32.mrb[0].mxu0
    %v3868 = vadd.f32 %v3718, %v3867
    %v3869 = vpop.f32.mrb[0].mxu0
    %3870 = vmatprep.mubr.f32.mxu0 0.0
    %3871 = vmatmul.mubr.f32.gmra.mrb[0].mxu0 %v3600
    %v3872 = vpop.f32.mrb[0].mxu0
    %v3873 = vadd.f32 %v3723, %v3872
    %v3874 = vpop.f32.mrb[0].mxu0
    %3875 = vmatprep.mubr.f32.mxu0 0.0
    %3876 = vmatmul.mubr.f32.gmra.mrb[0].mxu0 %v3603
    %v3877 = vpop.f32.mrb[0].mxu0
    %v3878 = vadd.f32 %v3728, %v3877
    %v3879 = vpop.f32.mrb[0].mxu0
    %3880 = vmatprep.mubr.f32.mxu0 0.0
    %3881 = vmatmul.mubr.f32.gmra.mrb[0].mxu0 %v3606
    %v3882 = vpop.f32.mrb[0].mxu0
    %v3883 = vadd.f32 %v3733, %v3882
    %v3884 = vpop.f32.mrb[0].mxu0
    %3885 = vmatprep.mubr.f32.mxu0 0.0
    %3886 = vmatmul.mubr.f32.gmra.mrb[0].mxu0 %v3609
    %v3887 = vpop.f32.mrb[0].mxu0
    %v3888 = vadd.f32 %v3738, %v3887
    %v3889 = vpop.f32.mrb[0].mxu0
    %3890 = vmatprep.mubr.f32.mxu0 0.0
    %3891 = vmatmul.mubr.f32.gmra.mrb[0].mxu0 %v3612
    %v3892 = vpop.f32.mrb[0].mxu0
    %v3893 = vadd.f32 %v3743, %v3892
    %v3894 = vpop.f32.mrb[0].mxu0
    %3895 = vmatprep.mubr.f32.mxu0 0.0
    %3896 = vmatmul.mubr.f32.gmra.mrb[0].mxu0 %v3615
    %v3897 = vpop.f32.mrb[0].mxu0
    %v3898 = vadd.f32 %v3748, %v3897
    %v3899 = vpop.f32.mrb[0].mxu0
    %3900 = vmatprep.mubr.f32.mxu0 0.0
    %3901 = vmatmul.mubr.f32.gmra.mrb[0].mxu0 %v3618
    %v3902 = vpop.f32.mrb[0].mxu0
    %v3903 = vadd.f32 %v3753, %v3902
    %v3904 = vpop.f32.mrb[0].mxu0
    %3905 = vmatprep.mubr.f32.mxu0 0.0
    %3906 = vmatmul.mubr.f32.gmra.mrb[0].mxu0 %v3621
    %v3907 = vpop.f32.mrb[0].mxu0
    %v3908 = vadd.f32 %v3758, %v3907
    %v3909 = vpop.f32.mrb[0].mxu0
    %3910 = vmatprep.mubr.f32.mxu0 0.0
    %3911 = vmatmul.mubr.f32.gmra.mrb[0].mxu0 %v3624
    %v3912 = vpop.f32.mrb[0].mxu0
    %v3913 = vadd.f32 %v3763, %v3912
    %v3914 = vpop.f32.mrb[0].mxu0
    %3915 = vmatprep.mubr.f32.mxu0 0.0
    %3916 = vmatmul.mubr.f32.gmra.mrb[0].mxu0 %v3627
    %v3917 = vpop.f32.mrb[0].mxu0
    %v3918 = vadd.f32 %v3768, %v3917
    %v3919 = vpop.f32.mrb[0].mxu0
    %3920 = vmatprep.mubr.f32.mxu0 0.0
    %3921 = vmatmul.mubr.f32.gmra.mrb[0].mxu0 %v3630
    %v3922 = vpop.f32.mrb[0].mxu0
    %v3923 = vadd.f32 %v3773, %v3922
    %v3924 = vpop.f32.mrb[0].mxu0
    %3925 = vmatprep.mubr.f32.mxu0 0.0
    %3926 = vmatmul.mubr.f32.gmra.mrb[0].mxu0 %v3633
    %v3927 = vpop.f32.mrb[0].mxu0
    %v3928 = vadd.f32 %v3778, %v3927
    %v3929 = vpop.f32.mrb[0].mxu0
    %3930 = vmatprep.mubr.f32.mxu0 0.0
    %3931 = vmatmul.mubr.f32.gmra.mrb[0].mxu0 %v3636
    %v3932 = vpop.f32.mrb[0].mxu0
    %v3933 = vadd.f32 %v3783, %v3932
    %v3934 = vpop.f32.mrb[0].mxu0
    %3935 = vmatprep.mubr.f32.mxu0 0.0
    %3936 = vmatmul.mubr.f32.gmra.mrb[0].mxu0 %v3639
    %v3937 = vpop.f32.mrb[0].mxu0
    %v3938 = vadd.f32 %v3788, %v3937
    %v3939 = vpop.f32.mrb[0].mxu0
    %3940 = vdwg.mxu0
    %v3941 = vld [vmem:[#allocation16] sm:$0xff]
    %v3942 = vld [vmem:[#allocation16 + $0x8] sm:$0xff]
    %v3943 = vld [vmem:[#allocation16 + $0x10] sm:$0xff]
    %v3944 = vld [vmem:[#allocation16 + $0x18] sm:$0xff]
    %v3945 = vld [vmem:[#allocation16 + $0x20] sm:$0xff]
    %v3946 = vld [vmem:[#allocation16 + $0x28] sm:$0xff]
    %v3947 = vld [vmem:[#allocation16 + $0x30] sm:$0xff]
    %v3948 = vld [vmem:[#allocation16 + $0x38] sm:$0xff]
    %v3949 = vld [vmem:[#allocation16 + $0x40] sm:$0xff]
    %v3950 = vld [vmem:[#allocation16 + $0x48] sm:$0xff]
    %v3951 = vld [vmem:[#allocation16 + $0x50] sm:$0xff]
    %v3952 = vld [vmem:[#allocation16 + $0x58] sm:$0xff]
    %v3953 = vld [vmem:[#allocation16 + $0x60] sm:$0xff]
    %v3954 = vld [vmem:[#allocation16 + $0x68] sm:$0xff]
    %v3955 = vld [vmem:[#allocation16 + $0x70] sm:$0xff]
    %v3956 = vld [vmem:[#allocation16 + $0x78] sm:$0xff]
    %v3957 = vld [vmem:[#allocation16 + $0x80] sm:$0xff]
    %3959 = vset.pattern.permute.xlu0 0
    %3960 = vperm.xlu0 %3959, %v3941
    %v3961 = vpop.permute.xlu0 %3960
    %3964 = vset.pattern.permute.xlu0 0
    %3965 = vperm.xlu0 %3964, %v3942
    %v3966 = vpop.permute.xlu0 %3965
    %3969 = vset.pattern.permute.xlu0 0
    %3970 = vperm.xlu0 %3969, %v3943
    %v3971 = vpop.permute.xlu0 %3970
    %3974 = vset.pattern.permute.xlu0 0
    %3975 = vperm.xlu0 %3974, %v3944
    %v3976 = vpop.permute.xlu0 %3975
    %3979 = vset.pattern.permute.xlu0 0
    %3980 = vperm.xlu0 %3979, %v3945
    %v3981 = vpop.permute.xlu0 %3980
    %3984 = vset.pattern.permute.xlu0 0
    %3985 = vperm.xlu0 %3984, %v3946
    %v3986 = vpop.permute.xlu0 %3985
    %3989 = vset.pattern.permute.xlu0 0
    %3990 = vperm.xlu0 %3989, %v3947
    %v3991 = vpop.permute.xlu0 %3990
    %3994 = vset.pattern.permute.xlu0 0
    %3995 = vperm.xlu0 %3994, %v3948
    %v3996 = vpop.permute.xlu0 %3995
    %3999 = vset.pattern.permute.xlu0 0
    %4000 = vperm.xlu0 %3999, %v3949
    %v4001 = vpop.permute.xlu0 %4000
    %4004 = vset.pattern.permute.xlu0 0
    %4005 = vperm.xlu0 %4004, %v3950
    %v4006 = vpop.permute.xlu0 %4005
    %4009 = vset.pattern.permute.xlu0 0
    %4010 = vperm.xlu0 %4009, %v3951
    %v4011 = vpop.permute.xlu0 %4010
    %4014 = vset.pattern.permute.xlu0 0
    %4015 = vperm.xlu0 %4014, %v3952
    %v4016 = vpop.permute.xlu0 %4015
    %4019 = vset.pattern.permute.xlu0 0
    %4020 = vperm.xlu0 %4019, %v3953
    %v4021 = vpop.permute.xlu0 %4020
    %4024 = vset.pattern.permute.xlu0 0
    %4025 = vperm.xlu0 %4024, %v3954
    %v4026 = vpop.permute.xlu0 %4025
    %4029 = vset.pattern.permute.xlu0 0
    %4030 = vperm.xlu0 %4029, %v3955
    %v4031 = vpop.permute.xlu0 %4030
    %4034 = vset.pattern.permute.xlu0 0
    %4035 = vperm.xlu0 %4034, %v3956
    %v4036 = vpop.permute.xlu0 %4035
    %4039 = vset.pattern.permute.xlu0 0
    %4040 = vperm.xlu0 %4039, %v3957
    %v4041 = vpop.permute.xlu0 %4040
    %v4043 = vadd.f32 %v3858, %v3961
    %v4044 = vadd.f32 %v3863, %v3966
    %v4045 = vadd.f32 %v3868, %v3971
    %v4046 = vadd.f32 %v3873, %v3976
    %v4047 = vadd.f32 %v3878, %v3981
    %v4048 = vadd.f32 %v3883, %v3986
    %v4049 = vadd.f32 %v3888, %v3991
    %v4050 = vadd.f32 %v3893, %v3996
    %v4051 = vadd.f32 %v3898, %v4001
    %v4052 = vadd.f32 %v3903, %v4006
    %v4053 = vadd.f32 %v3908, %v4011
    %v4054 = vadd.f32 %v3913, %v4016
    %v4055 = vadd.f32 %v3918, %v4021
    %v4056 = vadd.f32 %v3923, %v4026
    %v4057 = vadd.f32 %v3928, %v4031
    %v4058 = vadd.f32 %v3933, %v4036
    %v4059 = vadd.f32 %v3938, %v4041
    %v4060 = vld [vmem:[#allocation19] sm:$0xff]
    %v4061 = vld [vmem:[#allocation19 + $0x8] sm:$0xff]
    %v4062 = vld [vmem:[#allocation19 + $0x10] sm:$0xff]
    %vm4063 = vcmask 195584
    %v4065 = vsel %vm4063, %v4043, 0
    %v4068 = vsel %vm4063, %v4044, 0
    %v4071 = vsel %vm4063, %v4045, 0
    %v4074 = vsel %vm4063, %v4046, 0
    %v4077 = vsel %vm4063, %v4047, 0
    %v4080 = vsel %vm4063, %v4048, 0
    %v4083 = vsel %vm4063, %v4049, 0
    %v4086 = vsel %vm4063, %v4050, 0
    %v4089 = vsel %vm4063, %v4051, 0
    %v4092 = vsel %vm4063, %v4052, 0
    %v4095 = vsel %vm4063, %v4053, 0
    %v4098 = vsel %vm4063, %v4054, 0
    %v4101 = vsel %vm4063, %v4055, 0
    %v4104 = vsel %vm4063, %v4056, 0
    %v4107 = vsel %vm4063, %v4057, 0
    %v4110 = vsel %vm4063, %v4058, 0
    %v4113 = vsel %vm4063, %v4059, 0
    %4115 = vmatprep.subr.mxu0 0.0
    %4116 = vmatpush1.msra.mxu0 %v4060
    %4117 = vmatprep.subr.mxu0 0.0
    %4118 = vmatpush1.msra.mxu0 %v4061
    %4119 = vmatprep.subr.mxu0 0.0
    %4120 = vmatpush1.msra.mxu0 %v4062
    %4121 = vmatprep.subr.mxu0 0.0
    %4122 = vmatpush1.msra.mxu0 0.0
    %4123 = vmatprep.subr.mxu0 0.0
    %4124 = vmatpush1.msra.mxu0 0.0
    %4125 = vmatprep.subr.mxu0 0.0
    %4126 = vmatpush1.msra.mxu0 0.0
    %4127 = vmatprep.subr.mxu0 0.0
    %4128 = vmatpush1.msra.mxu0 0.0
    %4129 = vmatprep.subr.mxu0 0.0
    %4130 = vmatpush1.msra.mxu0 0.0
    %4131 = vmatprep.subr.mxu0 0.0
    %4132 = vmatpush1.msra.mxu0 0.0
    %4133 = vmatprep.subr.mxu0 0.0
    %4134 = vmatpush1.msra.mxu0 0.0
    %4135 = vmatprep.subr.mxu0 0.0
    %4136 = vmatpush1.msra.mxu0 0.0
    %4137 = vmatprep.subr.mxu0 0.0
    %4138 = vmatpush1.msra.mxu0 0.0
    %4139 = vmatprep.subr.mxu0 0.0
    %4140 = vmatpush1.msra.mxu0 0.0
    %4141 = vmatprep.subr.mxu0 0.0
    %4142 = vmatpush1.msra.mxu0 0.0
    %4143 = vmatprep.subr.mxu0 0.0
    %4144 = vmatpush1.msra.mxu0 0.0
    %4145 = vmatprep.subr.mxu0 0.0
    %4146 = vmatpush1.msra.mxu0 0.0
    %4147 = vmatprep.subr.mxu0 0.0
    %4148 = vmatpush1.msra.mxu0 0.0
    %4149 = vmatprep.subr.mxu0 0.0
    %4150 = vmatpush1.msra.mxu0 0.0
    %4151 = vmatprep.subr.mxu0 0.0
    %4152 = vmatpush1.msra.mxu0 0.0
    %4153 = vmatprep.subr.mxu0 0.0
    %4154 = vmatpush1.msra.mxu0 0.0
    %4155 = vmatprep.subr.mxu0 0.0
    %4156 = vmatpush1.msra.mxu0 0.0
    %4157 = vmatprep.subr.mxu0 0.0
    %4158 = vmatpush1.msra.mxu0 0.0
    %4159 = vmatprep.subr.mxu0 0.0
    %4160 = vmatpush1.msra.mxu0 0.0
    %4161 = vmatprep.subr.mxu0 0.0
    %4162 = vmatpush1.msra.mxu0 0.0
    %4163 = vmatprep.subr.mxu0 0.0
    %4164 = vmatpush1.msra.mxu0 0.0
    %4165 = vmatprep.subr.mxu0 0.0
    %4166 = vmatpush1.msra.mxu0 0.0
    %4167 = vmatprep.subr.mxu0 0.0
    %4168 = vmatpush1.msra.mxu0 0.0
    %4169 = vmatprep.subr.mxu0 0.0
    %4170 = vmatpush1.msra.mxu0 0.0
    %4171 = vmatprep.subr.mxu0 0.0
    %4172 = vmatpush1.msra.mxu0 0.0
    %4173 = vmatprep.subr.mxu0 0.0
    %4174 = vmatpush1.msra.mxu0 0.0
    %4175 = vmatprep.subr.mxu0 0.0
    %4176 = vmatpush1.msra.mxu0 0.0
    %4177 = vmatprep.subr.mxu0 0.0
    %4178 = vmatpush1.msra.mxu0 0.0
    %4179 = vmatprep.mubr.f32.mxu0 0.0
    %4180 = vmatmul.mubr.f32.gmra.mrb[0].mxu0 %v4065
    %v4181 = vpop.f32.mrb[0].mxu0
    %v4182 = vadd.f32 0.0, %v4181
    %v4183 = vpop.f32.mrb[0].mxu0
    %4184 = vmatprep.mubr.f32.mxu0 0.0
    %4185 = vmatmul.mubr.f32.gmra.mrb[0].mxu0 %v4068
    %v4186 = vpop.f32.mrb[0].mxu0
    %v4187 = vadd.f32 0.0, %v4186
    %v4188 = vpop.f32.mrb[0].mxu0
    %4189 = vmatprep.mubr.f32.mxu0 0.0
    %4190 = vmatmul.mubr.f32.gmra.mrb[0].mxu0 %v4071
    %v4191 = vpop.f32.mrb[0].mxu0
    %v4192 = vadd.f32 0.0, %v4191
    %v4193 = vpop.f32.mrb[0].mxu0
    %4194 = vmatprep.mubr.f32.mxu0 0.0
    %4195 = vmatmul.mubr.f32.gmra.mrb[0].mxu0 %v4074
    %v4196 = vpop.f32.mrb[0].mxu0
    %v4197 = vadd.f32 0.0, %v4196
    %v4198 = vpop.f32.mrb[0].mxu0
    %4199 = vmatprep.mubr.f32.mxu0 0.0
    %4200 = vmatmul.mubr.f32.gmra.mrb[0].mxu0 %v4077
    %v4201 = vpop.f32.mrb[0].mxu0
    %v4202 = vadd.f32 0.0, %v4201
    %v4203 = vpop.f32.mrb[0].mxu0
    %4204 = vmatprep.mubr.f32.mxu0 0.0
    %4205 = vmatmul.mubr.f32.gmra.mrb[0].mxu0 %v4080
    %v4206 = vpop.f32.mrb[0].mxu0
    %v4207 = vadd.f32 0.0, %v4206
    %v4208 = vpop.f32.mrb[0].mxu0
    %4209 = vmatprep.mubr.f32.mxu0 0.0
    %4210 = vmatmul.mubr.f32.gmra.mrb[0].mxu0 %v4083
    %v4211 = vpop.f32.mrb[0].mxu0
    %v4212 = vadd.f32 0.0, %v4211
    %v4213 = vpop.f32.mrb[0].mxu0
    %4214 = vmatprep.mubr.f32.mxu0 0.0
    %4215 = vmatmul.mubr.f32.gmra.mrb[0].mxu0 %v4086
    %v4216 = vpop.f32.mrb[0].mxu0
    %v4217 = vadd.f32 0.0, %v4216
    %v4218 = vpop.f32.mrb[0].mxu0
    %4219 = vmatprep.mubr.f32.mxu0 0.0
    %4220 = vmatmul.mubr.f32.gmra.mrb[0].mxu0 %v4089
    %v4221 = vpop.f32.mrb[0].mxu0
    %v4222 = vadd.f32 0.0, %v4221
    %v4223 = vpop.f32.mrb[0].mxu0
    %4224 = vmatprep.mubr.f32.mxu0 0.0
    %4225 = vmatmul.mubr.f32.gmra.mrb[0].mxu0 %v4092
    %v4226 = vpop.f32.mrb[0].mxu0
    %v4227 = vadd.f32 0.0, %v4226
    %v4228 = vpop.f32.mrb[0].mxu0
    %4229 = vmatprep.mubr.f32.mxu0 0.0
    %4230 = vmatmul.mubr.f32.gmra.mrb[0].mxu0 %v4095
    %v4231 = vpop.f32.mrb[0].mxu0
    %v4232 = vadd.f32 0.0, %v4231
    %v4233 = vpop.f32.mrb[0].mxu0
    %4234 = vmatprep.mubr.f32.mxu0 0.0
    %4235 = vmatmul.mubr.f32.gmra.mrb[0].mxu0 %v4098
    %v4236 = vpop.f32.mrb[0].mxu0
    %v4237 = vadd.f32 0.0, %v4236
    %v4238 = vpop.f32.mrb[0].mxu0
    %4239 = vmatprep.mubr.f32.mxu0 0.0
    %4240 = vmatmul.mubr.f32.gmra.mrb[0].mxu0 %v4101
    %v4241 = vpop.f32.mrb[0].mxu0
    %v4242 = vadd.f32 0.0, %v4241
    %v4243 = vpop.f32.mrb[0].mxu0
    %4244 = vmatprep.mubr.f32.mxu0 0.0
    %4245 = vmatmul.mubr.f32.gmra.mrb[0].mxu0 %v4104
    %v4246 = vpop.f32.mrb[0].mxu0
    %v4247 = vadd.f32 0.0, %v4246
    %v4248 = vpop.f32.mrb[0].mxu0
    %4249 = vmatprep.mubr.f32.mxu0 0.0
    %4250 = vmatmul.mubr.f32.gmra.mrb[0].mxu0 %v4107
    %v4251 = vpop.f32.mrb[0].mxu0
    %v4252 = vadd.f32 0.0, %v4251
    %v4253 = vpop.f32.mrb[0].mxu0
    %4254 = vmatprep.mubr.f32.mxu0 0.0
    %4255 = vmatmul.mubr.f32.gmra.mrb[0].mxu0 %v4110
    %v4256 = vpop.f32.mrb[0].mxu0
    %v4257 = vadd.f32 0.0, %v4256
    %v4258 = vpop.f32.mrb[0].mxu0
    %4259 = vmatprep.mubr.f32.mxu0 0.0
    %4260 = vmatmul.mubr.f32.gmra.mrb[0].mxu0 %v4113
    %v4261 = vpop.f32.mrb[0].mxu0
    %v4262 = vadd.f32 0.0, %v4261
    %v4263 = vpop.f32.mrb[0].mxu0
    %4264 = vdwg.mxu0
    %v4265 = vld [vmem:[#allocation18] sm:$0xff]
    %v4266 = vld [vmem:[#allocation18 + $0x8] sm:$0xff]
    %v4267 = vld [vmem:[#allocation18 + $0x10] sm:$0xff]
    %v4268 = vld [vmem:[#allocation18 + $0x18] sm:$0xff]
    %v4269 = vld [vmem:[#allocation18 + $0x20] sm:$0xff]
    %v4270 = vld [vmem:[#allocation18 + $0x28] sm:$0xff]
    %v4271 = vld [vmem:[#allocation18 + $0x30] sm:$0xff]
    %v4272 = vld [vmem:[#allocation18 + $0x38] sm:$0xff]
    %v4273 = vld [vmem:[#allocation18 + $0x40] sm:$0xff]
    %v4274 = vld [vmem:[#allocation18 + $0x48] sm:$0xff]
    %v4275 = vld [vmem:[#allocation18 + $0x50] sm:$0xff]
    %v4276 = vld [vmem:[#allocation18 + $0x58] sm:$0xff]
    %v4277 = vld [vmem:[#allocation18 + $0x60] sm:$0xff]
    %v4278 = vld [vmem:[#allocation18 + $0x68] sm:$0xff]
    %v4279 = vld [vmem:[#allocation18 + $0x70] sm:$0xff]
    %v4280 = vld [vmem:[#allocation18 + $0x78] sm:$0xff]
    %v4281 = vld [vmem:[#allocation18 + $0x80] sm:$0xff]
    %v4282 = vld [vmem:[#allocation18 + $0x88] sm:$0xff]
    %v4283 = vld [vmem:[#allocation18 + $0x90] sm:$0xff]
    %v4284 = vld [vmem:[#allocation18 + $0x98] sm:$0xff]
    %v4285 = vld [vmem:[#allocation18 + $0xa0] sm:$0xff]
    %v4286 = vld [vmem:[#allocation18 + $0xa8] sm:$0xff]
    %v4287 = vld [vmem:[#allocation18 + $0xb0] sm:$0xff]
    %v4288 = vld [vmem:[#allocation18 + $0xb8] sm:$0xff]
    %v4289 = vld [vmem:[#allocation18 + $0xc0] sm:$0xff]
    %v4290 = vld [vmem:[#allocation18 + $0xc8] sm:$0xff]
    %v4291 = vld [vmem:[#allocation18 + $0xd0] sm:$0xff]
    %v4292 = vld [vmem:[#allocation18 + $0xd8] sm:$0xff]
    %v4293 = vld [vmem:[#allocation18 + $0xe0] sm:$0xff]
    %v4294 = vld [vmem:[#allocation18 + $0xe8] sm:$0xff]
    %v4295 = vld [vmem:[#allocation18 + $0xf0] sm:$0xff]
    %v4296 = vld [vmem:[#allocation18 + $0xf8] sm:$0xff]
    %v4297 = vld [vmem:[#allocation18 + $0x100] sm:$0xff]
    %v4298 = vld [vmem:[#allocation18 + $0x108] sm:$0xff]
    %4302 = vrot.lane.b32.xlu0 %v4060, 104
    %v4303 = vpop.permute.xlu0 %4302
    %4304 = vrot.lane.b32.xlu0 %v4061, 104
    %v4305 = vpop.permute.xlu0 %4304
    %4306 = vrot.lane.b32.xlu0 %v4062, 104
    %v4307 = vpop.permute.xlu0 %4306
    %4311 = vmatprep.subr.mxu0 0.0
    %4312 = vmatpush1.msra.mxu0 %v4303
    %4313 = vmatprep.subr.mxu0 0.0
    %4314 = vmatpush1.msra.mxu0 %v4305
    %4315 = vmatprep.subr.mxu0 0.0
    %4316 = vmatpush1.msra.mxu0 %v4307
    %4317 = vmatprep.subr.mxu0 0.0
    %4318 = vmatpush1.msra.mxu0 0.0
    %4319 = vmatprep.subr.mxu0 0.0
    %4320 = vmatpush1.msra.mxu0 0.0
    %4321 = vmatprep.subr.mxu0 0.0
    %4322 = vmatpush1.msra.mxu0 0.0
    %4323 = vmatprep.subr.mxu0 0.0
    %4324 = vmatpush1.msra.mxu0 0.0
    %4325 = vmatprep.subr.mxu0 0.0
    %4326 = vmatpush1.msra.mxu0 0.0
    %4327 = vmatprep.subr.mxu0 0.0
    %4328 = vmatpush1.msra.mxu0 0.0
    %4329 = vmatprep.subr.mxu0 0.0
    %4330 = vmatpush1.msra.mxu0 0.0
    %4331 = vmatprep.subr.mxu0 0.0
    %4332 = vmatpush1.msra.mxu0 0.0
    %4333 = vmatprep.subr.mxu0 0.0
    %4334 = vmatpush1.msra.mxu0 0.0
    %4335 = vmatprep.subr.mxu0 0.0
    %4336 = vmatpush1.msra.mxu0 0.0
    %4337 = vmatprep.subr.mxu0 0.0
    %4338 = vmatpush1.msra.mxu0 0.0
    %4339 = vmatprep.subr.mxu0 0.0
    %4340 = vmatpush1.msra.mxu0 0.0
    %4341 = vmatprep.subr.mxu0 0.0
    %4342 = vmatpush1.msra.mxu0 0.0
    %4343 = vmatprep.subr.mxu0 0.0
    %4344 = vmatpush1.msra.mxu0 0.0
    %4345 = vmatprep.subr.mxu0 0.0
    %4346 = vmatpush1.msra.mxu0 0.0
    %4347 = vmatprep.subr.mxu0 0.0
    %4348 = vmatpush1.msra.mxu0 0.0
    %4349 = vmatprep.subr.mxu0 0.0
    %4350 = vmatpush1.msra.mxu0 0.0
    %4351 = vmatprep.subr.mxu0 0.0
    %4352 = vmatpush1.msra.mxu0 0.0
    %4353 = vmatprep.subr.mxu0 0.0
    %4354 = vmatpush1.msra.mxu0 0.0
    %4355 = vmatprep.subr.mxu0 0.0
    %4356 = vmatpush1.msra.mxu0 0.0
    %4357 = vmatprep.subr.mxu0 0.0
    %4358 = vmatpush1.msra.mxu0 0.0
    %4359 = vmatprep.subr.mxu0 0.0
    %4360 = vmatpush1.msra.mxu0 0.0
    %4361 = vmatprep.subr.mxu0 0.0
    %4362 = vmatpush1.msra.mxu0 0.0
    %4363 = vmatprep.subr.mxu0 0.0
    %4364 = vmatpush1.msra.mxu0 0.0
    %4365 = vmatprep.subr.mxu0 0.0
    %4366 = vmatpush1.msra.mxu0 0.0
    %4367 = vmatprep.subr.mxu0 0.0
    %4368 = vmatpush1.msra.mxu0 0.0
    %4369 = vmatprep.subr.mxu0 0.0
    %4370 = vmatpush1.msra.mxu0 0.0
    %4371 = vmatprep.subr.mxu0 0.0
    %4372 = vmatpush1.msra.mxu0 0.0
    %4373 = vmatprep.subr.mxu0 0.0
    %4374 = vmatpush1.msra.mxu0 0.0
    %4375 = vmatprep.mubr.f32.mxu0 0.0
    %4376 = vmatmul.mubr.f32.gmra.mrb[0].mxu0 %v4065
    %v4377 = vpop.f32.mrb[0].mxu0
    %v4378 = vadd.f32 0.0, %v4377
    %v4379 = vpop.f32.mrb[0].mxu0
    %4380 = vmatprep.mubr.f32.mxu0 0.0
    %4381 = vmatmul.mubr.f32.gmra.mrb[0].mxu0 %v4068
    %v4382 = vpop.f32.mrb[0].mxu0
    %v4383 = vadd.f32 0.0, %v4382
    %v4384 = vpop.f32.mrb[0].mxu0
    %4385 = vmatprep.mubr.f32.mxu0 0.0
    %4386 = vmatmul.mubr.f32.gmra.mrb[0].mxu0 %v4071
    %v4387 = vpop.f32.mrb[0].mxu0
    %v4388 = vadd.f32 0.0, %v4387
    %v4389 = vpop.f32.mrb[0].mxu0
    %4390 = vmatprep.mubr.f32.mxu0 0.0
    %4391 = vmatmul.mubr.f32.gmra.mrb[0].mxu0 %v4074
    %v4392 = vpop.f32.mrb[0].mxu0
    %v4393 = vadd.f32 0.0, %v4392
    %v4394 = vpop.f32.mrb[0].mxu0
    %4395 = vmatprep.mubr.f32.mxu0 0.0
    %4396 = vmatmul.mubr.f32.gmra.mrb[0].mxu0 %v4077
    %v4397 = vpop.f32.mrb[0].mxu0
    %v4398 = vadd.f32 0.0, %v4397
    %v4399 = vpop.f32.mrb[0].mxu0
    %4400 = vmatprep.mubr.f32.mxu0 0.0
    %4401 = vmatmul.mubr.f32.gmra.mrb[0].mxu0 %v4080
    %v4402 = vpop.f32.mrb[0].mxu0
    %v4403 = vadd.f32 0.0, %v4402
    %v4404 = vpop.f32.mrb[0].mxu0
    %4405 = vmatprep.mubr.f32.mxu0 0.0
    %4406 = vmatmul.mubr.f32.gmra.mrb[0].mxu0 %v4083
    %v4407 = vpop.f32.mrb[0].mxu0
    %v4408 = vadd.f32 0.0, %v4407
    %v4409 = vpop.f32.mrb[0].mxu0
    %4410 = vmatprep.mubr.f32.mxu0 0.0
    %4411 = vmatmul.mubr.f32.gmra.mrb[0].mxu0 %v4086
    %v4412 = vpop.f32.mrb[0].mxu0
    %v4413 = vadd.f32 0.0, %v4412
    %v4414 = vpop.f32.mrb[0].mxu0
    %4415 = vmatprep.mubr.f32.mxu0 0.0
    %4416 = vmatmul.mubr.f32.gmra.mrb[0].mxu0 %v4089
    %v4417 = vpop.f32.mrb[0].mxu0
    %v4418 = vadd.f32 0.0, %v4417
    %v4419 = vpop.f32.mrb[0].mxu0
    %4420 = vmatprep.mubr.f32.mxu0 0.0
    %4421 = vmatmul.mubr.f32.gmra.mrb[0].mxu0 %v4092
    %v4422 = vpop.f32.mrb[0].mxu0
    %v4423 = vadd.f32 0.0, %v4422
    %v4424 = vpop.f32.mrb[0].mxu0
    %4425 = vmatprep.mubr.f32.mxu0 0.0
    %4426 = vmatmul.mubr.f32.gmra.mrb[0].mxu0 %v4095
    %v4427 = vpop.f32.mrb[0].mxu0
    %v4428 = vadd.f32 0.0, %v4427
    %v4429 = vpop.f32.mrb[0].mxu0
    %4430 = vmatprep.mubr.f32.mxu0 0.0
    %4431 = vmatmul.mubr.f32.gmra.mrb[0].mxu0 %v4098
    %v4432 = vpop.f32.mrb[0].mxu0
    %v4433 = vadd.f32 0.0, %v4432
    %v4434 = vpop.f32.mrb[0].mxu0
    %4435 = vmatprep.mubr.f32.mxu0 0.0
    %4436 = vmatmul.mubr.f32.gmra.mrb[0].mxu0 %v4101
    %v4437 = vpop.f32.mrb[0].mxu0
    %v4438 = vadd.f32 0.0, %v4437
    %v4439 = vpop.f32.mrb[0].mxu0
    %4440 = vmatprep.mubr.f32.mxu0 0.0
    %4441 = vmatmul.mubr.f32.gmra.mrb[0].mxu0 %v4104
    %v4442 = vpop.f32.mrb[0].mxu0
    %v4443 = vadd.f32 0.0, %v4442
    %v4444 = vpop.f32.mrb[0].mxu0
    %4445 = vmatprep.mubr.f32.mxu0 0.0
    %4446 = vmatmul.mubr.f32.gmra.mrb[0].mxu0 %v4107
    %v4447 = vpop.f32.mrb[0].mxu0
    %v4448 = vadd.f32 0.0, %v4447
    %v4449 = vpop.f32.mrb[0].mxu0
    %4450 = vmatprep.mubr.f32.mxu0 0.0
    %4451 = vmatmul.mubr.f32.gmra.mrb[0].mxu0 %v4110
    %v4452 = vpop.f32.mrb[0].mxu0
    %v4453 = vadd.f32 0.0, %v4452
    %v4454 = vpop.f32.mrb[0].mxu0
    %4455 = vmatprep.mubr.f32.mxu0 0.0
    %4456 = vmatmul.mubr.f32.gmra.mrb[0].mxu0 %v4113
    %v4457 = vpop.f32.mrb[0].mxu0
    %v4458 = vadd.f32 0.0, %v4457
    %v4459 = vpop.f32.mrb[0].mxu0
    %4460 = vdwg.mxu0
    %v4461 = vld [vmem:[#allocation18 + $0x110] sm:$0xff]
    %v4462 = vld [vmem:[#allocation18 + $0x118] sm:$0xff]
    %v4463 = vld [vmem:[#allocation18 + $0x120] sm:$0xff]
    %v4464 = vld [vmem:[#allocation18 + $0x128] sm:$0xff]
    %v4465 = vld [vmem:[#allocation18 + $0x130] sm:$0xff]
    %v4466 = vld [vmem:[#allocation18 + $0x138] sm:$0xff]
    %v4467 = vld [vmem:[#allocation18 + $0x140] sm:$0xff]
    %v4468 = vld [vmem:[#allocation18 + $0x148] sm:$0xff]
    %v4469 = vld [vmem:[#allocation18 + $0x150] sm:$0xff]
    %v4470 = vld [vmem:[#allocation18 + $0x158] sm:$0xff]
    %v4471 = vld [vmem:[#allocation18 + $0x160] sm:$0xff]
    %v4472 = vld [vmem:[#allocation18 + $0x168] sm:$0xff]
    %v4473 = vld [vmem:[#allocation18 + $0x170] sm:$0xff]
    %v4474 = vld [vmem:[#allocation18 + $0x178] sm:$0xff]
    %v4475 = vld [vmem:[#allocation18 + $0x180] sm:$0xff]
    %v4476 = vld [vmem:[#allocation18 + $0x188] sm:$0xff]
    %v4477 = vld [vmem:[#allocation18 + $0x190] sm:$0xff]
    %v4478 = vld [vmem:[#allocation18 + $0x198] sm:$0xff]
    %v4479 = vld [vmem:[#allocation18 + $0x1a0] sm:$0xff]
    %v4480 = vld [vmem:[#allocation18 + $0x1a8] sm:$0xff]
    %v4481 = vld [vmem:[#allocation18 + $0x1b0] sm:$0xff]
    %v4482 = vld [vmem:[#allocation18 + $0x1b8] sm:$0xff]
    %v4483 = vld [vmem:[#allocation18 + $0x1c0] sm:$0xff]
    %v4484 = vld [vmem:[#allocation18 + $0x1c8] sm:$0xff]
    %v4485 = vld [vmem:[#allocation18 + $0x1d0] sm:$0xff]
    %v4486 = vld [vmem:[#allocation18 + $0x1d8] sm:$0xff]
    %v4487 = vld [vmem:[#allocation18 + $0x1e0] sm:$0xff]
    %v4488 = vld [vmem:[#allocation18 + $0x1e8] sm:$0xff]
    %v4489 = vld [vmem:[#allocation18 + $0x1f0] sm:$0xff]
    %v4490 = vld [vmem:[#allocation18 + $0x1f8] sm:$0xff]
    %v4491 = vld [vmem:[#allocation18 + $0x200] sm:$0xff]
    %v4492 = vld [vmem:[#allocation18 + $0x208] sm:$0xff]
    %v4493 = vld [vmem:[#allocation18 + $0x210] sm:$0xff]
    %v4494 = vld [vmem:[#allocation18 + $0x218] sm:$0xff]
    %v4496 = vsel %vm3238, %v4462, 0
    %v4499 = vsel %vm3238, %v4464, 0
    %v4502 = vsel %vm3238, %v4466, 0
    %v4505 = vsel %vm3238, %v4468, 0
    %v4508 = vsel %vm3238, %v4470, 0
    %v4511 = vsel %vm3238, %v4472, 0
    %v4514 = vsel %vm3238, %v4474, 0
    %v4517 = vsel %vm3238, %v4476, 0
    %v4520 = vsel %vm3238, %v4478, 0
    %v4523 = vsel %vm3238, %v4480, 0
    %v4526 = vsel %vm3238, %v4482, 0
    %v4529 = vsel %vm3238, %v4484, 0
    %v4532 = vsel %vm3238, %v4486, 0
    %v4535 = vsel %vm3238, %v4488, 0
    %v4538 = vsel %vm3238, %v4490, 0
    %v4541 = vsel %vm3238, %v4492, 0
    %v4544 = vsel %vm3238, %v4494, 0
    %4546 = vmatprep.subr.mxu0 0.0
    %4547 = vmatpush1.msra.mxu0 %v4378
    %4548 = vmatprep.subr.mxu0 0.0
    %4549 = vmatpush1.msra.mxu0 %v4383
    %4550 = vmatprep.subr.mxu0 0.0
    %4551 = vmatpush1.msra.mxu0 %v4388
    %4552 = vmatprep.subr.mxu0 0.0
    %4553 = vmatpush1.msra.mxu0 %v4393
    %4554 = vmatprep.subr.mxu0 0.0
    %4555 = vmatpush1.msra.mxu0 %v4398
    %4556 = vmatprep.subr.mxu0 0.0
    %4557 = vmatpush1.msra.mxu0 %v4403
    %4558 = vmatprep.subr.mxu0 0.0
    %4559 = vmatpush1.msra.mxu0 %v4408
    %4560 = vmatprep.subr.mxu0 0.0
    %4561 = vmatpush1.msra.mxu0 %v4413
    %4562 = vmatprep.subr.mxu0 0.0
    %4563 = vmatpush1.msra.mxu0 %v4418
    %4564 = vmatprep.subr.mxu0 0.0
    %4565 = vmatpush1.msra.mxu0 %v4423
    %4566 = vmatprep.subr.mxu0 0.0
    %4567 = vmatpush1.msra.mxu0 %v4428
    %4568 = vmatprep.subr.mxu0 0.0
    %4569 = vmatpush1.msra.mxu0 %v4433
    %4570 = vmatprep.subr.mxu0 0.0
    %4571 = vmatpush1.msra.mxu0 %v4438
    %4572 = vmatprep.subr.mxu0 0.0
    %4573 = vmatpush1.msra.mxu0 %v4443
    %4574 = vmatprep.subr.mxu0 0.0
    %4575 = vmatpush1.msra.mxu0 %v4448
    %4576 = vmatprep.subr.mxu0 0.0
    %4577 = vmatpush1.msra.mxu0 %v4453
    %4578 = vmatprep.subr.mxu0 0.0
    %4579 = vmatpush1.msra.mxu0 %v4458
    %4580 = vmatprep.subr.mxu0 0.0
    %4581 = vmatpush1.msra.mxu0 0.0
    %4582 = vmatprep.subr.mxu0 0.0
    %4583 = vmatpush1.msra.mxu0 0.0
    %4584 = vmatprep.subr.mxu0 0.0
    %4585 = vmatpush1.msra.mxu0 0.0
    %4586 = vmatprep.subr.mxu0 0.0
    %4587 = vmatpush1.msra.mxu0 0.0
    %4588 = vmatprep.subr.mxu0 0.0
    %4589 = vmatpush1.msra.mxu0 0.0
    %4590 = vmatprep.subr.mxu0 0.0
    %4591 = vmatpush1.msra.mxu0 0.0
    %4592 = vmatprep.subr.mxu0 0.0
    %4593 = vmatpush1.msra.mxu0 0.0
    %4594 = vmatprep.subr.mxu0 0.0
    %4595 = vmatpush1.msra.mxu0 0.0
    %4596 = vmatprep.subr.mxu0 0.0
    %4597 = vmatpush1.msra.mxu0 0.0
    %4598 = vmatprep.subr.mxu0 0.0
    %4599 = vmatpush1.msra.mxu0 0.0
    %4600 = vmatprep.subr.mxu0 0.0
    %4601 = vmatpush1.msra.mxu0 0.0
    %4602 = vmatprep.subr.mxu0 0.0
    %4603 = vmatpush1.msra.mxu0 0.0
    %4604 = vmatprep.subr.mxu0 0.0
    %4605 = vmatpush1.msra.mxu0 0.0
    %4606 = vmatprep.subr.mxu0 0.0
    %4607 = vmatpush1.msra.mxu0 0.0
    %4608 = vmatprep.subr.mxu0 0.0
    %4609 = vmatpush1.msra.mxu0 0.0
    %4610 = vmatprep.mubr.f32.mxu0 %v4496
    %4611 = vmatmul.mubr.f32.gmra.mrb[0].mxu0 %v4461
    %v4612 = vpop.f32.mrb[0].mxu0
    %v4613 = vadd.f32 0.0, %v4612
    %v4614 = vpop.f32.mrb[0].mxu0
    %4615 = vmatprep.mubr.f32.mxu0 %v4499
    %4616 = vmatmul.mubr.f32.gmra.mrb[0].mxu0 %v4463
    %v4617 = vpop.f32.mrb[0].mxu0
    %v4618 = vadd.f32 0.0, %v4617
    %v4619 = vpop.f32.mrb[0].mxu0
    %4620 = vmatprep.mubr.f32.mxu0 %v4502
    %4621 = vmatmul.mubr.f32.gmra.mrb[0].mxu0 %v4465
    %v4622 = vpop.f32.mrb[0].mxu0
    %v4623 = vadd.f32 0.0, %v4622
    %v4624 = vpop.f32.mrb[0].mxu0
    %4625 = vmatprep.mubr.f32.mxu0 %v4505
    %4626 = vmatmul.mubr.f32.gmra.mrb[0].mxu0 %v4467
    %v4627 = vpop.f32.mrb[0].mxu0
    %v4628 = vadd.f32 0.0, %v4627
    %v4629 = vpop.f32.mrb[0].mxu0
    %4630 = vmatprep.mubr.f32.mxu0 %v4508
    %4631 = vmatmul.mubr.f32.gmra.mrb[0].mxu0 %v4469
    %v4632 = vpop.f32.mrb[0].mxu0
    %v4633 = vadd.f32 0.0, %v4632
    %v4634 = vpop.f32.mrb[0].mxu0
    %4635 = vmatprep.mubr.f32.mxu0 %v4511
    %4636 = vmatmul.mubr.f32.gmra.mrb[0].mxu0 %v4471
    %v4637 = vpop.f32.mrb[0].mxu0
    %v4638 = vadd.f32 0.0, %v4637
    %v4639 = vpop.f32.mrb[0].mxu0
    %4640 = vmatprep.mubr.f32.mxu0 %v4514
    %4641 = vmatmul.mubr.f32.gmra.mrb[0].mxu0 %v4473
    %v4642 = vpop.f32.mrb[0].mxu0
    %v4643 = vadd.f32 0.0, %v4642
    %v4644 = vpop.f32.mrb[0].mxu0
    %4645 = vmatprep.mubr.f32.mxu0 %v4517
    %4646 = vmatmul.mubr.f32.gmra.mrb[0].mxu0 %v4475
    %v4647 = vpop.f32.mrb[0].mxu0
    %v4648 = vadd.f32 0.0, %v4647
    %v4649 = vpop.f32.mrb[0].mxu0
    %4650 = vmatprep.mubr.f32.mxu0 %v4520
    %4651 = vmatmul.mubr.f32.gmra.mrb[0].mxu0 %v4477
    %v4652 = vpop.f32.mrb[0].mxu0
    %v4653 = vadd.f32 0.0, %v4652
    %v4654 = vpop.f32.mrb[0].mxu0
    %4655 = vmatprep.mubr.f32.mxu0 %v4523
    %4656 = vmatmul.mubr.f32.gmra.mrb[0].mxu0 %v4479
    %v4657 = vpop.f32.mrb[0].mxu0
    %v4658 = vadd.f32 0.0, %v4657
    %v4659 = vpop.f32.mrb[0].mxu0
    %4660 = vmatprep.mubr.f32.mxu0 %v4526
    %4661 = vmatmul.mubr.f32.gmra.mrb[0].mxu0 %v4481
    %v4662 = vpop.f32.mrb[0].mxu0
    %v4663 = vadd.f32 0.0, %v4662
    %v4664 = vpop.f32.mrb[0].mxu0
    %4665 = vmatprep.mubr.f32.mxu0 %v4529
    %4666 = vmatmul.mubr.f32.gmra.mrb[0].mxu0 %v4483
    %v4667 = vpop.f32.mrb[0].mxu0
    %v4668 = vadd.f32 0.0, %v4667
    %v4669 = vpop.f32.mrb[0].mxu0
    %4670 = vmatprep.mubr.f32.mxu0 %v4532
    %4671 = vmatmul.mubr.f32.gmra.mrb[0].mxu0 %v4485
    %v4672 = vpop.f32.mrb[0].mxu0
    %v4673 = vadd.f32 0.0, %v4672
    %v4674 = vpop.f32.mrb[0].mxu0
    %4675 = vmatprep.mubr.f32.mxu0 %v4535
    %4676 = vmatmul.mubr.f32.gmra.mrb[0].mxu0 %v4487
    %v4677 = vpop.f32.mrb[0].mxu0
    %v4678 = vadd.f32 0.0, %v4677
    %v4679 = vpop.f32.mrb[0].mxu0
    %4680 = vmatprep.mubr.f32.mxu0 %v4538
    %4681 = vmatmul.mubr.f32.gmra.mrb[0].mxu0 %v4489
    %v4682 = vpop.f32.mrb[0].mxu0
    %v4683 = vadd.f32 0.0, %v4682
    %v4684 = vpop.f32.mrb[0].mxu0
    %4685 = vmatprep.mubr.f32.mxu0 %v4541
    %4686 = vmatmul.mubr.f32.gmra.mrb[0].mxu0 %v4491
    %v4687 = vpop.f32.mrb[0].mxu0
    %v4688 = vadd.f32 0.0, %v4687
    %v4689 = vpop.f32.mrb[0].mxu0
    %4690 = vmatprep.mubr.f32.mxu0 %v4544
    %4691 = vmatmul.mubr.f32.gmra.mrb[0].mxu0 %v4493
    %v4692 = vpop.f32.mrb[0].mxu0
    %v4693 = vadd.f32 0.0, %v4692
    %v4694 = vpop.f32.mrb[0].mxu0
    %4695 = vdwg.mxu0
    %v4697 = vsel %vm3238, %v4266, 0
    %v4700 = vsel %vm3238, %v4268, 0
    %v4703 = vsel %vm3238, %v4270, 0
    %v4706 = vsel %vm3238, %v4272, 0
    %v4709 = vsel %vm3238, %v4274, 0
    %v4712 = vsel %vm3238, %v4276, 0
    %v4715 = vsel %vm3238, %v4278, 0
    %v4718 = vsel %vm3238, %v4280, 0
    %v4721 = vsel %vm3238, %v4282, 0
    %v4724 = vsel %vm3238, %v4284, 0
    %v4727 = vsel %vm3238, %v4286, 0
    %v4730 = vsel %vm3238, %v4288, 0
    %v4733 = vsel %vm3238, %v4290, 0
    %v4736 = vsel %vm3238, %v4292, 0
    %v4739 = vsel %vm3238, %v4294, 0
    %v4742 = vsel %vm3238, %v4296, 0
    %v4745 = vsel %vm3238, %v4298, 0
    %4747 = vmatprep.subr.mxu0 0.0
    %4748 = vmatpush1.msra.mxu0 %v4182
    %4749 = vmatprep.subr.mxu0 0.0
    %4750 = vmatpush1.msra.mxu0 %v4187
    %4751 = vmatprep.subr.mxu0 0.0
    %4752 = vmatpush1.msra.mxu0 %v4192
    %4753 = vmatprep.subr.mxu0 0.0
    %4754 = vmatpush1.msra.mxu0 %v4197
    %4755 = vmatprep.subr.mxu0 0.0
    %4756 = vmatpush1.msra.mxu0 %v4202
    %4757 = vmatprep.subr.mxu0 0.0
    %4758 = vmatpush1.msra.mxu0 %v4207
    %4759 = vmatprep.subr.mxu0 0.0
    %4760 = vmatpush1.msra.mxu0 %v4212
    %4761 = vmatprep.subr.mxu0 0.0
    %4762 = vmatpush1.msra.mxu0 %v4217
    %4763 = vmatprep.subr.mxu0 0.0
    %4764 = vmatpush1.msra.mxu0 %v4222
    %4765 = vmatprep.subr.mxu0 0.0
    %4766 = vmatpush1.msra.mxu0 %v4227
    %4767 = vmatprep.subr.mxu0 0.0
    %4768 = vmatpush1.msra.mxu0 %v4232
    %4769 = vmatprep.subr.mxu0 0.0
    %4770 = vmatpush1.msra.mxu0 %v4237
    %4771 = vmatprep.subr.mxu0 0.0
    %4772 = vmatpush1.msra.mxu0 %v4242
    %4773 = vmatprep.subr.mxu0 0.0
    %4774 = vmatpush1.msra.mxu0 %v4247
    %4775 = vmatprep.subr.mxu0 0.0
    %4776 = vmatpush1.msra.mxu0 %v4252
    %4777 = vmatprep.subr.mxu0 0.0
    %4778 = vmatpush1.msra.mxu0 %v4257
    %4779 = vmatprep.subr.mxu0 0.0
    %4780 = vmatpush1.msra.mxu0 %v4262
    %4781 = vmatprep.subr.mxu0 0.0
    %4782 = vmatpush1.msra.mxu0 0.0
    %4783 = vmatprep.subr.mxu0 0.0
    %4784 = vmatpush1.msra.mxu0 0.0
    %4785 = vmatprep.subr.mxu0 0.0
    %4786 = vmatpush1.msra.mxu0 0.0
    %4787 = vmatprep.subr.mxu0 0.0
    %4788 = vmatpush1.msra.mxu0 0.0
    %4789 = vmatprep.subr.mxu0 0.0
    %4790 = vmatpush1.msra.mxu0 0.0
    %4791 = vmatprep.subr.mxu0 0.0
    %4792 = vmatpush1.msra.mxu0 0.0
    %4793 = vmatprep.subr.mxu0 0.0
    %4794 = vmatpush1.msra.mxu0 0.0
    %4795 = vmatprep.subr.mxu0 0.0
    %4796 = vmatpush1.msra.mxu0 0.0
    %4797 = vmatprep.subr.mxu0 0.0
    %4798 = vmatpush1.msra.mxu0 0.0
    %4799 = vmatprep.subr.mxu0 0.0
    %4800 = vmatpush1.msra.mxu0 0.0
    %4801 = vmatprep.subr.mxu0 0.0
    %4802 = vmatpush1.msra.mxu0 0.0
    %4803 = vmatprep.subr.mxu0 0.0
    %4804 = vmatpush1.msra.mxu0 0.0
    %4805 = vmatprep.subr.mxu0 0.0
    %4806 = vmatpush1.msra.mxu0 0.0
    %4807 = vmatprep.subr.mxu0 0.0
    %4808 = vmatpush1.msra.mxu0 0.0
    %4809 = vmatprep.subr.mxu0 0.0
    %4810 = vmatpush1.msra.mxu0 0.0
    %4811 = vmatprep.mubr.f32.mxu0 %v4697
    %4812 = vmatmul.mubr.f32.gmra.mrb[0].mxu0 %v4265
    %v4813 = vpop.f32.mrb[0].mxu0
    %v4814 = vadd.f32 %v4613, %v4813
    %v4815 = vpop.f32.mrb[0].mxu0
    %4816 = vmatprep.mubr.f32.mxu0 %v4700
    %4817 = vmatmul.mubr.f32.gmra.mrb[0].mxu0 %v4267
    %v4818 = vpop.f32.mrb[0].mxu0
    %v4819 = vadd.f32 %v4618, %v4818
    %v4820 = vpop.f32.mrb[0].mxu0
    %4821 = vmatprep.mubr.f32.mxu0 %v4703
    %4822 = vmatmul.mubr.f32.gmra.mrb[0].mxu0 %v4269
    %v4823 = vpop.f32.mrb[0].mxu0
    %v4824 = vadd.f32 %v4623, %v4823
    %v4825 = vpop.f32.mrb[0].mxu0
    %4826 = vmatprep.mubr.f32.mxu0 %v4706
    %4827 = vmatmul.mubr.f32.gmra.mrb[0].mxu0 %v4271
    %v4828 = vpop.f32.mrb[0].mxu0
    %v4829 = vadd.f32 %v4628, %v4828
    %v4830 = vpop.f32.mrb[0].mxu0
    %4831 = vmatprep.mubr.f32.mxu0 %v4709
    %4832 = vmatmul.mubr.f32.gmra.mrb[0].mxu0 %v4273
    %v4833 = vpop.f32.mrb[0].mxu0
    %v4834 = vadd.f32 %v4633, %v4833
    %v4835 = vpop.f32.mrb[0].mxu0
    %4836 = vmatprep.mubr.f32.mxu0 %v4712
    %4837 = vmatmul.mubr.f32.gmra.mrb[0].mxu0 %v4275
    %v4838 = vpop.f32.mrb[0].mxu0
    %v4839 = vadd.f32 %v4638, %v4838
    %v4840 = vpop.f32.mrb[0].mxu0
    %4841 = vmatprep.mubr.f32.mxu0 %v4715
    %4842 = vmatmul.mubr.f32.gmra.mrb[0].mxu0 %v4277
    %v4843 = vpop.f32.mrb[0].mxu0
    %v4844 = vadd.f32 %v4643, %v4843
    %v4845 = vpop.f32.mrb[0].mxu0
    %4846 = vmatprep.mubr.f32.mxu0 %v4718
    %4847 = vmatmul.mubr.f32.gmra.mrb[0].mxu0 %v4279
    %v4848 = vpop.f32.mrb[0].mxu0
    %v4849 = vadd.f32 %v4648, %v4848
    %v4850 = vpop.f32.mrb[0].mxu0
    %4851 = vmatprep.mubr.f32.mxu0 %v4721
    %4852 = vmatmul.mubr.f32.gmra.mrb[0].mxu0 %v4281
    %v4853 = vpop.f32.mrb[0].mxu0
    %v4854 = vadd.f32 %v4653, %v4853
    %v4855 = vpop.f32.mrb[0].mxu0
    %4856 = vmatprep.mubr.f32.mxu0 %v4724
    %4857 = vmatmul.mubr.f32.gmra.mrb[0].mxu0 %v4283
    %v4858 = vpop.f32.mrb[0].mxu0
    %v4859 = vadd.f32 %v4658, %v4858
    %v4860 = vpop.f32.mrb[0].mxu0
    %4861 = vmatprep.mubr.f32.mxu0 %v4727
    %4862 = vmatmul.mubr.f32.gmra.mrb[0].mxu0 %v4285
    %v4863 = vpop.f32.mrb[0].mxu0
    %v4864 = vadd.f32 %v4663, %v4863
    %v4865 = vpop.f32.mrb[0].mxu0
    %4866 = vmatprep.mubr.f32.mxu0 %v4730
    %4867 = vmatmul.mubr.f32.gmra.mrb[0].mxu0 %v4287
    %v4868 = vpop.f32.mrb[0].mxu0
    %v4869 = vadd.f32 %v4668, %v4868
    %v4870 = vpop.f32.mrb[0].mxu0
    %4871 = vmatprep.mubr.f32.mxu0 %v4733
    %4872 = vmatmul.mubr.f32.gmra.mrb[0].mxu0 %v4289
    %v4873 = vpop.f32.mrb[0].mxu0
    %v4874 = vadd.f32 %v4673, %v4873
    %v4875 = vpop.f32.mrb[0].mxu0
    %4876 = vmatprep.mubr.f32.mxu0 %v4736
    %4877 = vmatmul.mubr.f32.gmra.mrb[0].mxu0 %v4291
    %v4878 = vpop.f32.mrb[0].mxu0
    %v4879 = vadd.f32 %v4678, %v4878
    %v4880 = vpop.f32.mrb[0].mxu0
    %4881 = vmatprep.mubr.f32.mxu0 %v4739
    %4882 = vmatmul.mubr.f32.gmra.mrb[0].mxu0 %v4293
    %v4883 = vpop.f32.mrb[0].mxu0
    %v4884 = vadd.f32 %v4683, %v4883
    %v4885 = vpop.f32.mrb[0].mxu0
    %4886 = vmatprep.mubr.f32.mxu0 %v4742
    %4887 = vmatmul.mubr.f32.gmra.mrb[0].mxu0 %v4295
    %v4888 = vpop.f32.mrb[0].mxu0
    %v4889 = vadd.f32 %v4688, %v4888
    %v4890 = vpop.f32.mrb[0].mxu0
    %4891 = vmatprep.mubr.f32.mxu0 %v4745
    %4892 = vmatmul.mubr.f32.gmra.mrb[0].mxu0 %v4297
    %v4893 = vpop.f32.mrb[0].mxu0
    %v4894 = vadd.f32 %v4693, %v4893
    %v4895 = vpop.f32.mrb[0].mxu0
    %4896 = vdwg.mxu0
    %v4897 = vld [vmem:[#allocation21] sm:$0xff]
    %v4898 = vld [vmem:[#allocation21 + $0x8] sm:$0xff]
    %v4899 = vld [vmem:[#allocation21 + $0x10] sm:$0xff]
    %v4900 = vld [vmem:[#allocation21 + $0x18] sm:$0xff]
    %v4901 = vld [vmem:[#allocation21 + $0x20] sm:$0xff]
    %v4902 = vld [vmem:[#allocation21 + $0x28] sm:$0xff]
    %v4903 = vld [vmem:[#allocation21 + $0x30] sm:$0xff]
    %v4904 = vld [vmem:[#allocation21 + $0x38] sm:$0xff]
    %v4905 = vld [vmem:[#allocation21 + $0x40] sm:$0xff]
    %v4906 = vld [vmem:[#allocation21 + $0x48] sm:$0xff]
    %v4907 = vld [vmem:[#allocation21 + $0x50] sm:$0xff]
    %v4908 = vld [vmem:[#allocation21 + $0x58] sm:$0xff]
    %v4909 = vld [vmem:[#allocation21 + $0x60] sm:$0xff]
    %v4910 = vld [vmem:[#allocation21 + $0x68] sm:$0xff]
    %v4911 = vld [vmem:[#allocation21 + $0x70] sm:$0xff]
    %v4912 = vld [vmem:[#allocation21 + $0x78] sm:$0xff]
    %v4913 = vld [vmem:[#allocation21 + $0x80] sm:$0xff]
    %4915 = vset.pattern.permute.xlu0 0
    %4916 = vperm.xlu0 %4915, %v4897
    %v4917 = vpop.permute.xlu0 %4916
    %4920 = vset.pattern.permute.xlu0 0
    %4921 = vperm.xlu0 %4920, %v4898
    %v4922 = vpop.permute.xlu0 %4921
    %4925 = vset.pattern.permute.xlu0 0
    %4926 = vperm.xlu0 %4925, %v4899
    %v4927 = vpop.permute.xlu0 %4926
    %4930 = vset.pattern.permute.xlu0 0
    %4931 = vperm.xlu0 %4930, %v4900
    %v4932 = vpop.permute.xlu0 %4931
    %4935 = vset.pattern.permute.xlu0 0
    %4936 = vperm.xlu0 %4935, %v4901
    %v4937 = vpop.permute.xlu0 %4936
    %4940 = vset.pattern.permute.xlu0 0
    %4941 = vperm.xlu0 %4940, %v4902
    %v4942 = vpop.permute.xlu0 %4941
    %4945 = vset.pattern.permute.xlu0 0
    %4946 = vperm.xlu0 %4945, %v4903
    %v4947 = vpop.permute.xlu0 %4946
    %4950 = vset.pattern.permute.xlu0 0
    %4951 = vperm.xlu0 %4950, %v4904
    %v4952 = vpop.permute.xlu0 %4951
    %4955 = vset.pattern.permute.xlu0 0
    %4956 = vperm.xlu0 %4955, %v4905
    %v4957 = vpop.permute.xlu0 %4956
    %4960 = vset.pattern.permute.xlu0 0
    %4961 = vperm.xlu0 %4960, %v4906
    %v4962 = vpop.permute.xlu0 %4961
    %4965 = vset.pattern.permute.xlu0 0
    %4966 = vperm.xlu0 %4965, %v4907
    %v4967 = vpop.permute.xlu0 %4966
    %4970 = vset.pattern.permute.xlu0 0
    %4971 = vperm.xlu0 %4970, %v4908
    %v4972 = vpop.permute.xlu0 %4971
    %4975 = vset.pattern.permute.xlu0 0
    %4976 = vperm.xlu0 %4975, %v4909
    %v4977 = vpop.permute.xlu0 %4976
    %4980 = vset.pattern.permute.xlu0 0
    %4981 = vperm.xlu0 %4980, %v4910
    %v4982 = vpop.permute.xlu0 %4981
    %4985 = vset.pattern.permute.xlu0 0
    %4986 = vperm.xlu0 %4985, %v4911
    %v4987 = vpop.permute.xlu0 %4986
    %4990 = vset.pattern.permute.xlu0 0
    %4991 = vperm.xlu0 %4990, %v4912
    %v4992 = vpop.permute.xlu0 %4991
    %4995 = vset.pattern.permute.xlu0 0
    %4996 = vperm.xlu0 %4995, %v4913
    %v4997 = vpop.permute.xlu0 %4996
    %v4999 = vadd.f32 %v4814, %v4917
    %v5000 = vadd.f32 %v4819, %v4922
    %v5001 = vadd.f32 %v4824, %v4927
    %v5002 = vadd.f32 %v4829, %v4932
    %v5003 = vadd.f32 %v4834, %v4937
    %v5004 = vadd.f32 %v4839, %v4942
    %v5005 = vadd.f32 %v4844, %v4947
    %v5006 = vadd.f32 %v4849, %v4952
    %v5007 = vadd.f32 %v4854, %v4957
    %v5008 = vadd.f32 %v4859, %v4962
    %v5009 = vadd.f32 %v4864, %v4967
    %v5010 = vadd.f32 %v4869, %v4972
    %v5011 = vadd.f32 %v4874, %v4977
    %v5012 = vadd.f32 %v4879, %v4982
    %v5013 = vadd.f32 %v4884, %v4987
    %v5014 = vadd.f32 %v4889, %v4992
    %v5015 = vadd.f32 %v4894, %v4997
    %v5016 = vld [vmem:[#allocation24] sm:$0xff]
    %v5017 = vld [vmem:[#allocation24 + $0x8] sm:$0xff]
    %v5018 = vld [vmem:[#allocation24 + $0x10] sm:$0xff]
    %v5020 = vsel %vm4063, %v4999, 0
    %v5023 = vsel %vm4063, %v5000, 0
    %v5026 = vsel %vm4063, %v5001, 0
    %v5029 = vsel %vm4063, %v5002, 0
    %v5032 = vsel %vm4063, %v5003, 0
    %v5035 = vsel %vm4063, %v5004, 0
    %v5038 = vsel %vm4063, %v5005, 0
    %v5041 = vsel %vm4063, %v5006, 0
    %v5044 = vsel %vm4063, %v5007, 0
    %v5047 = vsel %vm4063, %v5008, 0
    %v5050 = vsel %vm4063, %v5009, 0
    %v5053 = vsel %vm4063, %v5010, 0
    %v5056 = vsel %vm4063, %v5011, 0
    %v5059 = vsel %vm4063, %v5012, 0
    %v5062 = vsel %vm4063, %v5013, 0
    %v5065 = vsel %vm4063, %v5014, 0
    %v5068 = vsel %vm4063, %v5015, 0
    %5070 = vmatprep.subr.mxu0 0.0
    %5071 = vmatpush1.msra.mxu0 %v5016
    %5072 = vmatprep.subr.mxu0 0.0
    %5073 = vmatpush1.msra.mxu0 %v5017
    %5074 = vmatprep.subr.mxu0 0.0
    %5075 = vmatpush1.msra.mxu0 %v5018
    %5076 = vmatprep.subr.mxu0 0.0
    %5077 = vmatpush1.msra.mxu0 0.0
    %5078 = vmatprep.subr.mxu0 0.0
    %5079 = vmatpush1.msra.mxu0 0.0
    %5080 = vmatprep.subr.mxu0 0.0
    %5081 = vmatpush1.msra.mxu0 0.0
    %5082 = vmatprep.subr.mxu0 0.0
    %5083 = vmatpush1.msra.mxu0 0.0
    %5084 = vmatprep.subr.mxu0 0.0
    %5085 = vmatpush1.msra.mxu0 0.0
    %5086 = vmatprep.subr.mxu0 0.0
    %5087 = vmatpush1.msra.mxu0 0.0
    %5088 = vmatprep.subr.mxu0 0.0
    %5089 = vmatpush1.msra.mxu0 0.0
    %5090 = vmatprep.subr.mxu0 0.0
    %5091 = vmatpush1.msra.mxu0 0.0
    %5092 = vmatprep.subr.mxu0 0.0
    %5093 = vmatpush1.msra.mxu0 0.0
    %5094 = vmatprep.subr.mxu0 0.0
    %5095 = vmatpush1.msra.mxu0 0.0
    %5096 = vmatprep.subr.mxu0 0.0
    %5097 = vmatpush1.msra.mxu0 0.0
    %5098 = vmatprep.subr.mxu0 0.0
    %5099 = vmatpush1.msra.mxu0 0.0
    %5100 = vmatprep.subr.mxu0 0.0
    %5101 = vmatpush1.msra.mxu0 0.0
    %5102 = vmatprep.subr.mxu0 0.0
    %5103 = vmatpush1.msra.mxu0 0.0
    %5104 = vmatprep.subr.mxu0 0.0
    %5105 = vmatpush1.msra.mxu0 0.0
    %5106 = vmatprep.subr.mxu0 0.0
    %5107 = vmatpush1.msra.mxu0 0.0
    %5108 = vmatprep.subr.mxu0 0.0
    %5109 = vmatpush1.msra.mxu0 0.0
    %5110 = vmatprep.subr.mxu0 0.0
    %5111 = vmatpush1.msra.mxu0 0.0
    %5112 = vmatprep.subr.mxu0 0.0
    %5113 = vmatpush1.msra.mxu0 0.0
    %5114 = vmatprep.subr.mxu0 0.0
    %5115 = vmatpush1.msra.mxu0 0.0
    %5116 = vmatprep.subr.mxu0 0.0
    %5117 = vmatpush1.msra.mxu0 0.0
    %5118 = vmatprep.subr.mxu0 0.0
    %5119 = vmatpush1.msra.mxu0 0.0
    %5120 = vmatprep.subr.mxu0 0.0
    %5121 = vmatpush1.msra.mxu0 0.0
    %5122 = vmatprep.subr.mxu0 0.0
    %5123 = vmatpush1.msra.mxu0 0.0
    %5124 = vmatprep.subr.mxu0 0.0
    %5125 = vmatpush1.msra.mxu0 0.0
    %5126 = vmatprep.subr.mxu0 0.0
    %5127 = vmatpush1.msra.mxu0 0.0
    %5128 = vmatprep.subr.mxu0 0.0
    %5129 = vmatpush1.msra.mxu0 0.0
    %5130 = vmatprep.subr.mxu0 0.0
    %5131 = vmatpush1.msra.mxu0 0.0
    %5132 = vmatprep.subr.mxu0 0.0
    %5133 = vmatpush1.msra.mxu0 0.0
    %5134 = vmatprep.mubr.f32.mxu0 0.0
    %5135 = vmatmul.mubr.f32.gmra.mrb[0].mxu0 %v5020
    %v5136 = vpop.f32.mrb[0].mxu0
    %v5137 = vadd.f32 0.0, %v5136
    %v5138 = vpop.f32.mrb[0].mxu0
    %5139 = vmatprep.mubr.f32.mxu0 0.0
    %5140 = vmatmul.mubr.f32.gmra.mrb[0].mxu0 %v5023
    %v5141 = vpop.f32.mrb[0].mxu0
    %v5142 = vadd.f32 0.0, %v5141
    %v5143 = vpop.f32.mrb[0].mxu0
    %5144 = vmatprep.mubr.f32.mxu0 0.0
    %5145 = vmatmul.mubr.f32.gmra.mrb[0].mxu0 %v5026
    %v5146 = vpop.f32.mrb[0].mxu0
    %v5147 = vadd.f32 0.0, %v5146
    %v5148 = vpop.f32.mrb[0].mxu0
    %5149 = vmatprep.mubr.f32.mxu0 0.0
    %5150 = vmatmul.mubr.f32.gmra.mrb[0].mxu0 %v5029
    %v5151 = vpop.f32.mrb[0].mxu0
    %v5152 = vadd.f32 0.0, %v5151
    %v5153 = vpop.f32.mrb[0].mxu0
    %5154 = vmatprep.mubr.f32.mxu0 0.0
    %5155 = vmatmul.mubr.f32.gmra.mrb[0].mxu0 %v5032
    %v5156 = vpop.f32.mrb[0].mxu0
    %v5157 = vadd.f32 0.0, %v5156
    %v5158 = vpop.f32.mrb[0].mxu0
    %5159 = vmatprep.mubr.f32.mxu0 0.0
    %5160 = vmatmul.mubr.f32.gmra.mrb[0].mxu0 %v5035
    %v5161 = vpop.f32.mrb[0].mxu0
    %v5162 = vadd.f32 0.0, %v5161
    %v5163 = vpop.f32.mrb[0].mxu0
    %5164 = vmatprep.mubr.f32.mxu0 0.0
    %5165 = vmatmul.mubr.f32.gmra.mrb[0].mxu0 %v5038
    %v5166 = vpop.f32.mrb[0].mxu0
    %v5167 = vadd.f32 0.0, %v5166
    %v5168 = vpop.f32.mrb[0].mxu0
    %5169 = vmatprep.mubr.f32.mxu0 0.0
    %5170 = vmatmul.mubr.f32.gmra.mrb[0].mxu0 %v5041
    %v5171 = vpop.f32.mrb[0].mxu0
    %v5172 = vadd.f32 0.0, %v5171
    %v5173 = vpop.f32.mrb[0].mxu0
    %5174 = vmatprep.mubr.f32.mxu0 0.0
    %5175 = vmatmul.mubr.f32.gmra.mrb[0].mxu0 %v5044
    %v5176 = vpop.f32.mrb[0].mxu0
    %v5177 = vadd.f32 0.0, %v5176
    %v5178 = vpop.f32.mrb[0].mxu0
    %5179 = vmatprep.mubr.f32.mxu0 0.0
    %5180 = vmatmul.mubr.f32.gmra.mrb[0].mxu0 %v5047
    %v5181 = vpop.f32.mrb[0].mxu0
    %v5182 = vadd.f32 0.0, %v5181
    %v5183 = vpop.f32.mrb[0].mxu0
    %5184 = vmatprep.mubr.f32.mxu0 0.0
    %5185 = vmatmul.mubr.f32.gmra.mrb[0].mxu0 %v5050
    %v5186 = vpop.f32.mrb[0].mxu0
    %v5187 = vadd.f32 0.0, %v5186
    %v5188 = vpop.f32.mrb[0].mxu0
    %5189 = vmatprep.mubr.f32.mxu0 0.0
    %5190 = vmatmul.mubr.f32.gmra.mrb[0].mxu0 %v5053
    %v5191 = vpop.f32.mrb[0].mxu0
    %v5192 = vadd.f32 0.0, %v5191
    %v5193 = vpop.f32.mrb[0].mxu0
    %5194 = vmatprep.mubr.f32.mxu0 0.0
    %5195 = vmatmul.mubr.f32.gmra.mrb[0].mxu0 %v5056
    %v5196 = vpop.f32.mrb[0].mxu0
    %v5197 = vadd.f32 0.0, %v5196
    %v5198 = vpop.f32.mrb[0].mxu0
    %5199 = vmatprep.mubr.f32.mxu0 0.0
    %5200 = vmatmul.mubr.f32.gmra.mrb[0].mxu0 %v5059
    %v5201 = vpop.f32.mrb[0].mxu0
    %v5202 = vadd.f32 0.0, %v5201
    %v5203 = vpop.f32.mrb[0].mxu0
    %5204 = vmatprep.mubr.f32.mxu0 0.0
    %5205 = vmatmul.mubr.f32.gmra.mrb[0].mxu0 %v5062
    %v5206 = vpop.f32.mrb[0].mxu0
    %v5207 = vadd.f32 0.0, %v5206
    %v5208 = vpop.f32.mrb[0].mxu0
    %5209 = vmatprep.mubr.f32.mxu0 0.0
    %5210 = vmatmul.mubr.f32.gmra.mrb[0].mxu0 %v5065
    %v5211 = vpop.f32.mrb[0].mxu0
    %v5212 = vadd.f32 0.0, %v5211
    %v5213 = vpop.f32.mrb[0].mxu0
    %5214 = vmatprep.mubr.f32.mxu0 0.0
    %5215 = vmatmul.mubr.f32.gmra.mrb[0].mxu0 %v5068
    %v5216 = vpop.f32.mrb[0].mxu0
    %v5217 = vadd.f32 0.0, %v5216
    %v5218 = vpop.f32.mrb[0].mxu0
    %5219 = vdwg.mxu0
    %v5220 = vld [vmem:[#allocation22] sm:$0xff]
    %v5221 = vld [vmem:[#allocation22 + $0x8] sm:$0xff]
    %v5222 = vld [vmem:[#allocation22 + $0x10] sm:$0xff]
    %v5223 = vld [vmem:[#allocation22 + $0x18] sm:$0xff]
    %v5224 = vld [vmem:[#allocation22 + $0x20] sm:$0xff]
    %v5225 = vld [vmem:[#allocation22 + $0x28] sm:$0xff]
    %v5226 = vld [vmem:[#allocation22 + $0x30] sm:$0xff]
    %v5227 = vld [vmem:[#allocation22 + $0x38] sm:$0xff]
    %v5228 = vld [vmem:[#allocation22 + $0x40] sm:$0xff]
    %v5229 = vld [vmem:[#allocation22 + $0x48] sm:$0xff]
    %v5230 = vld [vmem:[#allocation22 + $0x50] sm:$0xff]
    %v5231 = vld [vmem:[#allocation22 + $0x58] sm:$0xff]
    %v5232 = vld [vmem:[#allocation22 + $0x60] sm:$0xff]
    %v5233 = vld [vmem:[#allocation22 + $0x68] sm:$0xff]
    %v5235 = vsel %vm3238, %v5221, 0
    %v5238 = vsel %vm3238, %v5223, 0
    %v5241 = vsel %vm3238, %v5225, 0
    %v5244 = vsel %vm3238, %v5227, 0
    %v5247 = vsel %vm3238, %v5229, 0
    %v5250 = vsel %vm3238, %v5231, 0
    %v5253 = vsel %vm3238, %v5233, 0
    %5255 = vmatprep.subr.mxu0 0.0
    %5256 = vmatpush1.msra.mxu0 %v5137
    %5257 = vmatprep.subr.mxu0 0.0
    %5258 = vmatpush1.msra.mxu0 %v5142
    %5259 = vmatprep.subr.mxu0 0.0
    %5260 = vmatpush1.msra.mxu0 %v5147
    %5261 = vmatprep.subr.mxu0 0.0
    %5262 = vmatpush1.msra.mxu0 %v5152
    %5263 = vmatprep.subr.mxu0 0.0
    %5264 = vmatpush1.msra.mxu0 %v5157
    %5265 = vmatprep.subr.mxu0 0.0
    %5266 = vmatpush1.msra.mxu0 %v5162
    %5267 = vmatprep.subr.mxu0 0.0
    %5268 = vmatpush1.msra.mxu0 %v5167
    %5269 = vmatprep.subr.mxu0 0.0
    %5270 = vmatpush1.msra.mxu0 %v5172
    %5271 = vmatprep.subr.mxu0 0.0
    %5272 = vmatpush1.msra.mxu0 %v5177
    %5273 = vmatprep.subr.mxu0 0.0
    %5274 = vmatpush1.msra.mxu0 %v5182
    %5275 = vmatprep.subr.mxu0 0.0
    %5276 = vmatpush1.msra.mxu0 %v5187
    %5277 = vmatprep.subr.mxu0 0.0
    %5278 = vmatpush1.msra.mxu0 %v5192
    %5279 = vmatprep.subr.mxu0 0.0
    %5280 = vmatpush1.msra.mxu0 %v5197
    %5281 = vmatprep.subr.mxu0 0.0
    %5282 = vmatpush1.msra.mxu0 %v5202
    %5283 = vmatprep.subr.mxu0 0.0
    %5284 = vmatpush1.msra.mxu0 %v5207
    %5285 = vmatprep.subr.mxu0 0.0
    %5286 = vmatpush1.msra.mxu0 %v5212
    %5287 = vmatprep.subr.mxu0 0.0
    %5288 = vmatpush1.msra.mxu0 %v5217
    %5289 = vmatprep.subr.mxu0 0.0
    %5290 = vmatpush1.msra.mxu0 0.0
    %5291 = vmatprep.subr.mxu0 0.0
    %5292 = vmatpush1.msra.mxu0 0.0
    %5293 = vmatprep.subr.mxu0 0.0
    %5294 = vmatpush1.msra.mxu0 0.0
    %5295 = vmatprep.subr.mxu0 0.0
    %5296 = vmatpush1.msra.mxu0 0.0
    %5297 = vmatprep.subr.mxu0 0.0
    %5298 = vmatpush1.msra.mxu0 0.0
    %5299 = vmatprep.subr.mxu0 0.0
    %5300 = vmatpush1.msra.mxu0 0.0
    %5301 = vmatprep.subr.mxu0 0.0
    %5302 = vmatpush1.msra.mxu0 0.0
    %5303 = vmatprep.subr.mxu0 0.0
    %5304 = vmatpush1.msra.mxu0 0.0
    %5305 = vmatprep.subr.mxu0 0.0
    %5306 = vmatpush1.msra.mxu0 0.0
    %5307 = vmatprep.subr.mxu0 0.0
    %5308 = vmatpush1.msra.mxu0 0.0
    %5309 = vmatprep.subr.mxu0 0.0
    %5310 = vmatpush1.msra.mxu0 0.0
    %5311 = vmatprep.subr.mxu0 0.0
    %5312 = vmatpush1.msra.mxu0 0.0
    %5313 = vmatprep.subr.mxu0 0.0
    %5314 = vmatpush1.msra.mxu0 0.0
    %5315 = vmatprep.subr.mxu0 0.0
    %5316 = vmatpush1.msra.mxu0 0.0
    %5317 = vmatprep.subr.mxu0 0.0
    %5318 = vmatpush1.msra.mxu0 0.0
    %5319 = vmatprep.mubr.f32.mxu0 %v5235
    %5320 = vmatmul.mubr.f32.gmra.mrb[0].mxu0 %v5220
    %v5321 = vpop.f32.mrb[0].mxu0
    %v5322 = vadd.f32 0.0, %v5321
    %v5323 = vpop.f32.mrb[0].mxu0
    %5324 = vmatprep.mubr.f32.mxu0 %v5238
    %5325 = vmatmul.mubr.f32.gmra.mrb[0].mxu0 %v5222
    %v5326 = vpop.f32.mrb[0].mxu0
    %v5327 = vadd.f32 0.0, %v5326
    %v5328 = vpop.f32.mrb[0].mxu0
    %5329 = vmatprep.mubr.f32.mxu0 %v5241
    %5330 = vmatmul.mubr.f32.gmra.mrb[0].mxu0 %v5224
    %v5331 = vpop.f32.mrb[0].mxu0
    %v5332 = vadd.f32 0.0, %v5331
    %v5333 = vpop.f32.mrb[0].mxu0
    %5334 = vmatprep.mubr.f32.mxu0 %v5244
    %5335 = vmatmul.mubr.f32.gmra.mrb[0].mxu0 %v5226
    %v5336 = vpop.f32.mrb[0].mxu0
    %v5337 = vadd.f32 0.0, %v5336
    %v5338 = vpop.f32.mrb[0].mxu0
    %5339 = vmatprep.mubr.f32.mxu0 %v5247
    %5340 = vmatmul.mubr.f32.gmra.mrb[0].mxu0 %v5228
    %v5341 = vpop.f32.mrb[0].mxu0
    %v5342 = vadd.f32 0.0, %v5341
    %v5343 = vpop.f32.mrb[0].mxu0
    %5344 = vmatprep.mubr.f32.mxu0 %v5250
    %5345 = vmatmul.mubr.f32.gmra.mrb[0].mxu0 %v5230
    %v5346 = vpop.f32.mrb[0].mxu0
    %v5347 = vadd.f32 0.0, %v5346
    %v5348 = vpop.f32.mrb[0].mxu0
    %5349 = vmatprep.mubr.f32.mxu0 %v5253
    %5350 = vmatmul.mubr.f32.gmra.mrb[0].mxu0 %v5232
    %v5351 = vpop.f32.mrb[0].mxu0
    %v5352 = vadd.f32 0.0, %v5351
    %v5353 = vpop.f32.mrb[0].mxu0
    %5354 = vdwg.mxu0
    %v5355 = vld [vmem:[#allocation27] sm:$0xff]
    %v5356 = vld [vmem:[#allocation27 + $0x8] sm:$0xff]
    %vm5357 = vcmask 130048
    %v5359 = vsel %vm5357, %v1315, 0
    %v5362 = vsel %vm5357, %v1316, 0
    %v5365 = vsel %vm5357, %v1317, 0
    %v5368 = vsel %vm5357, %v1318, 0
    %v5371 = vsel %vm5357, %v1319, 0
    %v5374 = vsel %vm5357, %v1320, 0
    %v5377 = vsel %vm5357, %v1321, 0
    %v5380 = vsel %vm5357, %v1322, 0
    %v5383 = vsel %vm5357, %v1323, 0
    %v5386 = vsel %vm5357, %v1324, 0
    %v5389 = vsel %vm5357, %v1325, 0
    %5391 = vmatprep.subr.mxu0 0.0
    %5392 = vmatpush1.msra.mxu0 %v5355
    %5393 = vmatprep.subr.mxu0 0.0
    %5394 = vmatpush1.msra.mxu0 %v5356
    %5395 = vmatprep.subr.mxu0 0.0
    %5396 = vmatpush1.msra.mxu0 0.0
    %5397 = vmatprep.subr.mxu0 0.0
    %5398 = vmatpush1.msra.mxu0 0.0
    %5399 = vmatprep.subr.mxu0 0.0
    %5400 = vmatpush1.msra.mxu0 0.0
    %5401 = vmatprep.subr.mxu0 0.0
    %5402 = vmatpush1.msra.mxu0 0.0
    %5403 = vmatprep.subr.mxu0 0.0
    %5404 = vmatpush1.msra.mxu0 0.0
    %5405 = vmatprep.subr.mxu0 0.0
    %5406 = vmatpush1.msra.mxu0 0.0
    %5407 = vmatprep.subr.mxu0 0.0
    %5408 = vmatpush1.msra.mxu0 0.0
    %5409 = vmatprep.subr.mxu0 0.0
    %5410 = vmatpush1.msra.mxu0 0.0
    %5411 = vmatprep.subr.mxu0 0.0
    %5412 = vmatpush1.msra.mxu0 0.0
    %5413 = vmatprep.subr.mxu0 0.0
    %5414 = vmatpush1.msra.mxu0 0.0
    %5415 = vmatprep.subr.mxu0 0.0
    %5416 = vmatpush1.msra.mxu0 0.0
    %5417 = vmatprep.subr.mxu0 0.0
    %5418 = vmatpush1.msra.mxu0 0.0
    %5419 = vmatprep.subr.mxu0 0.0
    %5420 = vmatpush1.msra.mxu0 0.0
    %5421 = vmatprep.subr.mxu0 0.0
    %5422 = vmatpush1.msra.mxu0 0.0
    %5423 = vmatprep.subr.mxu0 0.0
    %5424 = vmatpush1.msra.mxu0 0.0
    %5425 = vmatprep.subr.mxu0 0.0
    %5426 = vmatpush1.msra.mxu0 0.0
    %5427 = vmatprep.subr.mxu0 0.0
    %5428 = vmatpush1.msra.mxu0 0.0
    %5429 = vmatprep.subr.mxu0 0.0
    %5430 = vmatpush1.msra.mxu0 0.0
    %5431 = vmatprep.subr.mxu0 0.0
    %5432 = vmatpush1.msra.mxu0 0.0
    %5433 = vmatprep.subr.mxu0 0.0
    %5434 = vmatpush1.msra.mxu0 0.0
    %5435 = vmatprep.subr.mxu0 0.0
    %5436 = vmatpush1.msra.mxu0 0.0
    %5437 = vmatprep.subr.mxu0 0.0
    %5438 = vmatpush1.msra.mxu0 0.0
    %5439 = vmatprep.subr.mxu0 0.0
    %5440 = vmatpush1.msra.mxu0 0.0
    %5441 = vmatprep.subr.mxu0 0.0
    %5442 = vmatpush1.msra.mxu0 0.0
    %5443 = vmatprep.subr.mxu0 0.0
    %5444 = vmatpush1.msra.mxu0 0.0
    %5445 = vmatprep.subr.mxu0 0.0
    %5446 = vmatpush1.msra.mxu0 0.0
    %5447 = vmatprep.subr.mxu0 0.0
    %5448 = vmatpush1.msra.mxu0 0.0
    %5449 = vmatprep.subr.mxu0 0.0
    %5450 = vmatpush1.msra.mxu0 0.0
    %5451 = vmatprep.subr.mxu0 0.0
    %5452 = vmatpush1.msra.mxu0 0.0
    %5453 = vmatprep.subr.mxu0 0.0
    %5454 = vmatpush1.msra.mxu0 0.0
    %5455 = vmatprep.mubr.f32.mxu0 0.0
    %5456 = vmatmul.mubr.f32.gmra.mrb[0].mxu0 %v5359
    %v5457 = vpop.f32.mrb[0].mxu0
    %v5458 = vadd.f32 0.0, %v5457
    %v5459 = vpop.f32.mrb[0].mxu0
    %5460 = vmatprep.mubr.f32.mxu0 0.0
    %5461 = vmatmul.mubr.f32.gmra.mrb[0].mxu0 %v5362
    %v5462 = vpop.f32.mrb[0].mxu0
    %v5463 = vadd.f32 0.0, %v5462
    %v5464 = vpop.f32.mrb[0].mxu0
    %5465 = vmatprep.mubr.f32.mxu0 0.0
    %5466 = vmatmul.mubr.f32.gmra.mrb[0].mxu0 %v5365
    %v5467 = vpop.f32.mrb[0].mxu0
    %v5468 = vadd.f32 0.0, %v5467
    %v5469 = vpop.f32.mrb[0].mxu0
    %5470 = vmatprep.mubr.f32.mxu0 0.0
    %5471 = vmatmul.mubr.f32.gmra.mrb[0].mxu0 %v5368
    %v5472 = vpop.f32.mrb[0].mxu0
    %v5473 = vadd.f32 0.0, %v5472
    %v5474 = vpop.f32.mrb[0].mxu0
    %5475 = vmatprep.mubr.f32.mxu0 0.0
    %5476 = vmatmul.mubr.f32.gmra.mrb[0].mxu0 %v5371
    %v5477 = vpop.f32.mrb[0].mxu0
    %v5478 = vadd.f32 0.0, %v5477
    %v5479 = vpop.f32.mrb[0].mxu0
    %5480 = vmatprep.mubr.f32.mxu0 0.0
    %5481 = vmatmul.mubr.f32.gmra.mrb[0].mxu0 %v5374
    %v5482 = vpop.f32.mrb[0].mxu0
    %v5483 = vadd.f32 0.0, %v5482
    %v5484 = vpop.f32.mrb[0].mxu0
    %5485 = vmatprep.mubr.f32.mxu0 0.0
    %5486 = vmatmul.mubr.f32.gmra.mrb[0].mxu0 %v5377
    %v5487 = vpop.f32.mrb[0].mxu0
    %v5488 = vadd.f32 0.0, %v5487
    %v5489 = vpop.f32.mrb[0].mxu0
    %5490 = vmatprep.mubr.f32.mxu0 0.0
    %5491 = vmatmul.mubr.f32.gmra.mrb[0].mxu0 %v5380
    %v5492 = vpop.f32.mrb[0].mxu0
    %v5493 = vadd.f32 0.0, %v5492
    %v5494 = vpop.f32.mrb[0].mxu0
    %5495 = vmatprep.mubr.f32.mxu0 0.0
    %5496 = vmatmul.mubr.f32.gmra.mrb[0].mxu0 %v5383
    %v5497 = vpop.f32.mrb[0].mxu0
    %v5498 = vadd.f32 0.0, %v5497
    %v5499 = vpop.f32.mrb[0].mxu0
    %5500 = vmatprep.mubr.f32.mxu0 0.0
    %5501 = vmatmul.mubr.f32.gmra.mrb[0].mxu0 %v5386
    %v5502 = vpop.f32.mrb[0].mxu0
    %v5503 = vadd.f32 0.0, %v5502
    %v5504 = vpop.f32.mrb[0].mxu0
    %5505 = vmatprep.mubr.f32.mxu0 0.0
    %5506 = vmatmul.mubr.f32.gmra.mrb[0].mxu0 %v5389
    %v5507 = vpop.f32.mrb[0].mxu0
    %v5508 = vadd.f32 0.0, %v5507
    %v5509 = vpop.f32.mrb[0].mxu0
    %5510 = vdwg.mxu0
    %v5511 = vld [vmem:[#allocation25] sm:$0xff]
    %v5512 = vld [vmem:[#allocation25 + $0x8] sm:$0xff]
    %v5513 = vld [vmem:[#allocation25 + $0x10] sm:$0xff]
    %v5514 = vld [vmem:[#allocation25 + $0x18] sm:$0xff]
    %v5515 = vld [vmem:[#allocation25 + $0x20] sm:$0xff]
    %v5516 = vld [vmem:[#allocation25 + $0x28] sm:$0xff]
    %v5517 = vld [vmem:[#allocation25 + $0x30] sm:$0xff]
    %vm5518 = vcmask 719872
    %v5520 = vsel %vm5518, %v5511, 0
    %v5523 = vsel %vm5518, %v5512, 0
    %v5526 = vsel %vm5518, %v5513, 0
    %v5529 = vsel %vm5518, %v5514, 0
    %v5532 = vsel %vm5518, %v5515, 0
    %v5535 = vsel %vm5518, %v5516, 0
    %v5538 = vsel %vm5518, %v5517, 0
    %5540 = vmatprep.subr.mxu0 0.0
    %5541 = vmatpush1.msra.mxu0 %v5458
    %5542 = vmatprep.subr.mxu0 0.0
    %5543 = vmatpush1.msra.mxu0 %v5463
    %5544 = vmatprep.subr.mxu0 0.0
    %5545 = vmatpush1.msra.mxu0 %v5468
    %5546 = vmatprep.subr.mxu0 0.0
    %5547 = vmatpush1.msra.mxu0 %v5473
    %5548 = vmatprep.subr.mxu0 0.0
    %5549 = vmatpush1.msra.mxu0 %v5478
    %5550 = vmatprep.subr.mxu0 0.0
    %5551 = vmatpush1.msra.mxu0 %v5483
    %5552 = vmatprep.subr.mxu0 0.0
    %5553 = vmatpush1.msra.mxu0 %v5488
    %5554 = vmatprep.subr.mxu0 0.0
    %5555 = vmatpush1.msra.mxu0 %v5493
    %5556 = vmatprep.subr.mxu0 0.0
    %5557 = vmatpush1.msra.mxu0 %v5498
    %5558 = vmatprep.subr.mxu0 0.0
    %5559 = vmatpush1.msra.mxu0 %v5503
    %5560 = vmatprep.subr.mxu0 0.0
    %5561 = vmatpush1.msra.mxu0 %v5508
    %5562 = vmatprep.subr.mxu0 0.0
    %5563 = vmatpush1.msra.mxu0 0.0
    %5564 = vmatprep.subr.mxu0 0.0
    %5565 = vmatpush1.msra.mxu0 0.0
    %5566 = vmatprep.subr.mxu0 0.0
    %5567 = vmatpush1.msra.mxu0 0.0
    %5568 = vmatprep.subr.mxu0 0.0
    %5569 = vmatpush1.msra.mxu0 0.0
    %5570 = vmatprep.subr.mxu0 0.0
    %5571 = vmatpush1.msra.mxu0 0.0
    %5572 = vmatprep.subr.mxu0 0.0
    %5573 = vmatpush1.msra.mxu0 0.0
    %5574 = vmatprep.subr.mxu0 0.0
    %5575 = vmatpush1.msra.mxu0 0.0
    %5576 = vmatprep.subr.mxu0 0.0
    %5577 = vmatpush1.msra.mxu0 0.0
    %5578 = vmatprep.subr.mxu0 0.0
    %5579 = vmatpush1.msra.mxu0 0.0
    %5580 = vmatprep.subr.mxu0 0.0
    %5581 = vmatpush1.msra.mxu0 0.0
    %5582 = vmatprep.subr.mxu0 0.0
    %5583 = vmatpush1.msra.mxu0 0.0
    %5584 = vmatprep.subr.mxu0 0.0
    %5585 = vmatpush1.msra.mxu0 0.0
    %5586 = vmatprep.subr.mxu0 0.0
    %5587 = vmatpush1.msra.mxu0 0.0
    %5588 = vmatprep.subr.mxu0 0.0
    %5589 = vmatpush1.msra.mxu0 0.0
    %5590 = vmatprep.subr.mxu0 0.0
    %5591 = vmatpush1.msra.mxu0 0.0
    %5592 = vmatprep.subr.mxu0 0.0
    %5593 = vmatpush1.msra.mxu0 0.0
    %5594 = vmatprep.subr.mxu0 0.0
    %5595 = vmatpush1.msra.mxu0 0.0
    %5596 = vmatprep.subr.mxu0 0.0
    %5597 = vmatpush1.msra.mxu0 0.0
    %5598 = vmatprep.subr.mxu0 0.0
    %5599 = vmatpush1.msra.mxu0 0.0
    %5600 = vmatprep.subr.mxu0 0.0
    %5601 = vmatpush1.msra.mxu0 0.0
    %5602 = vmatprep.subr.mxu0 0.0
    %5603 = vmatpush1.msra.mxu0 0.0
    %5604 = vmatprep.mubr.f32.mxu0 0.0
    %5605 = vmatmul.mubr.f32.gmra.mrb[0].mxu0 %v5520
    %v5606 = vpop.f32.mrb[0].mxu0
    %v5607 = vadd.f32 0.0, %v5606
    %v5608 = vpop.f32.mrb[0].mxu0
    %5609 = vmatprep.mubr.f32.mxu0 0.0
    %5610 = vmatmul.mubr.f32.gmra.mrb[0].mxu0 %v5523
    %v5611 = vpop.f32.mrb[0].mxu0
    %v5612 = vadd.f32 0.0, %v5611
    %v5613 = vpop.f32.mrb[0].mxu0
    %5614 = vmatprep.mubr.f32.mxu0 0.0
    %5615 = vmatmul.mubr.f32.gmra.mrb[0].mxu0 %v5526
    %v5616 = vpop.f32.mrb[0].mxu0
    %v5617 = vadd.f32 0.0, %v5616
    %v5618 = vpop.f32.mrb[0].mxu0
    %5619 = vmatprep.mubr.f32.mxu0 0.0
    %5620 = vmatmul.mubr.f32.gmra.mrb[0].mxu0 %v5529
    %v5621 = vpop.f32.mrb[0].mxu0
    %v5622 = vadd.f32 0.0, %v5621
    %v5623 = vpop.f32.mrb[0].mxu0
    %5624 = vmatprep.mubr.f32.mxu0 0.0
    %5625 = vmatmul.mubr.f32.gmra.mrb[0].mxu0 %v5532
    %v5626 = vpop.f32.mrb[0].mxu0
    %v5627 = vadd.f32 0.0, %v5626
    %v5628 = vpop.f32.mrb[0].mxu0
    %5629 = vmatprep.mubr.f32.mxu0 0.0
    %5630 = vmatmul.mubr.f32.gmra.mrb[0].mxu0 %v5535
    %v5631 = vpop.f32.mrb[0].mxu0
    %v5632 = vadd.f32 0.0, %v5631
    %v5633 = vpop.f32.mrb[0].mxu0
    %5634 = vmatprep.mubr.f32.mxu0 0.0
    %5635 = vmatmul.mubr.f32.gmra.mrb[0].mxu0 %v5538
    %v5636 = vpop.f32.mrb[0].mxu0
    %v5637 = vadd.f32 0.0, %v5636
    %v5638 = vpop.f32.mrb[0].mxu0
    %5639 = vdwg.mxu0
    %v5640 = vsub.f32 %v5322, %v5607
    %v5641 = vsub.f32 %v5327, %v5612
    %v5642 = vsub.f32 %v5332, %v5617
    %v5643 = vsub.f32 %v5337, %v5622
    %v5644 = vsub.f32 %v5342, %v5627
    %v5645 = vsub.f32 %v5347, %v5632
    %v5646 = vsub.f32 %v5352, %v5637
    %v5647 = vld [vmem:[%s17] sm:$0xff]
    %v5648 = vld [vmem:[%s17 + $0x8] sm:$0xff]
    %v5649 = vld [vmem:[%s17 + $0x10] sm:$0xff]
    %v5650 = vld [vmem:[%s17 + $0x18] sm:$0xff]
    %v5651 = vld [vmem:[%s17 + $0x20] sm:$0xff]
    %v5652 = vld [vmem:[%s17 + $0x28] sm:$0xff]
    %v5653 = vld [vmem:[%s17 + $0x30] sm:$0xff]
    %5655 = vset.pattern.permute.xlu0 0
    %5656 = vperm.xlu0 %5655, %v5647
    %v5657 = vpop.permute.xlu0 %5656
    %5660 = vset.pattern.permute.xlu0 0
    %5661 = vperm.xlu0 %5660, %v5648
    %v5662 = vpop.permute.xlu0 %5661
    %5665 = vset.pattern.permute.xlu0 0
    %5666 = vperm.xlu0 %5665, %v5649
    %v5667 = vpop.permute.xlu0 %5666
    %5670 = vset.pattern.permute.xlu0 0
    %5671 = vperm.xlu0 %5670, %v5650
    %v5672 = vpop.permute.xlu0 %5671
    %5675 = vset.pattern.permute.xlu0 0
    %5676 = vperm.xlu0 %5675, %v5651
    %v5677 = vpop.permute.xlu0 %5676
    %5680 = vset.pattern.permute.xlu0 0
    %5681 = vperm.xlu0 %5680, %v5652
    %v5682 = vpop.permute.xlu0 %5681
    %5685 = vset.pattern.permute.xlu0 0
    %5686 = vperm.xlu0 %5685, %v5653
    %v5687 = vpop.permute.xlu0 %5686
    %v5689 = vadd.f32 %v5640, %v5657
    %v5690 = vadd.f32 %v5641, %v5662
    %v5691 = vadd.f32 %v5642, %v5667
    %v5692 = vadd.f32 %v5643, %v5672
    %v5693 = vadd.f32 %v5644, %v5677
    %v5694 = vadd.f32 %v5645, %v5682
    %v5695 = vadd.f32 %v5646, %v5687
    %vm5696 = vcmask 56320
    %5697 = vst.msk [vmem:[%s18] sm:$0xff] %vm5696, %v5689
    %5698 = vst.msk [vmem:[%s18 + $0x8] sm:$0xff] %vm5696, %v5690
    %5699 = vst.msk [vmem:[%s18 + $0x10] sm:$0xff] %vm5696, %v5691
    %5700 = vst.msk [vmem:[%s18 + $0x18] sm:$0xff] %vm5696, %v5692
    %5701 = vst.msk [vmem:[%s18 + $0x20] sm:$0xff] %vm5696, %v5693
    %5702 = vst.msk [vmem:[%s18 + $0x28] sm:$0xff] %vm5696, %v5694
    %5703 = vst.msk [vmem:[%s18 + $0x30] sm:$0xff] %vm5696, %v5695
    // Predicated region
    $region142: #{forward.1} parent=1 // pred_check
      _
    $region143: #{forward.1} parent=1 // pred_check_branch
      %5705 = sbr.rel (0) target = $region145
    $region144: #{forward.1} parent=1 // pred_region
      _
    $region145: #{forward.1} parent=1 // pred_fallthru
      _
    // Predicated region
    $region146: #{forward.1} parent=1 // pred_check
      _
    $region147: #{forward.1} parent=1 // pred_check_branch
      %5707 = sbr.rel (0) target = $region149
    $region148: #{forward.1} parent=1 // pred_region
      _
    $region149: #{forward.1} parent=1 // pred_fallthru
      _
    %5708 = vsyncpa [#allocation3], 1
    %5709 = vsyncpa [#allocation5], 1
    %5710 = vsyncpa [#allocation8], 1
    %5711 = vsyncpa [#allocation11], 1
    %5712 = vsyncpa [#allocation14], 1
    %5713 = vsyncpa [#allocation17], 1
    %5714 = vsyncpa [#allocation20], 1
    %5715 = vsyncpa [#allocation23], 1
    %5716 = vsyncpa [#allocation26], 1

</llo_original>
